<compile_context>
chip_gen: v7x
topology: tpu7x:2x2x1
jax: 0.10.0
libtpu: 0.0.40
codegen_flags: <defaults>
</compile_context>

<pallas_src>
import jax
import jax.numpy as jnp
from jax import lax
from jax.experimental import pallas as pl
from jax.experimental.pallas import tpu as pltpu

# ----------------------------------------------------------------------------
# Geometry implied by fc1 = Linear(16*14*4, 120)
# ----------------------------------------------------------------------------
N_BATCH = 2
H_IN, W_IN = 68, 28
K = 5
C1 = 6
H1, W1 = H_IN - K + 1, W_IN - K + 1          # 64, 24
H1P, W1P = H1 // 2, W1 // 2                  # 32, 12
C2 = 16
H2, W2 = H1P - K + 1, W1P - K + 1            # 28, 8
H2P, W2P = H2 // 2, W2 // 2                  # 14, 4
FC1_IN = C2 * H2P * W2P                      # 896
FC1_OUT, FC2_OUT, FC3_OUT = 120, 84, 10


# ----------------------------------------------------------------------------
# The single fused kernel
# ----------------------------------------------------------------------------
def _net_kernel(x_ref, w1m_ref, b1_ref, s1_ref, c1_ref,
                w2m_ref, b2_ref, s2_ref, c2_ref,
                wf1_ref, bf1_ref, wf2_ref, bf2_ref, wf3_ref, bf3_ref,
                o_ref, flat_ref):
    f32 = jnp.float32
    b1 = b1_ref[...]                       # (1, 144)
    b2 = b2_ref[...]                       # (1, 128)
    s1e, s1o = s1_ref[0], s1_ref[1]        # (32, 64)   even/odd row selectors
    c1e, c1o = c1_ref[0], c1_ref[1]        # (144, 72)  even/odd col selectors
    s2e, s2o = s2_ref[0], s2_ref[1]        # (14, 28)
    c2e, c2o = c2_ref[0], c2_ref[1]        # (128, 64)

    n_batch = x_ref.shape[0]
    for n in range(n_batch):               # unrolled (batch = 2)
        xn = x_ref[n]                                              # (68, 28)

        # conv1 + bias + ReLU: shift-and-matmul over the 5 kernel rows.
        # acc1[i, j*6+o] = conv1(x)[n, o, i, j]
        acc1 = jnp.dot(xn[0:H1, :], w1m_ref[0], preferred_element_type=f32)
        for di in range(1, K):
            acc1 = acc1 + jnp.dot(xn[di:di + H1, :], w1m_ref[di],
                                  preferred_element_type=f32)      # (64, 144)
        a1 = jnp.maximum(acc1 + b1, 0.0)

        # 2x2 max-pool: even/odd row selection, then even/odd col-group selection.
        rmax = jnp.maximum(jnp.dot(s1e, a1, preferred_element_type=f32),
                           jnp.dot(s1o, a1, preferred_element_type=f32))   # (32, 144)
        a1p = jnp.maximum(jnp.dot(rmax, c1e, preferred_element_type=f32),
                          jnp.dot(rmax, c1o, preferred_element_type=f32))  # (32, 72)

        # conv2 + bias + ReLU: acc2[i, j*16+o] = conv2(pool1)[n, o, i, j]
        acc2 = jnp.dot(a1p[0:H2, :], w2m_ref[0], preferred_element_type=f32)
        for di in range(1, K):
            acc2 = acc2 + jnp.dot(a1p[di:di + H2, :], w2m_ref[di],
                                  preferred_element_type=f32)      # (28, 128)
        a2 = jnp.maximum(acc2 + b2, 0.0)

        rmax2 = jnp.maximum(jnp.dot(s2e, a2, preferred_element_type=f32),
                            jnp.dot(s2o, a2, preferred_element_type=f32))  # (14, 128)
        a2p = jnp.maximum(jnp.dot(rmax2, c2e, preferred_element_type=f32),
                          jnp.dot(rmax2, c2o, preferred_element_type=f32)) # (14, 64)

        # Flatten (h, w, c)-order into a lane-dense (1, 896) row in VMEM scratch.
        # fc1 weight rows were permuted wrapper-side so this matches PyTorch's
        # NCHW x.view(-1, 16*14*4) exactly.
        cols = W2P * C2                                            # 64
        for h in range(H2P):
            flat_ref[n:n + 1, h * cols:(h + 1) * cols] = a2p[h:h + 1, :]

    # Fully-connected stack, once for the whole batch, all in VMEM.
    flat = flat_ref[...]                                           # (2, 896)
    h1 = jnp.maximum(jnp.dot(flat, wf1_ref[...], preferred_element_type=f32)
                     + bf1_ref[...], 0.0)                          # (2, 120)
    h2 = jnp.maximum(jnp.dot(h1, wf2_ref[...], preferred_element_type=f32)
                     + bf2_ref[...], 0.0)                          # (2, 84)
    o_ref[...] = (jnp.dot(h2, wf3_ref[...], preferred_element_type=f32)
                  + bf3_ref[...])                                  # (2, 10)


# ----------------------------------------------------------------------------
# Wrapper-side (weight-only) preprocessing
# ----------------------------------------------------------------------------
def _conv1_toeplitz(w1):
    """(6,1,5,5) -> (5, 28, 144): w1m[di, jj, j*6+o] = w1[o,0,di,jj-j]."""
    jj = jnp.arange(W_IN)[:, None]
    j = jnp.arange(W1)[None, :]
    dj = jj - j
    valid = (dj >= 0) & (dj < K)
    djc = jnp.clip(dj, 0, K - 1)
    w = w1[:, 0, :, :]                       # (6, 5, 5)  [o, di, dj]
    wg = w[:, :, djc]                        # (6, 5, 28, 24)
    wg = jnp.where(valid[None, None], wg, 0.0)
    return jnp.transpose(wg, (1, 2, 3, 0)).reshape(K, W_IN, W1 * C1)


def _conv2_toeplitz(w2):
    """(16,6,5,5) -> (5, 72, 128): w2m[di, jsrc*6+c, j*16+o] = w2[o,c,di,jsrc-j]."""
    jj = jnp.arange(W1P)[:, None]
    j = jnp.arange(W2)[None, :]
    dj = jj - j
    valid = (dj >= 0) & (dj < K)
    djc = jnp.clip(dj, 0, K - 1)
    wg = w2[:, :, :, djc]                    # (16, 6, 5, 12, 8)
    wg = jnp.where(valid[None, None, None], wg, 0.0)
    return jnp.transpose(wg, (2, 3, 1, 4, 0)).reshape(K, W1P * C1, W2 * C2)


def _sel_rows(n_out, n_in):
    """(2, n_out, n_in): [0][u,2u]=1 (even rows), [1][u,2u+1]=1 (odd rows)."""
    u = jnp.arange(n_out)[:, None]
    r = jnp.arange(n_in)[None, :]
    even = (r == 2 * u).astype(jnp.float32)
    odd = (r == 2 * u + 1).astype(jnp.float32)
    return jnp.stack([even, odd])


def _sel_cols(w_in, w_out, g):
    """(2, w_in*g, w_out*g): pick even/odd column-groups of width g."""
    r = jnp.arange(w_in * g)
    j_in, c_in = r // g, r % g
    s = jnp.arange(w_out * g)
    v, c_out = s // g, s % g
    even = ((c_in[:, None] == c_out[None, :]) &
            (j_in[:, None] == 2 * v[None, :])).astype(jnp.float32)
    odd = ((c_in[:, None] == c_out[None, :]) &
           (j_in[:, None] == 2 * v[None, :] + 1)).astype(jnp.float32)
    return jnp.stack([even, odd])


def _full_spec(shape):
    nd = len(shape)
    return pl.BlockSpec(shape, lambda i, _nd=nd: (0,) * _nd)


def net_forward(x_nchw, params):
    f32 = jnp.float32
    x = x_nchw[:, 0, :, :]                                   # (N, 68, 28), Cin == 1

    w1m = _conv1_toeplitz(params["conv1_w"])                 # (5, 28, 144)
    b1e = jnp.tile(params["conv1_b"], W1).reshape(1, W1 * C1)
    w2m = _conv2_toeplitz(params["conv2_w"])                 # (5, 72, 128)
    b2e = jnp.tile(params["conv2_b"], W2).reshape(1, W2 * C2)

    s1 = _sel_rows(H1P, H1)                                  # (2, 32, 64)
    c1 = _sel_cols(W1, W1P, C1)                              # (2, 144, 72)
    s2 = _sel_rows(H2P, H2)                                  # (2, 14, 28)
    c2 = _sel_cols(W2, W2P, C2)                              # (2, 128, 64)

    # fc1 rows reordered from PyTorch's NCHW flatten (c, h, w) to the kernel's
    # (h, w, c) flatten order.
    wf1 = params["fc1_w"].reshape(C2, H2P, W2P, FC1_OUT)
    wf1 = jnp.transpose(wf1, (1, 2, 0, 3)).reshape(FC1_IN, FC1_OUT)
    bf1 = params["fc1_b"].reshape(1, FC1_OUT)
    wf2, bf2 = params["fc2_w"], params["fc2_b"].reshape(1, FC2_OUT)
    wf3, bf3 = params["fc3_w"], params["fc3_b"].reshape(1, FC3_OUT)

    args = (x, w1m, b1e, s1, c1, w2m, b2e, s2, c2,
            wf1, bf1, wf2, bf2, wf3, bf3)
    out_shape = (x.shape[0], FC3_OUT)
    return pl.pallas_call(
        _net_kernel,
        out_shape=jax.ShapeDtypeStruct(out_shape, f32),
        grid=(1,),
        in_specs=[_full_spec(a.shape) for a in args],
        out_specs=_full_spec(out_shape),
        scratch_shapes=[pltpu.VMEM((x.shape[0], FC1_IN), f32)],
        compiler_params=pltpu.CompilerParams(
            dimension_semantics=("arbitrary",)),
    )(*args)


# ----------------------------------------------------------------------------
# Pure-JAX reference (PyTorch Net.forward semantics) for correctness checking
# ----------------------------------------------------------------------------
def net_forward_reference(x_nchw, params):
    dn = ("NCHW", "OIHW", "NCHW")
    y = lax.conv_general_dilated(x_nchw, params["conv1_w"], (1, 1), "VALID",
                                 dimension_numbers=dn)
    y = jax.nn.relu(y + params["conv1_b"].reshape(1, -1, 1, 1))
    y = lax.reduce_window(y, -jnp.inf, lax.max, (1, 1, 2, 2), (1, 1, 2, 2), "VALID")
    y = lax.conv_general_dilated(y, params["conv2_w"], (1, 1), "VALID",
                                 dimension_numbers=dn)
    y = jax.nn.relu(y + params["conv2_b"].reshape(1, -1, 1, 1))
    y = lax.reduce_window(y, -jnp.inf, lax.max, (1, 1, 2, 2), (1, 1, 2, 2), "VALID")
    y = y.reshape(y.shape[0], -1)                        # NCHW flatten == view(-1, 896)
    y = jax.nn.relu(y @ params["fc1_w"] + params["fc1_b"])
    y = jax.nn.relu(y @ params["fc2_w"] + params["fc2_b"])
    return y @ params["fc3_w"] + params["fc3_b"]


def init_params(key):
    ks = jax.random.split(key, 10)
    s = 0.05
    return {
        "conv1_w": s * jax.random.normal(ks[0], (C1, 1, K, K), jnp.float32),
        "conv1_b": s * jax.random.normal(ks[1], (C1,), jnp.float32),
        "conv2_w": s * jax.random.normal(ks[2], (C2, C1, K, K), jnp.float32),
        "conv2_b": s * jax.random.normal(ks[3], (C2,), jnp.float32),
        # fc weights stored as (in, out); fc1 rows in PyTorch NCHW-flatten order.
        "fc1_w": s * jax.random.normal(ks[4], (FC1_IN, FC1_OUT), jnp.float32),
        "fc1_b": s * jax.random.normal(ks[5], (FC1_OUT,), jnp.float32),
        "fc2_w": s * jax.random.normal(ks[6], (FC1_OUT, FC2_OUT), jnp.float32),
        "fc2_b": s * jax.random.normal(ks[7], (FC2_OUT,), jnp.float32),
        "fc3_w": s * jax.random.normal(ks[8], (FC2_OUT, FC3_OUT), jnp.float32),
        "fc3_b": s * jax.random.normal(ks[9], (FC3_OUT,), jnp.float32),
    }


if __name__ == "__main__":
    key = jax.random.PRNGKey(0)
    k_x, k_p = jax.random.split(key)
    # Input geometry implied by fc1 = Linear(16*14*4, 120): (N, 1, 68, 28)
    x = jax.random.normal(k_x, (N_BATCH, 1, H_IN, W_IN), jnp.float32)
    params = init_params(k_p)

    out = jax.jit(net_forward)(x, params)
    out = jax.block_until_ready(out)

    assert out.shape == (N_BATCH, FC3_OUT), out.shape
    assert out.dtype == jnp.float32
    assert bool(jnp.all(jnp.isfinite(out)))

    ref = jax.block_until_ready(jax.jit(net_forward_reference)(x, params))
    max_err = float(jnp.max(jnp.abs(out - ref)))
    assert max_err < 5e-3, f"mismatch vs reference, max abs err = {max_err}"

    print("KERNEL_OK")
</pallas_src>

<mosaic_0001>
module attributes {stable_mosaic.version = 11 : i64} {
  func.func @_net_kernel(%arg0: i32, %arg1: memref<2x68x28xf32, #tpu.memory_space<vmem>>, %arg2: memref<5x28x144xf32, #tpu.memory_space<vmem>>, %arg3: memref<1x144xf32, #tpu.memory_space<vmem>>, %arg4: memref<2x32x64xf32, #tpu.memory_space<vmem>>, %arg5: memref<2x144x72xf32, #tpu.memory_space<vmem>>, %arg6: memref<5x72x128xf32, #tpu.memory_space<vmem>>, %arg7: memref<1x128xf32, #tpu.memory_space<vmem>>, %arg8: memref<2x14x28xf32, #tpu.memory_space<vmem>>, %arg9: memref<2x128x64xf32, #tpu.memory_space<vmem>>, %arg10: memref<896x120xf32, #tpu.memory_space<vmem>>, %arg11: memref<1x120xf32, #tpu.memory_space<vmem>>, %arg12: memref<120x84xf32, #tpu.memory_space<vmem>>, %arg13: memref<1x84xf32, #tpu.memory_space<vmem>>, %arg14: memref<84x10xf32, #tpu.memory_space<vmem>>, %arg15: memref<1x10xf32, #tpu.memory_space<vmem>>, %arg16: memref<2x10xf32, #tpu.memory_space<vmem>>, %arg17: memref<2x896xf32, #tpu.memory_space<vmem>>) attributes {dimension_semantics = [#tpu.dimension_semantics<arbitrary>], iteration_bounds = array<i64: 1>, scalar_prefetch = 0 : i64, scratch_operands = 1 : i64, tpu.core_type = #tpu.core_type<tc>, window_params = [{pipeline_mode = #tpu.pipeline_mode<synchronous>, transform_indices = @transform_0, window_bounds = array<i64: 2, 68, 28>}, {pipeline_mode = #tpu.pipeline_mode<synchronous>, transform_indices = @transform_1, window_bounds = array<i64: 5, 28, 144>}, {pipeline_mode = #tpu.pipeline_mode<synchronous>, transform_indices = @transform_2, window_bounds = array<i64: 1, 144>}, {pipeline_mode = #tpu.pipeline_mode<synchronous>, transform_indices = @transform_3, window_bounds = array<i64: 2, 32, 64>}, {pipeline_mode = #tpu.pipeline_mode<synchronous>, transform_indices = @transform_4, window_bounds = array<i64: 2, 144, 72>}, {pipeline_mode = #tpu.pipeline_mode<synchronous>, transform_indices = @transform_5, window_bounds = array<i64: 5, 72, 128>}, {pipeline_mode = #tpu.pipeline_mode<synchronous>, transform_indices = @transform_6, window_bounds = array<i64: 1, 128>}, {pipeline_mode = #tpu.pipeline_mode<synchronous>, transform_indices = @transform_7, window_bounds = array<i64: 2, 14, 28>}, {pipeline_mode = #tpu.pipeline_mode<synchronous>, transform_indices = @transform_8, window_bounds = array<i64: 2, 128, 64>}, {pipeline_mode = #tpu.pipeline_mode<synchronous>, transform_indices = @transform_9, window_bounds = array<i64: 896, 120>}, {pipeline_mode = #tpu.pipeline_mode<synchronous>, transform_indices = @transform_10, window_bounds = array<i64: 1, 120>}, {pipeline_mode = #tpu.pipeline_mode<synchronous>, transform_indices = @transform_11, window_bounds = array<i64: 120, 84>}, {pipeline_mode = #tpu.pipeline_mode<synchronous>, transform_indices = @transform_12, window_bounds = array<i64: 1, 84>}, {pipeline_mode = #tpu.pipeline_mode<synchronous>, transform_indices = @transform_13, window_bounds = array<i64: 84, 10>}, {pipeline_mode = #tpu.pipeline_mode<synchronous>, transform_indices = @transform_14, window_bounds = array<i64: 1, 10>}, {pipeline_mode = #tpu.pipeline_mode<synchronous>, transform_indices = @transform_15, window_bounds = array<i64: 2, 10>}]} {
    %c0 = arith.constant 0 : index
    %c0_0 = arith.constant 0 : index
    %0 = vector.load %arg3[%c0, %c0_0] : memref<1x144xf32, #tpu.memory_space<vmem>>, vector<1x144xf32>
    %c0_1 = arith.constant 0 : index
    %c0_2 = arith.constant 0 : index
    %1 = vector.load %arg7[%c0_1, %c0_2] : memref<1x128xf32, #tpu.memory_space<vmem>>, vector<1x128xf32>
    %c0_3 = arith.constant 0 : index
    %c0_4 = arith.constant 0 : index
    %c0_5 = arith.constant 0 : index
    %2 = vector.load %arg4[%c0_3, %c0_4, %c0_5] : memref<2x32x64xf32, #tpu.memory_space<vmem>>, vector<1x32x64xf32>
    %3 = vector.shape_cast %2 : vector<1x32x64xf32> to vector<32x64xf32>
    %c1 = arith.constant 1 : index
    %c0_6 = arith.constant 0 : index
    %c0_7 = arith.constant 0 : index
    %4 = vector.load %arg4[%c1, %c0_6, %c0_7] : memref<2x32x64xf32, #tpu.memory_space<vmem>>, vector<1x32x64xf32>
    %5 = vector.shape_cast %4 : vector<1x32x64xf32> to vector<32x64xf32>
    %c0_8 = arith.constant 0 : index
    %c0_9 = arith.constant 0 : index
    %c0_10 = arith.constant 0 : index
    %6 = vector.load %arg5[%c0_8, %c0_9, %c0_10] : memref<2x144x72xf32, #tpu.memory_space<vmem>>, vector<1x144x72xf32>
    %7 = vector.shape_cast %6 : vector<1x144x72xf32> to vector<144x72xf32>
    %c1_11 = arith.constant 1 : index
    %c0_12 = arith.constant 0 : index
    %c0_13 = arith.constant 0 : index
    %8 = vector.load %arg5[%c1_11, %c0_12, %c0_13] : memref<2x144x72xf32, #tpu.memory_space<vmem>>, vector<1x144x72xf32>
    %9 = vector.shape_cast %8 : vector<1x144x72xf32> to vector<144x72xf32>
    %c0_14 = arith.constant 0 : index
    %c0_15 = arith.constant 0 : index
    %c0_16 = arith.constant 0 : index
    %10 = vector.load %arg8[%c0_14, %c0_15, %c0_16] : memref<2x14x28xf32, #tpu.memory_space<vmem>>, vector<1x14x28xf32>
    %11 = vector.shape_cast %10 : vector<1x14x28xf32> to vector<14x28xf32>
    %c1_17 = arith.constant 1 : index
    %c0_18 = arith.constant 0 : index
    %c0_19 = arith.constant 0 : index
    %12 = vector.load %arg8[%c1_17, %c0_18, %c0_19] : memref<2x14x28xf32, #tpu.memory_space<vmem>>, vector<1x14x28xf32>
    %13 = vector.shape_cast %12 : vector<1x14x28xf32> to vector<14x28xf32>
    %c0_20 = arith.constant 0 : index
    %c0_21 = arith.constant 0 : index
    %c0_22 = arith.constant 0 : index
    %14 = vector.load %arg9[%c0_20, %c0_21, %c0_22] : memref<2x128x64xf32, #tpu.memory_space<vmem>>, vector<1x128x64xf32>
    %15 = vector.shape_cast %14 : vector<1x128x64xf32> to vector<128x64xf32>
    %c1_23 = arith.constant 1 : index
    %c0_24 = arith.constant 0 : index
    %c0_25 = arith.constant 0 : index
    %16 = vector.load %arg9[%c1_23, %c0_24, %c0_25] : memref<2x128x64xf32, #tpu.memory_space<vmem>>, vector<1x128x64xf32>
    %17 = vector.shape_cast %16 : vector<1x128x64xf32> to vector<128x64xf32>
    %c0_26 = arith.constant 0 : index
    %c0_27 = arith.constant 0 : index
    %c0_28 = arith.constant 0 : index
    %18 = vector.load %arg1[%c0_26, %c0_27, %c0_28] : memref<2x68x28xf32, #tpu.memory_space<vmem>>, vector<1x68x28xf32>
    %19 = vector.shape_cast %18 : vector<1x68x28xf32> to vector<68x28xf32>
    %20 = vector.extract_strided_slice %19 {offsets = [0, 0], sizes = [64, 28], strides = [1, 1]} : vector<68x28xf32> to vector<64x28xf32>
    %c0_29 = arith.constant 0 : index
    %c0_30 = arith.constant 0 : index
    %c0_31 = arith.constant 0 : index
    %21 = vector.load %arg2[%c0_29, %c0_30, %c0_31] : memref<5x28x144xf32, #tpu.memory_space<vmem>>, vector<1x28x144xf32>
    %22 = vector.shape_cast %21 : vector<1x28x144xf32> to vector<28x144xf32>
    %cst = arith.constant dense<0.000000e+00> : vector<64x144xf32>
    %23 = tpu.matmul %20, %22, %cst {dimension_numbers = #tpu.dot_dimension_numbers<[1], [0], [0], [1], [0, 0, 1, 1], [], []>} : vector<64x28xf32>, vector<28x144xf32>, vector<64x144xf32> -> vector<64x144xf32>
    %24 = vector.extract_strided_slice %19 {offsets = [1, 0], sizes = [64, 28], strides = [1, 1]} : vector<68x28xf32> to vector<64x28xf32>
    %c1_32 = arith.constant 1 : index
    %c0_33 = arith.constant 0 : index
    %c0_34 = arith.constant 0 : index
    %25 = vector.load %arg2[%c1_32, %c0_33, %c0_34] : memref<5x28x144xf32, #tpu.memory_space<vmem>>, vector<1x28x144xf32>
    %26 = vector.shape_cast %25 : vector<1x28x144xf32> to vector<28x144xf32>
    %cst_35 = arith.constant dense<0.000000e+00> : vector<64x144xf32>
    %27 = tpu.matmul %24, %26, %cst_35 {dimension_numbers = #tpu.dot_dimension_numbers<[1], [0], [0], [1], [0, 0, 1, 1], [], []>} : vector<64x28xf32>, vector<28x144xf32>, vector<64x144xf32> -> vector<64x144xf32>
    %28 = arith.addf %23, %27 : vector<64x144xf32>
    %29 = vector.extract_strided_slice %19 {offsets = [2, 0], sizes = [64, 28], strides = [1, 1]} : vector<68x28xf32> to vector<64x28xf32>
    %c2 = arith.constant 2 : index
    %c0_36 = arith.constant 0 : index
    %c0_37 = arith.constant 0 : index
    %30 = vector.load %arg2[%c2, %c0_36, %c0_37] : memref<5x28x144xf32, #tpu.memory_space<vmem>>, vector<1x28x144xf32>
    %31 = vector.shape_cast %30 : vector<1x28x144xf32> to vector<28x144xf32>
    %cst_38 = arith.constant dense<0.000000e+00> : vector<64x144xf32>
    %32 = tpu.matmul %29, %31, %cst_38 {dimension_numbers = #tpu.dot_dimension_numbers<[1], [0], [0], [1], [0, 0, 1, 1], [], []>} : vector<64x28xf32>, vector<28x144xf32>, vector<64x144xf32> -> vector<64x144xf32>
    %33 = arith.addf %28, %32 : vector<64x144xf32>
    %34 = vector.extract_strided_slice %19 {offsets = [3, 0], sizes = [64, 28], strides = [1, 1]} : vector<68x28xf32> to vector<64x28xf32>
    %c3 = arith.constant 3 : index
    %c0_39 = arith.constant 0 : index
    %c0_40 = arith.constant 0 : index
    %35 = vector.load %arg2[%c3, %c0_39, %c0_40] : memref<5x28x144xf32, #tpu.memory_space<vmem>>, vector<1x28x144xf32>
    %36 = vector.shape_cast %35 : vector<1x28x144xf32> to vector<28x144xf32>
    %cst_41 = arith.constant dense<0.000000e+00> : vector<64x144xf32>
    %37 = tpu.matmul %34, %36, %cst_41 {dimension_numbers = #tpu.dot_dimension_numbers<[1], [0], [0], [1], [0, 0, 1, 1], [], []>} : vector<64x28xf32>, vector<28x144xf32>, vector<64x144xf32> -> vector<64x144xf32>
    %38 = arith.addf %33, %37 : vector<64x144xf32>
    %39 = vector.extract_strided_slice %19 {offsets = [4, 0], sizes = [64, 28], strides = [1, 1]} : vector<68x28xf32> to vector<64x28xf32>
    %c4 = arith.constant 4 : index
    %c0_42 = arith.constant 0 : index
    %c0_43 = arith.constant 0 : index
    %40 = vector.load %arg2[%c4, %c0_42, %c0_43] : memref<5x28x144xf32, #tpu.memory_space<vmem>>, vector<1x28x144xf32>
    %41 = vector.shape_cast %40 : vector<1x28x144xf32> to vector<28x144xf32>
    %cst_44 = arith.constant dense<0.000000e+00> : vector<64x144xf32>
    %42 = tpu.matmul %39, %41, %cst_44 {dimension_numbers = #tpu.dot_dimension_numbers<[1], [0], [0], [1], [0, 0, 1, 1], [], []>} : vector<64x28xf32>, vector<28x144xf32>, vector<64x144xf32> -> vector<64x144xf32>
    %43 = arith.addf %38, %42 : vector<64x144xf32>
    %44 = vector.broadcast %0 : vector<1x144xf32> to vector<64x144xf32>
    %45 = arith.addf %43, %44 : vector<64x144xf32>
    %cst_45 = arith.constant 0.000000e+00 : f32
    %46 = vector.broadcast %cst_45 : f32 to vector<64x144xf32>
    %47 = arith.maximumf %45, %46 : vector<64x144xf32>
    %cst_46 = arith.constant dense<0.000000e+00> : vector<32x144xf32>
    %48 = tpu.matmul %3, %47, %cst_46 {dimension_numbers = #tpu.dot_dimension_numbers<[1], [0], [0], [1], [0, 0, 1, 1], [], []>} : vector<32x64xf32>, vector<64x144xf32>, vector<32x144xf32> -> vector<32x144xf32>
    %cst_47 = arith.constant dense<0.000000e+00> : vector<32x144xf32>
    %49 = tpu.matmul %5, %47, %cst_47 {dimension_numbers = #tpu.dot_dimension_numbers<[1], [0], [0], [1], [0, 0, 1, 1], [], []>} : vector<32x64xf32>, vector<64x144xf32>, vector<32x144xf32> -> vector<32x144xf32>
    %50 = arith.maximumf %48, %49 : vector<32x144xf32>
    %cst_48 = arith.constant dense<0.000000e+00> : vector<32x72xf32>
    %51 = tpu.matmul %50, %7, %cst_48 {dimension_numbers = #tpu.dot_dimension_numbers<[1], [0], [0], [1], [0, 0, 1, 1], [], []>} : vector<32x144xf32>, vector<144x72xf32>, vector<32x72xf32> -> vector<32x72xf32>
    %cst_49 = arith.constant dense<0.000000e+00> : vector<32x72xf32>
    %52 = tpu.matmul %50, %9, %cst_49 {dimension_numbers = #tpu.dot_dimension_numbers<[1], [0], [0], [1], [0, 0, 1, 1], [], []>} : vector<32x144xf32>, vector<144x72xf32>, vector<32x72xf32> -> vector<32x72xf32>
    %53 = arith.maximumf %51, %52 : vector<32x72xf32>
    %54 = vector.extract_strided_slice %53 {offsets = [0, 0], sizes = [28, 72], strides = [1, 1]} : vector<32x72xf32> to vector<28x72xf32>
    %c0_50 = arith.constant 0 : index
    %c0_51 = arith.constant 0 : index
    %c0_52 = arith.constant 0 : index
    %55 = vector.load %arg6[%c0_50, %c0_51, %c0_52] : memref<5x72x128xf32, #tpu.memory_space<vmem>>, vector<1x72x128xf32>
    %56 = vector.shape_cast %55 : vector<1x72x128xf32> to vector<72x128xf32>
    %cst_53 = arith.constant dense<0.000000e+00> : vector<28x128xf32>
    %57 = tpu.matmul %54, %56, %cst_53 {dimension_numbers = #tpu.dot_dimension_numbers<[1], [0], [0], [1], [0, 0, 1, 1], [], []>} : vector<28x72xf32>, vector<72x128xf32>, vector<28x128xf32> -> vector<28x128xf32>
    %58 = vector.extract_strided_slice %53 {offsets = [1, 0], sizes = [28, 72], strides = [1, 1]} : vector<32x72xf32> to vector<28x72xf32>
    %c1_54 = arith.constant 1 : index
    %c0_55 = arith.constant 0 : index
    %c0_56 = arith.constant 0 : index
    %59 = vector.load %arg6[%c1_54, %c0_55, %c0_56] : memref<5x72x128xf32, #tpu.memory_space<vmem>>, vector<1x72x128xf32>
    %60 = vector.shape_cast %59 : vector<1x72x128xf32> to vector<72x128xf32>
    %cst_57 = arith.constant dense<0.000000e+00> : vector<28x128xf32>
    %61 = tpu.matmul %58, %60, %cst_57 {dimension_numbers = #tpu.dot_dimension_numbers<[1], [0], [0], [1], [0, 0, 1, 1], [], []>} : vector<28x72xf32>, vector<72x128xf32>, vector<28x128xf32> -> vector<28x128xf32>
    %62 = arith.addf %57, %61 : vector<28x128xf32>
    %63 = vector.extract_strided_slice %53 {offsets = [2, 0], sizes = [28, 72], strides = [1, 1]} : vector<32x72xf32> to vector<28x72xf32>
    %c2_58 = arith.constant 2 : index
    %c0_59 = arith.constant 0 : index
    %c0_60 = arith.constant 0 : index
    %64 = vector.load %arg6[%c2_58, %c0_59, %c0_60] : memref<5x72x128xf32, #tpu.memory_space<vmem>>, vector<1x72x128xf32>
    %65 = vector.shape_cast %64 : vector<1x72x128xf32> to vector<72x128xf32>
    %cst_61 = arith.constant dense<0.000000e+00> : vector<28x128xf32>
    %66 = tpu.matmul %63, %65, %cst_61 {dimension_numbers = #tpu.dot_dimension_numbers<[1], [0], [0], [1], [0, 0, 1, 1], [], []>} : vector<28x72xf32>, vector<72x128xf32>, vector<28x128xf32> -> vector<28x128xf32>
    %67 = arith.addf %62, %66 : vector<28x128xf32>
    %68 = vector.extract_strided_slice %53 {offsets = [3, 0], sizes = [28, 72], strides = [1, 1]} : vector<32x72xf32> to vector<28x72xf32>
    %c3_62 = arith.constant 3 : index
    %c0_63 = arith.constant 0 : index
    %c0_64 = arith.constant 0 : index
    %69 = vector.load %arg6[%c3_62, %c0_63, %c0_64] : memref<5x72x128xf32, #tpu.memory_space<vmem>>, vector<1x72x128xf32>
    %70 = vector.shape_cast %69 : vector<1x72x128xf32> to vector<72x128xf32>
    %cst_65 = arith.constant dense<0.000000e+00> : vector<28x128xf32>
    %71 = tpu.matmul %68, %70, %cst_65 {dimension_numbers = #tpu.dot_dimension_numbers<[1], [0], [0], [1], [0, 0, 1, 1], [], []>} : vector<28x72xf32>, vector<72x128xf32>, vector<28x128xf32> -> vector<28x128xf32>
    %72 = arith.addf %67, %71 : vector<28x128xf32>
    %73 = vector.extract_strided_slice %53 {offsets = [4, 0], sizes = [28, 72], strides = [1, 1]} : vector<32x72xf32> to vector<28x72xf32>
    %c4_66 = arith.constant 4 : index
    %c0_67 = arith.constant 0 : index
    %c0_68 = arith.constant 0 : index
    %74 = vector.load %arg6[%c4_66, %c0_67, %c0_68] : memref<5x72x128xf32, #tpu.memory_space<vmem>>, vector<1x72x128xf32>
    %75 = vector.shape_cast %74 : vector<1x72x128xf32> to vector<72x128xf32>
    %cst_69 = arith.constant dense<0.000000e+00> : vector<28x128xf32>
    %76 = tpu.matmul %73, %75, %cst_69 {dimension_numbers = #tpu.dot_dimension_numbers<[1], [0], [0], [1], [0, 0, 1, 1], [], []>} : vector<28x72xf32>, vector<72x128xf32>, vector<28x128xf32> -> vector<28x128xf32>
    %77 = arith.addf %72, %76 : vector<28x128xf32>
    %78 = vector.broadcast %1 : vector<1x128xf32> to vector<28x128xf32>
    %79 = arith.addf %77, %78 : vector<28x128xf32>
    %cst_70 = arith.constant 0.000000e+00 : f32
    %80 = vector.broadcast %cst_70 : f32 to vector<28x128xf32>
    %81 = arith.maximumf %79, %80 : vector<28x128xf32>
    %cst_71 = arith.constant dense<0.000000e+00> : vector<14x128xf32>
    %82 = tpu.matmul %11, %81, %cst_71 {dimension_numbers = #tpu.dot_dimension_numbers<[1], [0], [0], [1], [0, 0, 1, 1], [], []>} : vector<14x28xf32>, vector<28x128xf32>, vector<14x128xf32> -> vector<14x128xf32>
    %cst_72 = arith.constant dense<0.000000e+00> : vector<14x128xf32>
    %83 = tpu.matmul %13, %81, %cst_72 {dimension_numbers = #tpu.dot_dimension_numbers<[1], [0], [0], [1], [0, 0, 1, 1], [], []>} : vector<14x28xf32>, vector<28x128xf32>, vector<14x128xf32> -> vector<14x128xf32>
    %84 = arith.maximumf %82, %83 : vector<14x128xf32>
    %cst_73 = arith.constant dense<0.000000e+00> : vector<14x64xf32>
    %85 = tpu.matmul %84, %15, %cst_73 {dimension_numbers = #tpu.dot_dimension_numbers<[1], [0], [0], [1], [0, 0, 1, 1], [], []>} : vector<14x128xf32>, vector<128x64xf32>, vector<14x64xf32> -> vector<14x64xf32>
    %cst_74 = arith.constant dense<0.000000e+00> : vector<14x64xf32>
    %86 = tpu.matmul %84, %17, %cst_74 {dimension_numbers = #tpu.dot_dimension_numbers<[1], [0], [0], [1], [0, 0, 1, 1], [], []>} : vector<14x128xf32>, vector<128x64xf32>, vector<14x64xf32> -> vector<14x64xf32>
    %87 = arith.maximumf %85, %86 : vector<14x64xf32>
    %88 = vector.extract_strided_slice %87 {offsets = [0, 0], sizes = [1, 64], strides = [1, 1]} : vector<14x64xf32> to vector<1x64xf32>
    %c0_75 = arith.constant 0 : index
    %c0_76 = arith.constant 0 : index
    %89 = vector.load %arg17[%c0_75, %c0_76] : memref<2x896xf32, #tpu.memory_space<vmem>>, vector<1x64xf32>
    tpu.vector_store %arg17[%c0_75, %c0_76], %88 {strides = array<i32>} : memref<2x896xf32, #tpu.memory_space<vmem>>, vector<1x64xf32>,
    %90 = vector.extract_strided_slice %87 {offsets = [1, 0], sizes = [1, 64], strides = [1, 1]} : vector<14x64xf32> to vector<1x64xf32>
    %c0_77 = arith.constant 0 : index
    %c64 = arith.constant 64 : index
    %91 = vector.load %arg17[%c0_77, %c64] : memref<2x896xf32, #tpu.memory_space<vmem>>, vector<1x64xf32>
    tpu.vector_store %arg17[%c0_77, %c64], %90 {strides = array<i32>} : memref<2x896xf32, #tpu.memory_space<vmem>>, vector<1x64xf32>,
    %92 = vector.extract_strided_slice %87 {offsets = [2, 0], sizes = [1, 64], strides = [1, 1]} : vector<14x64xf32> to vector<1x64xf32>
    %c0_78 = arith.constant 0 : index
    %c128 = arith.constant 128 : index
    %93 = vector.load %arg17[%c0_78, %c128] : memref<2x896xf32, #tpu.memory_space<vmem>>, vector<1x64xf32>
    tpu.vector_store %arg17[%c0_78, %c128], %92 {strides = array<i32>} : memref<2x896xf32, #tpu.memory_space<vmem>>, vector<1x64xf32>,
    %94 = vector.extract_strided_slice %87 {offsets = [3, 0], sizes = [1, 64], strides = [1, 1]} : vector<14x64xf32> to vector<1x64xf32>
    %c0_79 = arith.constant 0 : index
    %c192 = arith.constant 192 : index
    %95 = vector.load %arg17[%c0_79, %c192] : memref<2x896xf32, #tpu.memory_space<vmem>>, vector<1x64xf32>
    tpu.vector_store %arg17[%c0_79, %c192], %94 {strides = array<i32>} : memref<2x896xf32, #tpu.memory_space<vmem>>, vector<1x64xf32>,
    %96 = vector.extract_strided_slice %87 {offsets = [4, 0], sizes = [1, 64], strides = [1, 1]} : vector<14x64xf32> to vector<1x64xf32>
    %c0_80 = arith.constant 0 : index
    %c256 = arith.constant 256 : index
    %97 = vector.load %arg17[%c0_80, %c256] : memref<2x896xf32, #tpu.memory_space<vmem>>, vector<1x64xf32>
    tpu.vector_store %arg17[%c0_80, %c256], %96 {strides = array<i32>} : memref<2x896xf32, #tpu.memory_space<vmem>>, vector<1x64xf32>,
    %98 = vector.extract_strided_slice %87 {offsets = [5, 0], sizes = [1, 64], strides = [1, 1]} : vector<14x64xf32> to vector<1x64xf32>
    %c0_81 = arith.constant 0 : index
    %c320 = arith.constant 320 : index
    %99 = vector.load %arg17[%c0_81, %c320] : memref<2x896xf32, #tpu.memory_space<vmem>>, vector<1x64xf32>
    tpu.vector_store %arg17[%c0_81, %c320], %98 {strides = array<i32>} : memref<2x896xf32, #tpu.memory_space<vmem>>, vector<1x64xf32>,
    %100 = vector.extract_strided_slice %87 {offsets = [6, 0], sizes = [1, 64], strides = [1, 1]} : vector<14x64xf32> to vector<1x64xf32>
    %c0_82 = arith.constant 0 : index
    %c384 = arith.constant 384 : index
    %101 = vector.load %arg17[%c0_82, %c384] : memref<2x896xf32, #tpu.memory_space<vmem>>, vector<1x64xf32>
    tpu.vector_store %arg17[%c0_82, %c384], %100 {strides = array<i32>} : memref<2x896xf32, #tpu.memory_space<vmem>>, vector<1x64xf32>,
    %102 = vector.extract_strided_slice %87 {offsets = [7, 0], sizes = [1, 64], strides = [1, 1]} : vector<14x64xf32> to vector<1x64xf32>
    %c0_83 = arith.constant 0 : index
    %c448 = arith.constant 448 : index
    %103 = vector.load %arg17[%c0_83, %c448] : memref<2x896xf32, #tpu.memory_space<vmem>>, vector<1x64xf32>
    tpu.vector_store %arg17[%c0_83, %c448], %102 {strides = array<i32>} : memref<2x896xf32, #tpu.memory_space<vmem>>, vector<1x64xf32>,
    %104 = vector.extract_strided_slice %87 {offsets = [8, 0], sizes = [1, 64], strides = [1, 1]} : vector<14x64xf32> to vector<1x64xf32>
    %c0_84 = arith.constant 0 : index
    %c512 = arith.constant 512 : index
    %105 = vector.load %arg17[%c0_84, %c512] : memref<2x896xf32, #tpu.memory_space<vmem>>, vector<1x64xf32>
    tpu.vector_store %arg17[%c0_84, %c512], %104 {strides = array<i32>} : memref<2x896xf32, #tpu.memory_space<vmem>>, vector<1x64xf32>,
    %106 = vector.extract_strided_slice %87 {offsets = [9, 0], sizes = [1, 64], strides = [1, 1]} : vector<14x64xf32> to vector<1x64xf32>
    %c0_85 = arith.constant 0 : index
    %c576 = arith.constant 576 : index
    %107 = vector.load %arg17[%c0_85, %c576] : memref<2x896xf32, #tpu.memory_space<vmem>>, vector<1x64xf32>
    tpu.vector_store %arg17[%c0_85, %c576], %106 {strides = array<i32>} : memref<2x896xf32, #tpu.memory_space<vmem>>, vector<1x64xf32>,
    %108 = vector.extract_strided_slice %87 {offsets = [10, 0], sizes = [1, 64], strides = [1, 1]} : vector<14x64xf32> to vector<1x64xf32>
    %c0_86 = arith.constant 0 : index
    %c640 = arith.constant 640 : index
    %109 = vector.load %arg17[%c0_86, %c640] : memref<2x896xf32, #tpu.memory_space<vmem>>, vector<1x64xf32>
    tpu.vector_store %arg17[%c0_86, %c640], %108 {strides = array<i32>} : memref<2x896xf32, #tpu.memory_space<vmem>>, vector<1x64xf32>,
    %110 = vector.extract_strided_slice %87 {offsets = [11, 0], sizes = [1, 64], strides = [1, 1]} : vector<14x64xf32> to vector<1x64xf32>
    %c0_87 = arith.constant 0 : index
    %c704 = arith.constant 704 : index
    %111 = vector.load %arg17[%c0_87, %c704] : memref<2x896xf32, #tpu.memory_space<vmem>>, vector<1x64xf32>
    tpu.vector_store %arg17[%c0_87, %c704], %110 {strides = array<i32>} : memref<2x896xf32, #tpu.memory_space<vmem>>, vector<1x64xf32>,
    %112 = vector.extract_strided_slice %87 {offsets = [12, 0], sizes = [1, 64], strides = [1, 1]} : vector<14x64xf32> to vector<1x64xf32>
    %c0_88 = arith.constant 0 : index
    %c768 = arith.constant 768 : index
    %113 = vector.load %arg17[%c0_88, %c768] : memref<2x896xf32, #tpu.memory_space<vmem>>, vector<1x64xf32>
    tpu.vector_store %arg17[%c0_88, %c768], %112 {strides = array<i32>} : memref<2x896xf32, #tpu.memory_space<vmem>>, vector<1x64xf32>,
    %114 = vector.extract_strided_slice %87 {offsets = [13, 0], sizes = [1, 64], strides = [1, 1]} : vector<14x64xf32> to vector<1x64xf32>
    %c0_89 = arith.constant 0 : index
    %c832 = arith.constant 832 : index
    %115 = vector.load %arg17[%c0_89, %c832] : memref<2x896xf32, #tpu.memory_space<vmem>>, vector<1x64xf32>
    tpu.vector_store %arg17[%c0_89, %c832], %114 {strides = array<i32>} : memref<2x896xf32, #tpu.memory_space<vmem>>, vector<1x64xf32>,
    %c1_90 = arith.constant 1 : index
    %c0_91 = arith.constant 0 : index
    %c0_92 = arith.constant 0 : index
    %116 = vector.load %arg1[%c1_90, %c0_91, %c0_92] : memref<2x68x28xf32, #tpu.memory_space<vmem>>, vector<1x68x28xf32>
    %117 = vector.shape_cast %116 : vector<1x68x28xf32> to vector<68x28xf32>
    %118 = vector.extract_strided_slice %117 {offsets = [0, 0], sizes = [64, 28], strides = [1, 1]} : vector<68x28xf32> to vector<64x28xf32>
    %c0_93 = arith.constant 0 : index
    %c0_94 = arith.constant 0 : index
    %c0_95 = arith.constant 0 : index
    %119 = vector.load %arg2[%c0_93, %c0_94, %c0_95] : memref<5x28x144xf32, #tpu.memory_space<vmem>>, vector<1x28x144xf32>
    %120 = vector.shape_cast %119 : vector<1x28x144xf32> to vector<28x144xf32>
    %cst_96 = arith.constant dense<0.000000e+00> : vector<64x144xf32>
    %121 = tpu.matmul %118, %120, %cst_96 {dimension_numbers = #tpu.dot_dimension_numbers<[1], [0], [0], [1], [0, 0, 1, 1], [], []>} : vector<64x28xf32>, vector<28x144xf32>, vector<64x144xf32> -> vector<64x144xf32>
    %122 = vector.extract_strided_slice %117 {offsets = [1, 0], sizes = [64, 28], strides = [1, 1]} : vector<68x28xf32> to vector<64x28xf32>
    %c1_97 = arith.constant 1 : index
    %c0_98 = arith.constant 0 : index
    %c0_99 = arith.constant 0 : index
    %123 = vector.load %arg2[%c1_97, %c0_98, %c0_99] : memref<5x28x144xf32, #tpu.memory_space<vmem>>, vector<1x28x144xf32>
    %124 = vector.shape_cast %123 : vector<1x28x144xf32> to vector<28x144xf32>
    %cst_100 = arith.constant dense<0.000000e+00> : vector<64x144xf32>
    %125 = tpu.matmul %122, %124, %cst_100 {dimension_numbers = #tpu.dot_dimension_numbers<[1], [0], [0], [1], [0, 0, 1, 1], [], []>} : vector<64x28xf32>, vector<28x144xf32>, vector<64x144xf32> -> vector<64x144xf32>
    %126 = arith.addf %121, %125 : vector<64x144xf32>
    %127 = vector.extract_strided_slice %117 {offsets = [2, 0], sizes = [64, 28], strides = [1, 1]} : vector<68x28xf32> to vector<64x28xf32>
    %c2_101 = arith.constant 2 : index
    %c0_102 = arith.constant 0 : index
    %c0_103 = arith.constant 0 : index
    %128 = vector.load %arg2[%c2_101, %c0_102, %c0_103] : memref<5x28x144xf32, #tpu.memory_space<vmem>>, vector<1x28x144xf32>
    %129 = vector.shape_cast %128 : vector<1x28x144xf32> to vector<28x144xf32>
    %cst_104 = arith.constant dense<0.000000e+00> : vector<64x144xf32>
    %130 = tpu.matmul %127, %129, %cst_104 {dimension_numbers = #tpu.dot_dimension_numbers<[1], [0], [0], [1], [0, 0, 1, 1], [], []>} : vector<64x28xf32>, vector<28x144xf32>, vector<64x144xf32> -> vector<64x144xf32>
    %131 = arith.addf %126, %130 : vector<64x144xf32>
    %132 = vector.extract_strided_slice %117 {offsets = [3, 0], sizes = [64, 28], strides = [1, 1]} : vector<68x28xf32> to vector<64x28xf32>
    %c3_105 = arith.constant 3 : index
    %c0_106 = arith.constant 0 : index
    %c0_107 = arith.constant 0 : index
    %133 = vector.load %arg2[%c3_105, %c0_106, %c0_107] : memref<5x28x144xf32, #tpu.memory_space<vmem>>, vector<1x28x144xf32>
    %134 = vector.shape_cast %133 : vector<1x28x144xf32> to vector<28x144xf32>
    %cst_108 = arith.constant dense<0.000000e+00> : vector<64x144xf32>
    %135 = tpu.matmul %132, %134, %cst_108 {dimension_numbers = #tpu.dot_dimension_numbers<[1], [0], [0], [1], [0, 0, 1, 1], [], []>} : vector<64x28xf32>, vector<28x144xf32>, vector<64x144xf32> -> vector<64x144xf32>
    %136 = arith.addf %131, %135 : vector<64x144xf32>
    %137 = vector.extract_strided_slice %117 {offsets = [4, 0], sizes = [64, 28], strides = [1, 1]} : vector<68x28xf32> to vector<64x28xf32>
    %c4_109 = arith.constant 4 : index
    %c0_110 = arith.constant 0 : index
    %c0_111 = arith.constant 0 : index
    %138 = vector.load %arg2[%c4_109, %c0_110, %c0_111] : memref<5x28x144xf32, #tpu.memory_space<vmem>>, vector<1x28x144xf32>
    %139 = vector.shape_cast %138 : vector<1x28x144xf32> to vector<28x144xf32>
    %cst_112 = arith.constant dense<0.000000e+00> : vector<64x144xf32>
    %140 = tpu.matmul %137, %139, %cst_112 {dimension_numbers = #tpu.dot_dimension_numbers<[1], [0], [0], [1], [0, 0, 1, 1], [], []>} : vector<64x28xf32>, vector<28x144xf32>, vector<64x144xf32> -> vector<64x144xf32>
    %141 = arith.addf %136, %140 : vector<64x144xf32>
    %142 = vector.broadcast %0 : vector<1x144xf32> to vector<64x144xf32>
    %143 = arith.addf %141, %142 : vector<64x144xf32>
    %cst_113 = arith.constant 0.000000e+00 : f32
    %144 = vector.broadcast %cst_113 : f32 to vector<64x144xf32>
    %145 = arith.maximumf %143, %144 : vector<64x144xf32>
    %cst_114 = arith.constant dense<0.000000e+00> : vector<32x144xf32>
    %146 = tpu.matmul %3, %145, %cst_114 {dimension_numbers = #tpu.dot_dimension_numbers<[1], [0], [0], [1], [0, 0, 1, 1], [], []>} : vector<32x64xf32>, vector<64x144xf32>, vector<32x144xf32> -> vector<32x144xf32>
    %cst_115 = arith.constant dense<0.000000e+00> : vector<32x144xf32>
    %147 = tpu.matmul %5, %145, %cst_115 {dimension_numbers = #tpu.dot_dimension_numbers<[1], [0], [0], [1], [0, 0, 1, 1], [], []>} : vector<32x64xf32>, vector<64x144xf32>, vector<32x144xf32> -> vector<32x144xf32>
    %148 = arith.maximumf %146, %147 : vector<32x144xf32>
    %cst_116 = arith.constant dense<0.000000e+00> : vector<32x72xf32>
    %149 = tpu.matmul %148, %7, %cst_116 {dimension_numbers = #tpu.dot_dimension_numbers<[1], [0], [0], [1], [0, 0, 1, 1], [], []>} : vector<32x144xf32>, vector<144x72xf32>, vector<32x72xf32> -> vector<32x72xf32>
    %cst_117 = arith.constant dense<0.000000e+00> : vector<32x72xf32>
    %150 = tpu.matmul %148, %9, %cst_117 {dimension_numbers = #tpu.dot_dimension_numbers<[1], [0], [0], [1], [0, 0, 1, 1], [], []>} : vector<32x144xf32>, vector<144x72xf32>, vector<32x72xf32> -> vector<32x72xf32>
    %151 = arith.maximumf %149, %150 : vector<32x72xf32>
    %152 = vector.extract_strided_slice %151 {offsets = [0, 0], sizes = [28, 72], strides = [1, 1]} : vector<32x72xf32> to vector<28x72xf32>
    %c0_118 = arith.constant 0 : index
    %c0_119 = arith.constant 0 : index
    %c0_120 = arith.constant 0 : index
    %153 = vector.load %arg6[%c0_118, %c0_119, %c0_120] : memref<5x72x128xf32, #tpu.memory_space<vmem>>, vector<1x72x128xf32>
    %154 = vector.shape_cast %153 : vector<1x72x128xf32> to vector<72x128xf32>
    %cst_121 = arith.constant dense<0.000000e+00> : vector<28x128xf32>
    %155 = tpu.matmul %152, %154, %cst_121 {dimension_numbers = #tpu.dot_dimension_numbers<[1], [0], [0], [1], [0, 0, 1, 1], [], []>} : vector<28x72xf32>, vector<72x128xf32>, vector<28x128xf32> -> vector<28x128xf32>
    %156 = vector.extract_strided_slice %151 {offsets = [1, 0], sizes = [28, 72], strides = [1, 1]} : vector<32x72xf32> to vector<28x72xf32>
    %c1_122 = arith.constant 1 : index
    %c0_123 = arith.constant 0 : index
    %c0_124 = arith.constant 0 : index
    %157 = vector.load %arg6[%c1_122, %c0_123, %c0_124] : memref<5x72x128xf32, #tpu.memory_space<vmem>>, vector<1x72x128xf32>
    %158 = vector.shape_cast %157 : vector<1x72x128xf32> to vector<72x128xf32>
    %cst_125 = arith.constant dense<0.000000e+00> : vector<28x128xf32>
    %159 = tpu.matmul %156, %158, %cst_125 {dimension_numbers = #tpu.dot_dimension_numbers<[1], [0], [0], [1], [0, 0, 1, 1], [], []>} : vector<28x72xf32>, vector<72x128xf32>, vector<28x128xf32> -> vector<28x128xf32>
    %160 = arith.addf %155, %159 : vector<28x128xf32>
    %161 = vector.extract_strided_slice %151 {offsets = [2, 0], sizes = [28, 72], strides = [1, 1]} : vector<32x72xf32> to vector<28x72xf32>
    %c2_126 = arith.constant 2 : index
    %c0_127 = arith.constant 0 : index
    %c0_128 = arith.constant 0 : index
    %162 = vector.load %arg6[%c2_126, %c0_127, %c0_128] : memref<5x72x128xf32, #tpu.memory_space<vmem>>, vector<1x72x128xf32>
    %163 = vector.shape_cast %162 : vector<1x72x128xf32> to vector<72x128xf32>
    %cst_129 = arith.constant dense<0.000000e+00> : vector<28x128xf32>
    %164 = tpu.matmul %161, %163, %cst_129 {dimension_numbers = #tpu.dot_dimension_numbers<[1], [0], [0], [1], [0, 0, 1, 1], [], []>} : vector<28x72xf32>, vector<72x128xf32>, vector<28x128xf32> -> vector<28x128xf32>
    %165 = arith.addf %160, %164 : vector<28x128xf32>
    %166 = vector.extract_strided_slice %151 {offsets = [3, 0], sizes = [28, 72], strides = [1, 1]} : vector<32x72xf32> to vector<28x72xf32>
    %c3_130 = arith.constant 3 : index
    %c0_131 = arith.constant 0 : index
    %c0_132 = arith.constant 0 : index
    %167 = vector.load %arg6[%c3_130, %c0_131, %c0_132] : memref<5x72x128xf32, #tpu.memory_space<vmem>>, vector<1x72x128xf32>
    %168 = vector.shape_cast %167 : vector<1x72x128xf32> to vector<72x128xf32>
    %cst_133 = arith.constant dense<0.000000e+00> : vector<28x128xf32>
    %169 = tpu.matmul %166, %168, %cst_133 {dimension_numbers = #tpu.dot_dimension_numbers<[1], [0], [0], [1], [0, 0, 1, 1], [], []>} : vector<28x72xf32>, vector<72x128xf32>, vector<28x128xf32> -> vector<28x128xf32>
    %170 = arith.addf %165, %169 : vector<28x128xf32>
    %171 = vector.extract_strided_slice %151 {offsets = [4, 0], sizes = [28, 72], strides = [1, 1]} : vector<32x72xf32> to vector<28x72xf32>
    %c4_134 = arith.constant 4 : index
    %c0_135 = arith.constant 0 : index
    %c0_136 = arith.constant 0 : index
    %172 = vector.load %arg6[%c4_134, %c0_135, %c0_136] : memref<5x72x128xf32, #tpu.memory_space<vmem>>, vector<1x72x128xf32>
    %173 = vector.shape_cast %172 : vector<1x72x128xf32> to vector<72x128xf32>
    %cst_137 = arith.constant dense<0.000000e+00> : vector<28x128xf32>
    %174 = tpu.matmul %171, %173, %cst_137 {dimension_numbers = #tpu.dot_dimension_numbers<[1], [0], [0], [1], [0, 0, 1, 1], [], []>} : vector<28x72xf32>, vector<72x128xf32>, vector<28x128xf32> -> vector<28x128xf32>
    %175 = arith.addf %170, %174 : vector<28x128xf32>
    %176 = vector.broadcast %1 : vector<1x128xf32> to vector<28x128xf32>
    %177 = arith.addf %175, %176 : vector<28x128xf32>
    %cst_138 = arith.constant 0.000000e+00 : f32
    %178 = vector.broadcast %cst_138 : f32 to vector<28x128xf32>
    %179 = arith.maximumf %177, %178 : vector<28x128xf32>
    %cst_139 = arith.constant dense<0.000000e+00> : vector<14x128xf32>
    %180 = tpu.matmul %11, %179, %cst_139 {dimension_numbers = #tpu.dot_dimension_numbers<[1], [0], [0], [1], [0, 0, 1, 1], [], []>} : vector<14x28xf32>, vector<28x128xf32>, vector<14x128xf32> -> vector<14x128xf32>
    %cst_140 = arith.constant dense<0.000000e+00> : vector<14x128xf32>
    %181 = tpu.matmul %13, %179, %cst_140 {dimension_numbers = #tpu.dot_dimension_numbers<[1], [0], [0], [1], [0, 0, 1, 1], [], []>} : vector<14x28xf32>, vector<28x128xf32>, vector<14x128xf32> -> vector<14x128xf32>
    %182 = arith.maximumf %180, %181 : vector<14x128xf32>
    %cst_141 = arith.constant dense<0.000000e+00> : vector<14x64xf32>
    %183 = tpu.matmul %182, %15, %cst_141 {dimension_numbers = #tpu.dot_dimension_numbers<[1], [0], [0], [1], [0, 0, 1, 1], [], []>} : vector<14x128xf32>, vector<128x64xf32>, vector<14x64xf32> -> vector<14x64xf32>
    %cst_142 = arith.constant dense<0.000000e+00> : vector<14x64xf32>
    %184 = tpu.matmul %182, %17, %cst_142 {dimension_numbers = #tpu.dot_dimension_numbers<[1], [0], [0], [1], [0, 0, 1, 1], [], []>} : vector<14x128xf32>, vector<128x64xf32>, vector<14x64xf32> -> vector<14x64xf32>
    %185 = arith.maximumf %183, %184 : vector<14x64xf32>
    %186 = vector.extract_strided_slice %185 {offsets = [0, 0], sizes = [1, 64], strides = [1, 1]} : vector<14x64xf32> to vector<1x64xf32>
    %c1_143 = arith.constant 1 : index
    %c0_144 = arith.constant 0 : index
    %187 = vector.load %arg17[%c1_143, %c0_144] : memref<2x896xf32, #tpu.memory_space<vmem>>, vector<1x64xf32>
    tpu.vector_store %arg17[%c1_143, %c0_144], %186 {strides = array<i32>} : memref<2x896xf32, #tpu.memory_space<vmem>>, vector<1x64xf32>,
    %188 = vector.extract_strided_slice %185 {offsets = [1, 0], sizes = [1, 64], strides = [1, 1]} : vector<14x64xf32> to vector<1x64xf32>
    %c1_145 = arith.constant 1 : index
    %c64_146 = arith.constant 64 : index
    %189 = vector.load %arg17[%c1_145, %c64_146] : memref<2x896xf32, #tpu.memory_space<vmem>>, vector<1x64xf32>
    tpu.vector_store %arg17[%c1_145, %c64_146], %188 {strides = array<i32>} : memref<2x896xf32, #tpu.memory_space<vmem>>, vector<1x64xf32>,
    %190 = vector.extract_strided_slice %185 {offsets = [2, 0], sizes = [1, 64], strides = [1, 1]} : vector<14x64xf32> to vector<1x64xf32>
    %c1_147 = arith.constant 1 : index
    %c128_148 = arith.constant 128 : index
    %191 = vector.load %arg17[%c1_147, %c128_148] : memref<2x896xf32, #tpu.memory_space<vmem>>, vector<1x64xf32>
    tpu.vector_store %arg17[%c1_147, %c128_148], %190 {strides = array<i32>} : memref<2x896xf32, #tpu.memory_space<vmem>>, vector<1x64xf32>,
    %192 = vector.extract_strided_slice %185 {offsets = [3, 0], sizes = [1, 64], strides = [1, 1]} : vector<14x64xf32> to vector<1x64xf32>
    %c1_149 = arith.constant 1 : index
    %c192_150 = arith.constant 192 : index
    %193 = vector.load %arg17[%c1_149, %c192_150] : memref<2x896xf32, #tpu.memory_space<vmem>>, vector<1x64xf32>
    tpu.vector_store %arg17[%c1_149, %c192_150], %192 {strides = array<i32>} : memref<2x896xf32, #tpu.memory_space<vmem>>, vector<1x64xf32>,
    %194 = vector.extract_strided_slice %185 {offsets = [4, 0], sizes = [1, 64], strides = [1, 1]} : vector<14x64xf32> to vector<1x64xf32>
    %c1_151 = arith.constant 1 : index
    %c256_152 = arith.constant 256 : index
    %195 = vector.load %arg17[%c1_151, %c256_152] : memref<2x896xf32, #tpu.memory_space<vmem>>, vector<1x64xf32>
    tpu.vector_store %arg17[%c1_151, %c256_152], %194 {strides = array<i32>} : memref<2x896xf32, #tpu.memory_space<vmem>>, vector<1x64xf32>,
    %196 = vector.extract_strided_slice %185 {offsets = [5, 0], sizes = [1, 64], strides = [1, 1]} : vector<14x64xf32> to vector<1x64xf32>
    %c1_153 = arith.constant 1 : index
    %c320_154 = arith.constant 320 : index
    %197 = vector.load %arg17[%c1_153, %c320_154] : memref<2x896xf32, #tpu.memory_space<vmem>>, vector<1x64xf32>
    tpu.vector_store %arg17[%c1_153, %c320_154], %196 {strides = array<i32>} : memref<2x896xf32, #tpu.memory_space<vmem>>, vector<1x64xf32>,
    %198 = vector.extract_strided_slice %185 {offsets = [6, 0], sizes = [1, 64], strides = [1, 1]} : vector<14x64xf32> to vector<1x64xf32>
    %c1_155 = arith.constant 1 : index
    %c384_156 = arith.constant 384 : index
    %199 = vector.load %arg17[%c1_155, %c384_156] : memref<2x896xf32, #tpu.memory_space<vmem>>, vector<1x64xf32>
    tpu.vector_store %arg17[%c1_155, %c384_156], %198 {strides = array<i32>} : memref<2x896xf32, #tpu.memory_space<vmem>>, vector<1x64xf32>,
    %200 = vector.extract_strided_slice %185 {offsets = [7, 0], sizes = [1, 64], strides = [1, 1]} : vector<14x64xf32> to vector<1x64xf32>
    %c1_157 = arith.constant 1 : index
    %c448_158 = arith.constant 448 : index
    %201 = vector.load %arg17[%c1_157, %c448_158] : memref<2x896xf32, #tpu.memory_space<vmem>>, vector<1x64xf32>
    tpu.vector_store %arg17[%c1_157, %c448_158], %200 {strides = array<i32>} : memref<2x896xf32, #tpu.memory_space<vmem>>, vector<1x64xf32>,
    %202 = vector.extract_strided_slice %185 {offsets = [8, 0], sizes = [1, 64], strides = [1, 1]} : vector<14x64xf32> to vector<1x64xf32>
    %c1_159 = arith.constant 1 : index
    %c512_160 = arith.constant 512 : index
    %203 = vector.load %arg17[%c1_159, %c512_160] : memref<2x896xf32, #tpu.memory_space<vmem>>, vector<1x64xf32>
    tpu.vector_store %arg17[%c1_159, %c512_160], %202 {strides = array<i32>} : memref<2x896xf32, #tpu.memory_space<vmem>>, vector<1x64xf32>,
    %204 = vector.extract_strided_slice %185 {offsets = [9, 0], sizes = [1, 64], strides = [1, 1]} : vector<14x64xf32> to vector<1x64xf32>
    %c1_161 = arith.constant 1 : index
    %c576_162 = arith.constant 576 : index
    %205 = vector.load %arg17[%c1_161, %c576_162] : memref<2x896xf32, #tpu.memory_space<vmem>>, vector<1x64xf32>
    tpu.vector_store %arg17[%c1_161, %c576_162], %204 {strides = array<i32>} : memref<2x896xf32, #tpu.memory_space<vmem>>, vector<1x64xf32>,
    %206 = vector.extract_strided_slice %185 {offsets = [10, 0], sizes = [1, 64], strides = [1, 1]} : vector<14x64xf32> to vector<1x64xf32>
    %c1_163 = arith.constant 1 : index
    %c640_164 = arith.constant 640 : index
    %207 = vector.load %arg17[%c1_163, %c640_164] : memref<2x896xf32, #tpu.memory_space<vmem>>, vector<1x64xf32>
    tpu.vector_store %arg17[%c1_163, %c640_164], %206 {strides = array<i32>} : memref<2x896xf32, #tpu.memory_space<vmem>>, vector<1x64xf32>,
    %208 = vector.extract_strided_slice %185 {offsets = [11, 0], sizes = [1, 64], strides = [1, 1]} : vector<14x64xf32> to vector<1x64xf32>
    %c1_165 = arith.constant 1 : index
    %c704_166 = arith.constant 704 : index
    %209 = vector.load %arg17[%c1_165, %c704_166] : memref<2x896xf32, #tpu.memory_space<vmem>>, vector<1x64xf32>
    tpu.vector_store %arg17[%c1_165, %c704_166], %208 {strides = array<i32>} : memref<2x896xf32, #tpu.memory_space<vmem>>, vector<1x64xf32>,
    %210 = vector.extract_strided_slice %185 {offsets = [12, 0], sizes = [1, 64], strides = [1, 1]} : vector<14x64xf32> to vector<1x64xf32>
    %c1_167 = arith.constant 1 : index
    %c768_168 = arith.constant 768 : index
    %211 = vector.load %arg17[%c1_167, %c768_168] : memref<2x896xf32, #tpu.memory_space<vmem>>, vector<1x64xf32>
    tpu.vector_store %arg17[%c1_167, %c768_168], %210 {strides = array<i32>} : memref<2x896xf32, #tpu.memory_space<vmem>>, vector<1x64xf32>,
    %212 = vector.extract_strided_slice %185 {offsets = [13, 0], sizes = [1, 64], strides = [1, 1]} : vector<14x64xf32> to vector<1x64xf32>
    %c1_169 = arith.constant 1 : index
    %c832_170 = arith.constant 832 : index
    %213 = vector.load %arg17[%c1_169, %c832_170] : memref<2x896xf32, #tpu.memory_space<vmem>>, vector<1x64xf32>
    tpu.vector_store %arg17[%c1_169, %c832_170], %212 {strides = array<i32>} : memref<2x896xf32, #tpu.memory_space<vmem>>, vector<1x64xf32>,
    %c0_171 = arith.constant 0 : index
    %c0_172 = arith.constant 0 : index
    %214 = vector.load %arg17[%c0_171, %c0_172] : memref<2x896xf32, #tpu.memory_space<vmem>>, vector<2x896xf32>
    %c0_173 = arith.constant 0 : index
    %c0_174 = arith.constant 0 : index
    %215 = vector.load %arg10[%c0_173, %c0_174] : memref<896x120xf32, #tpu.memory_space<vmem>>, vector<896x120xf32>
    %cst_175 = arith.constant dense<0.000000e+00> : vector<2x120xf32>
    %216 = tpu.matmul %214, %215, %cst_175 {dimension_numbers = #tpu.dot_dimension_numbers<[1], [0], [0], [1], [0, 0, 1, 1], [], []>} : vector<2x896xf32>, vector<896x120xf32>, vector<2x120xf32> -> vector<2x120xf32>
    %c0_176 = arith.constant 0 : index
    %c0_177 = arith.constant 0 : index
    %217 = vector.load %arg11[%c0_176, %c0_177] : memref<1x120xf32, #tpu.memory_space<vmem>>, vector<1x120xf32>
    %218 = vector.broadcast %217 : vector<1x120xf32> to vector<2x120xf32>
    %219 = arith.addf %216, %218 : vector<2x120xf32>
    %cst_178 = arith.constant 0.000000e+00 : f32
    %220 = vector.broadcast %cst_178 : f32 to vector<2x120xf32>
    %221 = arith.maximumf %219, %220 : vector<2x120xf32>
    %c0_179 = arith.constant 0 : index
    %c0_180 = arith.constant 0 : index
    %222 = vector.load %arg12[%c0_179, %c0_180] : memref<120x84xf32, #tpu.memory_space<vmem>>, vector<120x84xf32>
    %cst_181 = arith.constant dense<0.000000e+00> : vector<2x84xf32>
    %223 = tpu.matmul %221, %222, %cst_181 {dimension_numbers = #tpu.dot_dimension_numbers<[1], [0], [0], [1], [0, 0, 1, 1], [], []>} : vector<2x120xf32>, vector<120x84xf32>, vector<2x84xf32> -> vector<2x84xf32>
    %c0_182 = arith.constant 0 : index
    %c0_183 = arith.constant 0 : index
    %224 = vector.load %arg13[%c0_182, %c0_183] : memref<1x84xf32, #tpu.memory_space<vmem>>, vector<1x84xf32>
    %225 = vector.broadcast %224 : vector<1x84xf32> to vector<2x84xf32>
    %226 = arith.addf %223, %225 : vector<2x84xf32>
    %cst_184 = arith.constant 0.000000e+00 : f32
    %227 = vector.broadcast %cst_184 : f32 to vector<2x84xf32>
    %228 = arith.maximumf %226, %227 : vector<2x84xf32>
    %c0_185 = arith.constant 0 : index
    %c0_186 = arith.constant 0 : index
    %229 = vector.load %arg14[%c0_185, %c0_186] : memref<84x10xf32, #tpu.memory_space<vmem>>, vector<84x10xf32>
    %cst_187 = arith.constant dense<0.000000e+00> : vector<2x10xf32>
    %230 = tpu.matmul %228, %229, %cst_187 {dimension_numbers = #tpu.dot_dimension_numbers<[1], [0], [0], [1], [0, 0, 1, 1], [], []>} : vector<2x84xf32>, vector<84x10xf32>, vector<2x10xf32> -> vector<2x10xf32>
    %c0_188 = arith.constant 0 : index
    %c0_189 = arith.constant 0 : index
    %231 = vector.load %arg15[%c0_188, %c0_189] : memref<1x10xf32, #tpu.memory_space<vmem>>, vector<1x10xf32>
    %232 = vector.broadcast %231 : vector<1x10xf32> to vector<2x10xf32>
    %233 = arith.addf %230, %232 : vector<2x10xf32>
    %c0_190 = arith.constant 0 : index
    %c0_191 = arith.constant 0 : index
    %234 = vector.load %arg16[%c0_190, %c0_191] : memref<2x10xf32, #tpu.memory_space<vmem>>, vector<2x10xf32>
    tpu.vector_store %arg16[%c0_190, %c0_191], %233 {strides = array<i32>} : memref<2x10xf32, #tpu.memory_space<vmem>>, vector<2x10xf32>,
    return
  }
  func.func @transform_0(%arg0: i32) -> (i32, i32, i32) {
    %c0_i32 = arith.constant 0 : i32
    %c0_i32_0 = arith.constant 0 : i32
    %c0_i32_1 = arith.constant 0 : i32
    %c0_i32_2 = arith.constant 0 : i32
    return %c0_i32, %c0_i32_0, %c0_i32_1 : i32, i32, i32
  }
  func.func @transform_1(%arg0: i32) -> (i32, i32, i32) {
    %c0_i32 = arith.constant 0 : i32
    %c0_i32_0 = arith.constant 0 : i32
    %c0_i32_1 = arith.constant 0 : i32
    %c0_i32_2 = arith.constant 0 : i32
    return %c0_i32, %c0_i32_0, %c0_i32_1 : i32, i32, i32
  }
  func.func @transform_2(%arg0: i32) -> (i32, i32) {
    %c0_i32 = arith.constant 0 : i32
    %c0_i32_0 = arith.constant 0 : i32
    %c0_i32_1 = arith.constant 0 : i32
    return %c0_i32, %c0_i32_0 : i32, i32
  }
  func.func @transform_3(%arg0: i32) -> (i32, i32, i32) {
    %c0_i32 = arith.constant 0 : i32
    %c0_i32_0 = arith.constant 0 : i32
    %c0_i32_1 = arith.constant 0 : i32
    %c0_i32_2 = arith.constant 0 : i32
    return %c0_i32, %c0_i32_0, %c0_i32_1 : i32, i32, i32
  }
  func.func @transform_4(%arg0: i32) -> (i32, i32, i32) {
    %c0_i32 = arith.constant 0 : i32
    %c0_i32_0 = arith.constant 0 : i32
    %c0_i32_1 = arith.constant 0 : i32
    %c0_i32_2 = arith.constant 0 : i32
    return %c0_i32, %c0_i32_0, %c0_i32_1 : i32, i32, i32
  }
  func.func @transform_5(%arg0: i32) -> (i32, i32, i32) {
    %c0_i32 = arith.constant 0 : i32
    %c0_i32_0 = arith.constant 0 : i32
    %c0_i32_1 = arith.constant 0 : i32
    %c0_i32_2 = arith.constant 0 : i32
    return %c0_i32, %c0_i32_0, %c0_i32_1 : i32, i32, i32
  }
  func.func @transform_6(%arg0: i32) -> (i32, i32) {
    %c0_i32 = arith.constant 0 : i32
    %c0_i32_0 = arith.constant 0 : i32
    %c0_i32_1 = arith.constant 0 : i32
    return %c0_i32, %c0_i32_0 : i32, i32
  }
  func.func @transform_7(%arg0: i32) -> (i32, i32, i32) {
    %c0_i32 = arith.constant 0 : i32
    %c0_i32_0 = arith.constant 0 : i32
    %c0_i32_1 = arith.constant 0 : i32
    %c0_i32_2 = arith.constant 0 : i32
    return %c0_i32, %c0_i32_0, %c0_i32_1 : i32, i32, i32
  }
  func.func @transform_8(%arg0: i32) -> (i32, i32, i32) {
    %c0_i32 = arith.constant 0 : i32
    %c0_i32_0 = arith.constant 0 : i32
    %c0_i32_1 = arith.constant 0 : i32
    %c0_i32_2 = arith.constant 0 : i32
    return %c0_i32, %c0_i32_0, %c0_i32_1 : i32, i32, i32
  }
  func.func @transform_9(%arg0: i32) -> (i32, i32) {
    %c0_i32 = arith.constant 0 : i32
    %c0_i32_0 = arith.constant 0 : i32
    %c0_i32_1 = arith.constant 0 : i32
    return %c0_i32, %c0_i32_0 : i32, i32
  }
  func.func @transform_10(%arg0: i32) -> (i32, i32) {
    %c0_i32 = arith.constant 0 : i32
    %c0_i32_0 = arith.constant 0 : i32
    %c0_i32_1 = arith.constant 0 : i32
    return %c0_i32, %c0_i32_0 : i32, i32
  }
  func.func @transform_11(%arg0: i32) -> (i32, i32) {
    %c0_i32 = arith.constant 0 : i32
    %c0_i32_0 = arith.constant 0 : i32
    %c0_i32_1 = arith.constant 0 : i32
    return %c0_i32, %c0_i32_0 : i32, i32
  }
  func.func @transform_12(%arg0: i32) -> (i32, i32) {
    %c0_i32 = arith.constant 0 : i32
    %c0_i32_0 = arith.constant 0 : i32
    %c0_i32_1 = arith.constant 0 : i32
    return %c0_i32, %c0_i32_0 : i32, i32
  }
  func.func @transform_13(%arg0: i32) -> (i32, i32) {
    %c0_i32 = arith.constant 0 : i32
    %c0_i32_0 = arith.constant 0 : i32
    %c0_i32_1 = arith.constant 0 : i32
    return %c0_i32, %c0_i32_0 : i32, i32
  }
  func.func @transform_14(%arg0: i32) -> (i32, i32) {
    %c0_i32 = arith.constant 0 : i32
    %c0_i32_0 = arith.constant 0 : i32
    %c0_i32_1 = arith.constant 0 : i32
    return %c0_i32, %c0_i32_0 : i32, i32
  }
  func.func @transform_15(%arg0: i32) -> (i32, i32) {
    %c0_i32 = arith.constant 0 : i32
    %c0_i32_0 = arith.constant 0 : i32
    %c0_i32_1 = arith.constant 0 : i32
    return %c0_i32, %c0_i32_0 : i32, i32
  }
}

</mosaic_0001>

<llo_original>
// kernel: tile.13
$region0: #{tile.13}
  #allocation0 [shape = 's32[1]{0}', space=sflag, size = 0x4, scoped, tag = 'scoped memory for tile.13']
  %s0 = inlined_call_operand.vmem [shape: f32[6], index: 0, kind: input, shape index: {}]
  %s1 = inlined_call_operand.vmem [shape: f32[24,6], index: 1, kind: output, shape index: {}]
  // Predicated region
  $region2: #{tile.13} parent=0 // pred_check
    _
  $region3: #{tile.13} parent=0 // pred_check_branch
    %3 = sbr.rel (0) target = $region5
  $region4: #{tile.13} parent=0 // pred_region
    _
  $region5: #{tile.13} parent=0 // pred_fallthru
    _
  %v4 = vld [vmem:[%s0] ss:$0 sm:$0xff]
  %5 = vst [vmem:[%s1] sm:$0xff] %v4
  %s6 = scalar_lea.vmem %s1, 8
  %7 = vst [vmem:[%s6] sm:$0xff] %v4
  %s8 = scalar_lea.vmem %s1, 16
  %9 = vst [vmem:[%s8] sm:$0xff] %v4

// kernel: tile.14
$region0: #{tile.14}
  %s0 = inlined_call_operand.vmem [shape: f32[24,6], index: 0, kind: input, shape index: {}]
  %s1 = inlined_call_operand.vmem [shape: f32[1,144], index: 1, kind: output, shape index: {}]
  $region1: #{tile.14} parent=0
    #allocation0 [shape = 'u8[8192]{0}', space=vmem, size = 0x2000, scoped, tag = 'scoped mem for output reshape']
    %v2 = vld [vmem:[%s0] sm:$0x1]
    %vm3 = vcmask 48128
    %4 = vst.msk [vmem:[#allocation0] sm:$0x1] %vm3, %v2
    %s5 = scalar_lea.vmem %s0, 21
    %v6 = vld [vmem:[%s5] sm:$0x1]
    %s7 = scalar_lea.vmem %s0, 21
    %v8 = vld [vmem:[%s7] sm:$0x1]
    %vm9 = vcmask 15360
    %v10 = vsel %vm9, %v8, %v6
    %11 = vrot.lane.b32.xlu0 %v10, 126
    %v12 = vpop.permute.xlu0 %11
    %vm13 = vcmask 31744
    %s14 = scalar_lea.vmem [#allocation0], 8
    %15 = vst.msk [vmem:[%s14] sm:$0x1] %vm13, %v12
    %vm16 = vcmask 1048560
    %17 = vst.msk [vmem:[#allocation0] sm:$0x1] %vm16, %v12
    %s18 = scalar_lea.vmem %s0, 20
    %v19 = vld [vmem:[%s18] sm:$0x1]
    %20 = vrot.lane.b32.xlu0 %v19, 120
    %v21 = vpop.permute.xlu0 %20
    %vm22 = vcmask 1032128
    %23 = vst.msk [vmem:[#allocation0] sm:$0x1] %vm22, %v21
    %s24 = scalar_lea.vmem %s0, 19
    %v25 = vld [vmem:[%s24] sm:$0x1]
    %26 = vrot.lane.b32.xlu0 %v25, 114
    %v27 = vpop.permute.xlu0 %26
    %vm28 = vcmask 982928
    %29 = vst.msk [vmem:[#allocation0] sm:$0x1] %vm28, %v27
    %s30 = scalar_lea.vmem %s0, 18
    %v31 = vld [vmem:[%s30] sm:$0x1]
    %32 = vrot.lane.b32.xlu0 %v31, 108
    %v33 = vpop.permute.xlu0 %32
    %vm34 = vcmask 933728
    %35 = vst.msk [vmem:[#allocation0] sm:$0x1] %vm34, %v33
    %s36 = scalar_lea.vmem %s0, 17
    %v37 = vld [vmem:[%s36] sm:$0x1]
    %38 = vrot.lane.b32.xlu0 %v37, 102
    %v39 = vpop.permute.xlu0 %38
    %vm40 = vcmask 884528
    %41 = vst.msk [vmem:[#allocation0] sm:$0x1] %vm40, %v39
    %s42 = scalar_lea.vmem %s0, 16
    %v43 = vld [vmem:[%s42] sm:$0x1]
    %44 = vrot.lane.b32.xlu0 %v43, 96
    %v45 = vpop.permute.xlu0 %44
    %vm46 = vcmask 835328
    %47 = vst.msk [vmem:[#allocation0] sm:$0x1] %vm46, %v45
    %s48 = scalar_lea.vmem %s0, 15
    %v49 = vld [vmem:[%s48] sm:$0x1]
    %50 = vrot.lane.b32.xlu0 %v49, 90
    %v51 = vpop.permute.xlu0 %50
    %vm52 = vcmask 786128
    %53 = vst.msk [vmem:[#allocation0] sm:$0x1] %vm52, %v51
    %s54 = scalar_lea.vmem %s0, 14
    %v55 = vld [vmem:[%s54] sm:$0x1]
    %56 = vrot.lane.b32.xlu0 %v55, 84
    %v57 = vpop.permute.xlu0 %56
    %vm58 = vcmask 736928
    %59 = vst.msk [vmem:[#allocation0] sm:$0x1] %vm58, %v57
    %s60 = scalar_lea.vmem %s0, 13
    %v61 = vld [vmem:[%s60] sm:$0x1]
    %62 = vrot.lane.b32.xlu0 %v61, 78
    %v63 = vpop.permute.xlu0 %62
    %vm64 = vcmask 687728
    %65 = vst.msk [vmem:[#allocation0] sm:$0x1] %vm64, %v63
    %s66 = scalar_lea.vmem %s0, 12
    %v67 = vld [vmem:[%s66] sm:$0x1]
    %68 = vrot.lane.b32.xlu0 %v67, 72
    %v69 = vpop.permute.xlu0 %68
    %vm70 = vcmask 638528
    %71 = vst.msk [vmem:[#allocation0] sm:$0x1] %vm70, %v69
    %s72 = scalar_lea.vmem %s0, 11
    %v73 = vld [vmem:[%s72] sm:$0x1]
    %74 = vrot.lane.b32.xlu0 %v73, 66
    %v75 = vpop.permute.xlu0 %74
    %vm76 = vcmask 589328
    %77 = vst.msk [vmem:[#allocation0] sm:$0x1] %vm76, %v75
    %s78 = scalar_lea.vmem %s0, 10
    %v79 = vld [vmem:[%s78] sm:$0x1]
    %80 = vrot.lane.b32.xlu0 %v79, 60
    %v81 = vpop.permute.xlu0 %80
    %vm82 = vcmask 540128
    %83 = vst.msk [vmem:[#allocation0] sm:$0x1] %vm82, %v81
    %s84 = scalar_lea.vmem %s0, 9
    %v85 = vld [vmem:[%s84] sm:$0x1]
    %86 = vrot.lane.b32.xlu0 %v85, 54
    %v87 = vpop.permute.xlu0 %86
    %vm88 = vcmask 490928
    %89 = vst.msk [vmem:[#allocation0] sm:$0x1] %vm88, %v87
    %s90 = scalar_lea.vmem %s0, 8
    %v91 = vld [vmem:[%s90] sm:$0x1]
    %92 = vrot.lane.b32.xlu0 %v91, 48
    %v93 = vpop.permute.xlu0 %92
    %vm94 = vcmask 441728
    %95 = vst.msk [vmem:[#allocation0] sm:$0x1] %vm94, %v93
    %s96 = scalar_lea.vmem %s0, 7
    %v97 = vld [vmem:[%s96] sm:$0x1]
    %98 = vrot.lane.b32.xlu0 %v97, 42
    %v99 = vpop.permute.xlu0 %98
    %vm100 = vcmask 392528
    %101 = vst.msk [vmem:[#allocation0] sm:$0x1] %vm100, %v99
    %s102 = scalar_lea.vmem %s0, 6
    %v103 = vld [vmem:[%s102] sm:$0x1]
    %104 = vrot.lane.b32.xlu0 %v103, 36
    %v105 = vpop.permute.xlu0 %104
    %vm106 = vcmask 343328
    %107 = vst.msk [vmem:[#allocation0] sm:$0x1] %vm106, %v105
    %s108 = scalar_lea.vmem %s0, 5
    %v109 = vld [vmem:[%s108] sm:$0x1]
    %110 = vrot.lane.b32.xlu0 %v109, 30
    %v111 = vpop.permute.xlu0 %110
    %vm112 = vcmask 294128
    %113 = vst.msk [vmem:[#allocation0] sm:$0x1] %vm112, %v111
    %s114 = scalar_lea.vmem %s0, 4
    %v115 = vld [vmem:[%s114] sm:$0x1]
    %116 = vrot.lane.b32.xlu0 %v115, 24
    %v117 = vpop.permute.xlu0 %116
    %vm118 = vcmask 244928
    %119 = vst.msk [vmem:[#allocation0] sm:$0x1] %vm118, %v117
    %s120 = scalar_lea.vmem %s0, 3
    %v121 = vld [vmem:[%s120] sm:$0x1]
    %122 = vrot.lane.b32.xlu0 %v121, 18
    %v123 = vpop.permute.xlu0 %122
    %vm124 = vcmask 195728
    %125 = vst.msk [vmem:[#allocation0] sm:$0x1] %vm124, %v123
    %s126 = scalar_lea.vmem %s0, 2
    %v127 = vld [vmem:[%s126] sm:$0x1]
    %128 = vrot.lane.b32.xlu0 %v127, 12
    %v129 = vpop.permute.xlu0 %128
    %vm130 = vcmask 146528
    %131 = vst.msk [vmem:[#allocation0] sm:$0x1] %vm130, %v129
    %s132 = scalar_lea.vmem %s0, 23
    %v133 = vld [vmem:[%s132] sm:$0x1]
    %134 = vrot.lane.b32.xlu0 %v133, 10
    %v135 = vpop.permute.xlu0 %134
    %vm136 = vcmask 130128
    %s137 = scalar_lea.vmem [#allocation0], 8
    %138 = vst.msk [vmem:[%s137] sm:$0x1] %vm136, %v135
    %s139 = scalar_lea.vmem %s0, 1
    %v140 = vld [vmem:[%s139] sm:$0x1]
    %141 = vrot.lane.b32.xlu0 %v140, 6
    %v142 = vpop.permute.xlu0 %141
    %vm143 = vcmask 97328
    %144 = vst.msk [vmem:[#allocation0] sm:$0x1] %vm143, %v142
    %s145 = scalar_lea.vmem %s0, 22
    %v146 = vld [vmem:[%s145] sm:$0x1]
    %147 = vrot.lane.b32.xlu0 %v146, 4
    %v148 = vpop.permute.xlu0 %147
    %vm149 = vcmask 80928
    %s150 = scalar_lea.vmem [#allocation0], 8
    %151 = vst.msk [vmem:[%s150] sm:$0x1] %vm149, %v148
    %s153 = sshllo.u32 0, 1
    %v155 = vld [vmem:[#allocation0] sm:%s153]
    %s156 = sshllo.u32 0, 1
    %157 = vst [vmem:[%s1] sm:%s156] %v155
    %s158 = scalar_lea.vmem [#allocation0], 8
    %v159 = vld [vmem:[%s158] sm:%s153]
    %s160 = sshllo.u32 0, 1
    %s161 = scalar_lea.vmem %s1, 1
    %162 = vst [vmem:[%s161] sm:%s160] %v159

// kernel: tile.18
$region0: #{tile.18}
  #allocation0 [shape = 's32[1]{0}', space=sflag, size = 0x4, scoped, tag = 'scoped memory for tile.18']
  %s0 = inlined_call_operand.vmem [shape: f32[16], index: 0, kind: input, shape index: {}]
  %s1 = inlined_call_operand.vmem [shape: f32[8,16], index: 1, kind: output, shape index: {}]
  // Predicated region
  $region2: #{tile.18} parent=0 // pred_check
    _
  $region3: #{tile.18} parent=0 // pred_check_branch
    %3 = sbr.rel (0) target = $region5
  $region4: #{tile.18} parent=0 // pred_region
    _
  $region5: #{tile.18} parent=0 // pred_fallthru
    _
  %v4 = vld [vmem:[%s0] ss:$0 sm:$0xff]
  %5 = vst [vmem:[%s1] sm:$0xff] %v4

// kernel: tile.19
$region0: #{tile.19}
  %s0 = inlined_call_operand.vmem [shape: f32[8,16], index: 0, kind: input, shape index: {}]
  %s1 = inlined_call_operand.vmem [shape: f32[1,128], index: 1, kind: output, shape index: {}]
  $region1: #{tile.19} parent=0
    #allocation0 [shape = 'u8[4096]{0}', space=vmem, size = 0x1000, scoped, tag = 'scoped mem for output reshape']
    %v2 = vld [vmem:[%s0] sm:$0x1]
    %vm3 = vcmask 130048
    %4 = vst.msk [vmem:[#allocation0] sm:$0x1] %vm3, %v2
    %s5 = scalar_lea.vmem %s0, 7
    %v6 = vld [vmem:[%s5] sm:$0x1]
    %7 = vrot.lane.b32.xlu0 %v6, 112
    %v8 = vpop.permute.xlu0 %7
    %vm9 = vcmask 1048448
    %10 = vst.msk [vmem:[#allocation0] sm:$0x1] %vm9, %v8
    %s11 = scalar_lea.vmem %s0, 6
    %v12 = vld [vmem:[%s11] sm:$0x1]
    %13 = vrot.lane.b32.xlu0 %v12, 96
    %v14 = vpop.permute.xlu0 %13
    %vm15 = vcmask 917248
    %16 = vst.msk [vmem:[#allocation0] sm:$0x1] %vm15, %v14
    %s17 = scalar_lea.vmem %s0, 5
    %v18 = vld [vmem:[%s17] sm:$0x1]
    %19 = vrot.lane.b32.xlu0 %v18, 80
    %v20 = vpop.permute.xlu0 %19
    %vm21 = vcmask 786048
    %22 = vst.msk [vmem:[#allocation0] sm:$0x1] %vm21, %v20
    %s23 = scalar_lea.vmem %s0, 4
    %v24 = vld [vmem:[%s23] sm:$0x1]
    %25 = vrot.lane.b32.xlu0 %v24, 64
    %v26 = vpop.permute.xlu0 %25
    %vm27 = vcmask 654848
    %28 = vst.msk [vmem:[#allocation0] sm:$0x1] %vm27, %v26
    %s29 = scalar_lea.vmem %s0, 3
    %v30 = vld [vmem:[%s29] sm:$0x1]
    %31 = vrot.lane.b32.xlu0 %v30, 48
    %v32 = vpop.permute.xlu0 %31
    %vm33 = vcmask 523648
    %34 = vst.msk [vmem:[#allocation0] sm:$0x1] %vm33, %v32
    %s35 = scalar_lea.vmem %s0, 2
    %v36 = vld [vmem:[%s35] sm:$0x1]
    %37 = vrot.lane.b32.xlu0 %v36, 32
    %v38 = vpop.permute.xlu0 %37
    %vm39 = vcmask 392448
    %40 = vst.msk [vmem:[#allocation0] sm:$0x1] %vm39, %v38
    %s41 = scalar_lea.vmem %s0, 1
    %v42 = vld [vmem:[%s41] sm:$0x1]
    %43 = vrot.lane.b32.xlu0 %v42, 16
    %v44 = vpop.permute.xlu0 %43
    %vm45 = vcmask 261248
    %46 = vst.msk [vmem:[#allocation0] sm:$0x1] %vm45, %v44
    %s48 = sshllo.u32 0, 1
    %v50 = vld [vmem:[#allocation0] sm:%s48]
    %s51 = sshllo.u32 0, 1
    %52 = vst [vmem:[%s1] sm:%s51] %v50

// kernel: net_forward.1
$region0: #{net_forward.1}
  #allocation0 [shape = 'u32[]', space=smem, size = 0x4, offset = 0x4, fixed_abs, tag = 'smem constant byte address 0x4 - core index']
  #allocation1 [shape = 'u32[144,128]{1,0:T(1,128)}', space=vmem, size = 0x12000, scoped, tag = 'internal scratch']
  #allocation2 [shape = 'f32[2,896]{1,0:T(2,128)}', space=vmem, size = 0x1c00, scoped, tag = 'scratch operand']
  %s0 = inlined_call_operand.vmem [shape: f32[2,68,28], index: 0, kind: input, shape index: {}]
  %s1 = inlined_call_operand.vmem [shape: f32[5,28,144], index: 1, kind: input, shape index: {}]
  %s2 = inlined_call_operand.vmem [shape: f32[1,144], index: 2, kind: input, shape index: {}]
  %s3 = inlined_call_operand.vmem [shape: f32[2,32,64], index: 3, kind: input, shape index: {}]
  %s4 = inlined_call_operand.vmem [shape: f32[2,144,72], index: 4, kind: input, shape index: {}]
  %s5 = inlined_call_operand.vmem [shape: f32[5,72,128], index: 5, kind: input, shape index: {}]
  %s6 = inlined_call_operand.vmem [shape: f32[1,128], index: 6, kind: input, shape index: {}]
  %s7 = inlined_call_operand.vmem [shape: f32[2,14,28], index: 7, kind: input, shape index: {}]
  %s8 = inlined_call_operand.vmem [shape: f32[2,128,64], index: 8, kind: input, shape index: {}]
  %s9 = inlined_call_operand.vmem [shape: f32[896,120], index: 9, kind: input, shape index: {}]
  %s10 = inlined_call_operand.vmem [shape: f32[1,120], index: 10, kind: input, shape index: {}]
  %s11 = inlined_call_operand.vmem [shape: f32[120,84], index: 11, kind: input, shape index: {}]
  %s12 = inlined_call_operand.vmem [shape: f32[1,84], index: 12, kind: input, shape index: {}]
  %s13 = inlined_call_operand.vmem [shape: f32[84,10], index: 13, kind: input, shape index: {}]
  %s14 = inlined_call_operand.vmem [shape: f32[1,10], index: 14, kind: input, shape index: {}]
  %s15 = inlined_call_operand.hbm [shape: f32[2,10], index: 15, kind: output, shape index: {}]
  %s16 = sld [smem:[#allocation0]]
  $region70: #{net_forward.1} parent=0
    _
  %s18 = ssub.s32 1, %s16
  %s19 = scalar_select 0, %s18, %s16
  $region1: #{net_forward.1} parent=0
    #allocation3 [shape = 'u8[1024]{0}', space=vmem, size = 0x400, scoped, tag = 'output window, operand 0, single buffered']
    #allocation4 [shape = 's32[1]{0}', space=sflag, size = 0x4, scoped, tag = 'scoped memory for net_forward.1']
    %20 = vsyncpa [#allocation4], 0
    // Predicated region
    $region2: #{net_forward.1} parent=1 // pred_check
      _
    $region3: #{net_forward.1} parent=1 // pred_check_branch
      %22 = sbr.rel (0) target = $region5
    $region4: #{net_forward.1} parent=1 // pred_region
      _
    $region5: #{net_forward.1} parent=1 // pred_fallthru
      _
    // Predicated region
    $region6: #{net_forward.1} parent=1 // pred_check
      _
    $region7: #{net_forward.1} parent=1 // pred_check_branch
      %24 = sbr.rel (0) target = $region9
    $region8: #{net_forward.1} parent=1 // pred_region
      _
    $region9: #{net_forward.1} parent=1 // pred_fallthru
      _
    // Predicated region
    $region10: #{net_forward.1} parent=1 // pred_check
      _
    $region11: #{net_forward.1} parent=1 // pred_check_branch
      %26 = sbr.rel (0) target = $region13
    $region12: #{net_forward.1} parent=1 // pred_region
      _
    $region13: #{net_forward.1} parent=1 // pred_fallthru
      _
    // Predicated region
    $region14: #{net_forward.1} parent=1 // pred_check
      _
    $region15: #{net_forward.1} parent=1 // pred_check_branch
      %28 = sbr.rel (0) target = $region17
    $region16: #{net_forward.1} parent=1 // pred_region
      _
    $region17: #{net_forward.1} parent=1 // pred_fallthru
      _
    // Predicated region
    $region18: #{net_forward.1} parent=1 // pred_check
      _
    $region19: #{net_forward.1} parent=1 // pred_check_branch
      %30 = sbr.rel (0) target = $region21
    $region20: #{net_forward.1} parent=1 // pred_region
      _
    $region21: #{net_forward.1} parent=1 // pred_fallthru
      _
    // Predicated region
    $region22: #{net_forward.1} parent=1 // pred_check
      _
    $region23: #{net_forward.1} parent=1 // pred_check_branch
      %32 = sbr.rel (0) target = $region25
    $region24: #{net_forward.1} parent=1 // pred_region
      _
    $region25: #{net_forward.1} parent=1 // pred_fallthru
      _
    // Predicated region
    $region26: #{net_forward.1} parent=1 // pred_check
      _
    $region27: #{net_forward.1} parent=1 // pred_check_branch
      %34 = sbr.rel (0) target = $region29
    $region28: #{net_forward.1} parent=1 // pred_region
      _
    $region29: #{net_forward.1} parent=1 // pred_fallthru
      _
    // Predicated region
    $region30: #{net_forward.1} parent=1 // pred_check
      _
    $region31: #{net_forward.1} parent=1 // pred_check_branch
      %36 = sbr.rel (0) target = $region33
    $region32: #{net_forward.1} parent=1 // pred_region
      _
    $region33: #{net_forward.1} parent=1 // pred_fallthru
      _
    // Predicated region
    $region34: #{net_forward.1} parent=1 // pred_check
      _
    $region35: #{net_forward.1} parent=1 // pred_check_branch
      %38 = sbr.rel (0) target = $region37
    $region36: #{net_forward.1} parent=1 // pred_region
      _
    $region37: #{net_forward.1} parent=1 // pred_fallthru
      _
    // Predicated region
    $region38: #{net_forward.1} parent=1 // pred_check
      _
    $region39: #{net_forward.1} parent=1 // pred_check_branch
      %40 = sbr.rel (0) target = $region41
    $region40: #{net_forward.1} parent=1 // pred_region
      _
    $region41: #{net_forward.1} parent=1 // pred_fallthru
      _
    // Predicated region
    $region42: #{net_forward.1} parent=1 // pred_check
      _
    $region43: #{net_forward.1} parent=1 // pred_check_branch
      %42 = sbr.rel (0) target = $region45
    $region44: #{net_forward.1} parent=1 // pred_region
      _
    $region45: #{net_forward.1} parent=1 // pred_fallthru
      _
    // Predicated region
    $region46: #{net_forward.1} parent=1 // pred_check
      _
    $region47: #{net_forward.1} parent=1 // pred_check_branch
      %44 = sbr.rel (0) target = $region49
    $region48: #{net_forward.1} parent=1 // pred_region
      _
    $region49: #{net_forward.1} parent=1 // pred_fallthru
      _
    // Predicated region
    $region50: #{net_forward.1} parent=1 // pred_check
      _
    $region51: #{net_forward.1} parent=1 // pred_check_branch
      %46 = sbr.rel (0) target = $region53
    $region52: #{net_forward.1} parent=1 // pred_region
      _
    $region53: #{net_forward.1} parent=1 // pred_fallthru
      _
    // Predicated region
    $region54: #{net_forward.1} parent=1 // pred_check
      _
    $region55: #{net_forward.1} parent=1 // pred_check_branch
      %48 = sbr.rel (0) target = $region57
    $region56: #{net_forward.1} parent=1 // pred_region
      _
    $region57: #{net_forward.1} parent=1 // pred_fallthru
      _
    // Predicated region
    $region58: #{net_forward.1} parent=1 // pred_check
      _
    $region59: #{net_forward.1} parent=1 // pred_check_branch
      %50 = sbr.rel (0) target = $region61
    $region60: #{net_forward.1} parent=1 // pred_region
      _
    $region61: #{net_forward.1} parent=1 // pred_fallthru
      _
    %v51 = vld [vmem:[%s2] sm:$0x3]
    %v52 = vld [vmem:[%s6] sm:$0x1]
    %v53 = vld [vmem:[%s3] sm:$0xff]
    %v54 = vld [vmem:[%s3 + $0x8] sm:$0xff]
    %v55 = vld [vmem:[%s3 + $0x10] sm:$0xff]
    %v56 = vld [vmem:[%s3 + $0x18] sm:$0xff]
    %s57 = scalar_lea.vmem %s3, 32
    %v58 = vld [vmem:[%s57] sm:$0xff]
    %v59 = vld [vmem:[%s57 + $0x8] sm:$0xff]
    %v60 = vld [vmem:[%s57 + $0x10] sm:$0xff]
    %v61 = vld [vmem:[%s57 + $0x18] sm:$0xff]
    %v62 = vld [vmem:[%s4] sm:$0xff]
    %v63 = vld [vmem:[%s4 + $0x8] sm:$0xff]
    %v64 = vld [vmem:[%s4 + $0x10] sm:$0xff]
    %v65 = vld [vmem:[%s4 + $0x18] sm:$0xff]
    %v66 = vld [vmem:[%s4 + $0x20] sm:$0xff]
    %v67 = vld [vmem:[%s4 + $0x28] sm:$0xff]
    %v68 = vld [vmem:[%s4 + $0x30] sm:$0xff]
    %v69 = vld [vmem:[%s4 + $0x38] sm:$0xff]
    %v70 = vld [vmem:[%s4 + $0x40] sm:$0xff]
    %v71 = vld [vmem:[%s4 + $0x48] sm:$0xff]
    %v72 = vld [vmem:[%s4 + $0x50] sm:$0xff]
    %v73 = vld [vmem:[%s4 + $0x58] sm:$0xff]
    %v74 = vld [vmem:[%s4 + $0x60] sm:$0xff]
    %v75 = vld [vmem:[%s4 + $0x68] sm:$0xff]
    %v76 = vld [vmem:[%s4 + $0x70] sm:$0xff]
    %v77 = vld [vmem:[%s4 + $0x78] sm:$0xff]
    %v78 = vld [vmem:[%s4 + $0x80] sm:$0xff]
    %v79 = vld [vmem:[%s4 + $0x88] sm:$0xff]
    %s80 = scalar_lea.vmem %s4, 144
    %v81 = vld [vmem:[%s80] sm:$0xff]
    %v82 = vld [vmem:[%s80 + $0x8] sm:$0xff]
    %v83 = vld [vmem:[%s80 + $0x10] sm:$0xff]
    %v84 = vld [vmem:[%s80 + $0x18] sm:$0xff]
    %v85 = vld [vmem:[%s80 + $0x20] sm:$0xff]
    %v86 = vld [vmem:[%s80 + $0x28] sm:$0xff]
    %v87 = vld [vmem:[%s80 + $0x30] sm:$0xff]
    %v88 = vld [vmem:[%s80 + $0x38] sm:$0xff]
    %v89 = vld [vmem:[%s80 + $0x40] sm:$0xff]
    %v90 = vld [vmem:[%s80 + $0x48] sm:$0xff]
    %v91 = vld [vmem:[%s80 + $0x50] sm:$0xff]
    %v92 = vld [vmem:[%s80 + $0x58] sm:$0xff]
    %v93 = vld [vmem:[%s80 + $0x60] sm:$0xff]
    %v94 = vld [vmem:[%s80 + $0x68] sm:$0xff]
    %v95 = vld [vmem:[%s80 + $0x70] sm:$0xff]
    %v96 = vld [vmem:[%s80 + $0x78] sm:$0xff]
    %v97 = vld [vmem:[%s80 + $0x80] sm:$0xff]
    %v98 = vld [vmem:[%s80 + $0x88] sm:$0xff]
    %v99 = vld [vmem:[%s7] sm:$0xff]
    %v100 = vld [vmem:[%s7 + $0x8] sm:$0x3f]
    %s101 = scalar_lea.vmem %s7, 16
    %v102 = vld [vmem:[%s101] sm:$0xff]
    %v103 = vld [vmem:[%s101 + $0x8] sm:$0x3f]
    %v104 = vld [vmem:[%s8] sm:$0xff]
    %v105 = vld [vmem:[%s8 + $0x8] sm:$0xff]
    %v106 = vld [vmem:[%s8 + $0x10] sm:$0xff]
    %v107 = vld [vmem:[%s8 + $0x18] sm:$0xff]
    %v108 = vld [vmem:[%s8 + $0x20] sm:$0xff]
    %v109 = vld [vmem:[%s8 + $0x28] sm:$0xff]
    %v110 = vld [vmem:[%s8 + $0x30] sm:$0xff]
    %v111 = vld [vmem:[%s8 + $0x38] sm:$0xff]
    %v112 = vld [vmem:[%s8 + $0x40] sm:$0xff]
    %v113 = vld [vmem:[%s8 + $0x48] sm:$0xff]
    %v114 = vld [vmem:[%s8 + $0x50] sm:$0xff]
    %v115 = vld [vmem:[%s8 + $0x58] sm:$0xff]
    %v116 = vld [vmem:[%s8 + $0x60] sm:$0xff]
    %v117 = vld [vmem:[%s8 + $0x68] sm:$0xff]
    %v118 = vld [vmem:[%s8 + $0x70] sm:$0xff]
    %v119 = vld [vmem:[%s8 + $0x78] sm:$0xff]
    %s120 = scalar_lea.vmem %s8, 128
    %v121 = vld [vmem:[%s120] sm:$0xff]
    %v122 = vld [vmem:[%s120 + $0x8] sm:$0xff]
    %v123 = vld [vmem:[%s120 + $0x10] sm:$0xff]
    %v124 = vld [vmem:[%s120 + $0x18] sm:$0xff]
    %v125 = vld [vmem:[%s120 + $0x20] sm:$0xff]
    %v126 = vld [vmem:[%s120 + $0x28] sm:$0xff]
    %v127 = vld [vmem:[%s120 + $0x30] sm:$0xff]
    %v128 = vld [vmem:[%s120 + $0x38] sm:$0xff]
    %v129 = vld [vmem:[%s120 + $0x40] sm:$0xff]
    %v130 = vld [vmem:[%s120 + $0x48] sm:$0xff]
    %v131 = vld [vmem:[%s120 + $0x50] sm:$0xff]
    %v132 = vld [vmem:[%s120 + $0x58] sm:$0xff]
    %v133 = vld [vmem:[%s120 + $0x60] sm:$0xff]
    %v134 = vld [vmem:[%s120 + $0x68] sm:$0xff]
    %v135 = vld [vmem:[%s120 + $0x70] sm:$0xff]
    %v136 = vld [vmem:[%s120 + $0x78] sm:$0xff]
    %v137 = vld [vmem:[%s0] sm:$0xff]
    %v138 = vld [vmem:[%s0 + $0x8] sm:$0xff]
    %v139 = vld [vmem:[%s0 + $0x10] sm:$0xff]
    %v140 = vld [vmem:[%s0 + $0x18] sm:$0xff]
    %v141 = vld [vmem:[%s0 + $0x20] sm:$0xff]
    %v142 = vld [vmem:[%s0 + $0x28] sm:$0xff]
    %v143 = vld [vmem:[%s0 + $0x30] sm:$0xff]
    %v144 = vld [vmem:[%s0 + $0x38] sm:$0xff]
    %v145 = vld [vmem:[%s0 + $0x40] sm:$0xf]
    %v146 = vld [vmem:[%s1] sm:$0xff]
    %v147 = vld [vmem:[%s1 + $0x8] sm:$0xff]
    %v148 = vld [vmem:[%s1 + $0x10] sm:$0xff]
    %v149 = vld [vmem:[%s1 + $0x18] sm:$0xff]
    %v150 = vld [vmem:[%s1 + $0x20] sm:$0xff]
    %v151 = vld [vmem:[%s1 + $0x28] sm:$0xff]
    %v152 = vld [vmem:[%s1 + $0x30] sm:$0xf]
    %v153 = vld [vmem:[%s1 + $0x38] sm:$0xf]
    %s154 = scalar_lea.vmem %s1, 64
    %v155 = vld [vmem:[%s154] sm:$0xff]
    %v156 = vld [vmem:[%s154 + $0x8] sm:$0xff]
    %v157 = vld [vmem:[%s154 + $0x10] sm:$0xff]
    %v158 = vld [vmem:[%s154 + $0x18] sm:$0xff]
    %v159 = vld [vmem:[%s154 + $0x20] sm:$0xff]
    %v160 = vld [vmem:[%s154 + $0x28] sm:$0xff]
    %v161 = vld [vmem:[%s154 + $0x30] sm:$0xf]
    %v162 = vld [vmem:[%s154 + $0x38] sm:$0xf]
    %vm172 = vcmask 1046528
    %v173 = vrot.slane %v137, 1
    %v174 = vrot.slane %v138, 1
    %v175 = vsel %vm172, %v173, %v174
    %v176 = vrot.slane %v139, 1
    %v177 = vsel %vm172, %v174, %v176
    %v178 = vrot.slane %v140, 1
    %v179 = vsel %vm172, %v176, %v178
    %v180 = vrot.slane %v141, 1
    %v181 = vsel %vm172, %v178, %v180
    %v182 = vrot.slane %v142, 1
    %v183 = vsel %vm172, %v180, %v182
    %v184 = vrot.slane %v143, 1
    %v185 = vsel %vm172, %v182, %v184
    %v186 = vrot.slane %v144, 1
    %v187 = vsel %vm172, %v184, %v186
    %v188 = vrot.slane %v145, 1
    %v189 = vsel %vm172, %v186, %v188
    %vm190 = vcmask 228352
    %v191 = vsel %vm190, %v175, 0
    %v193 = vsel %vm190, %v177, 0
    %v195 = vsel %vm190, %v179, 0
    %v197 = vsel %vm190, %v181, 0
    %v199 = vsel %vm190, %v183, 0
    %v201 = vsel %vm190, %v185, 0
    %v203 = vsel %vm190, %v187, 0
    %v205 = vsel %vm190, %v189, 0
    %vm207 = vcmask 1043456
    %v209 = vsel %vm207, %v161, 0
    %v212 = vsel %vm207, %v162, 0
    %214 = vmatprep.subr.mxu0 %v156
    %215 = vmatpush1.msra.mxu0 %v155
    %216 = vmatprep.subr.mxu0 %v158
    %217 = vmatpush1.msra.mxu0 %v157
    %218 = vmatprep.subr.mxu0 %v160
    %219 = vmatpush1.msra.mxu0 %v159
    %220 = vmatprep.subr.mxu0 %v212
    %221 = vmatpush1.msra.mxu0 %v209
    %222 = vmatprep.subr.mxu0 0.0
    %223 = vmatpush1.msra.mxu0 0.0
    %224 = vmatprep.subr.mxu0 0.0
    %225 = vmatpush1.msra.mxu0 0.0
    %226 = vmatprep.subr.mxu0 0.0
    %227 = vmatpush1.msra.mxu0 0.0
    %228 = vmatprep.subr.mxu0 0.0
    %229 = vmatpush1.msra.mxu0 0.0
    %230 = vmatprep.subr.mxu0 0.0
    %231 = vmatpush1.msra.mxu0 0.0
    %232 = vmatprep.subr.mxu0 0.0
    %233 = vmatpush1.msra.mxu0 0.0
    %234 = vmatprep.subr.mxu0 0.0
    %235 = vmatpush1.msra.mxu0 0.0
    %236 = vmatprep.subr.mxu0 0.0
    %237 = vmatpush1.msra.mxu0 0.0
    %238 = vmatprep.subr.mxu0 0.0
    %239 = vmatpush1.msra.mxu0 0.0
    %240 = vmatprep.subr.mxu0 0.0
    %241 = vmatpush1.msra.mxu0 0.0
    %242 = vmatprep.subr.mxu0 0.0
    %243 = vmatpush1.msra.mxu0 0.0
    %244 = vmatprep.subr.mxu0 0.0
    %245 = vmatpush1.msra.mxu0 0.0
    %246 = vmatprep.subr.mxu0 0.0
    %247 = vmatpush1.msra.mxu0 0.0
    %248 = vmatprep.subr.mxu0 0.0
    %249 = vmatpush1.msra.mxu0 0.0
    %250 = vmatprep.subr.mxu0 0.0
    %251 = vmatpush1.msra.mxu0 0.0
    %252 = vmatprep.subr.mxu0 0.0
    %253 = vmatpush1.msra.mxu0 0.0
    %254 = vmatprep.subr.mxu0 0.0
    %255 = vmatpush1.msra.mxu0 0.0
    %256 = vmatprep.subr.mxu0 0.0
    %257 = vmatpush1.msra.mxu0 0.0
    %258 = vmatprep.subr.mxu0 0.0
    %259 = vmatpush1.msra.mxu0 0.0
    %260 = vmatprep.subr.mxu0 0.0
    %261 = vmatpush1.msra.mxu0 0.0
    %262 = vmatprep.subr.mxu0 0.0
    %263 = vmatpush1.msra.mxu0 0.0
    %264 = vmatprep.subr.mxu0 0.0
    %265 = vmatpush1.msra.mxu0 0.0
    %266 = vmatprep.subr.mxu0 0.0
    %267 = vmatpush1.msra.mxu0 0.0
    %268 = vmatprep.subr.mxu0 0.0
    %269 = vmatpush1.msra.mxu0 0.0
    %270 = vmatprep.subr.mxu0 0.0
    %271 = vmatpush1.msra.mxu0 0.0
    %272 = vmatprep.subr.mxu0 0.0
    %273 = vmatpush1.msra.mxu0 0.0
    %274 = vmatprep.subr.mxu0 0.0
    %275 = vmatpush1.msra.mxu0 0.0
    %276 = vmatprep.subr.mxu0 0.0
    %277 = vmatpush1.msra.mxu0 0.0
    %278 = vmatprep.mubr.f32.mxu0 0.0
    %279 = vmatmul.mubr.f32.gmra.mrb[0].mxu0 %v191
    %v280 = vpop.f32.mrb[0].mxu0
    %v281 = vadd.f32 0.0, %v280
    %v282 = vpop.f32.mrb[0].mxu0
    %v283 = vadd.f32 0.0, %v282
    %284 = vmatprep.mubr.f32.mxu0 0.0
    %285 = vmatmul.mubr.f32.gmra.mrb[0].mxu0 %v193
    %v286 = vpop.f32.mrb[0].mxu0
    %v287 = vadd.f32 0.0, %v286
    %v288 = vpop.f32.mrb[0].mxu0
    %v289 = vadd.f32 0.0, %v288
    %290 = vmatprep.mubr.f32.mxu0 0.0
    %291 = vmatmul.mubr.f32.gmra.mrb[0].mxu0 %v195
    %v292 = vpop.f32.mrb[0].mxu0
    %v293 = vadd.f32 0.0, %v292
    %v294 = vpop.f32.mrb[0].mxu0
    %v295 = vadd.f32 0.0, %v294
    %296 = vmatprep.mubr.f32.mxu0 0.0
    %297 = vmatmul.mubr.f32.gmra.mrb[0].mxu0 %v197
    %v298 = vpop.f32.mrb[0].mxu0
    %v299 = vadd.f32 0.0, %v298
    %v300 = vpop.f32.mrb[0].mxu0
    %v301 = vadd.f32 0.0, %v300
    %302 = vmatprep.mubr.f32.mxu0 0.0
    %303 = vmatmul.mubr.f32.gmra.mrb[0].mxu0 %v199
    %v304 = vpop.f32.mrb[0].mxu0
    %v305 = vadd.f32 0.0, %v304
    %v306 = vpop.f32.mrb[0].mxu0
    %v307 = vadd.f32 0.0, %v306
    %308 = vmatprep.mubr.f32.mxu0 0.0
    %309 = vmatmul.mubr.f32.gmra.mrb[0].mxu0 %v201
    %v310 = vpop.f32.mrb[0].mxu0
    %v311 = vadd.f32 0.0, %v310
    %v312 = vpop.f32.mrb[0].mxu0
    %v313 = vadd.f32 0.0, %v312
    %314 = vmatprep.mubr.f32.mxu0 0.0
    %315 = vmatmul.mubr.f32.gmra.mrb[0].mxu0 %v203
    %v316 = vpop.f32.mrb[0].mxu0
    %v317 = vadd.f32 0.0, %v316
    %v318 = vpop.f32.mrb[0].mxu0
    %v319 = vadd.f32 0.0, %v318
    %320 = vmatprep.mubr.f32.mxu0 0.0
    %321 = vmatmul.mubr.f32.gmra.mrb[0].mxu0 %v205
    %v322 = vpop.f32.mrb[0].mxu0
    %v323 = vadd.f32 0.0, %v322
    %v324 = vpop.f32.mrb[0].mxu0
    %v325 = vadd.f32 0.0, %v324
    %326 = vdwg.mxu0
    %v327 = vsel %vm190, %v137, 0
    %v329 = vsel %vm190, %v138, 0
    %v331 = vsel %vm190, %v139, 0
    %v333 = vsel %vm190, %v140, 0
    %v335 = vsel %vm190, %v141, 0
    %v337 = vsel %vm190, %v142, 0
    %v339 = vsel %vm190, %v143, 0
    %v341 = vsel %vm190, %v144, 0
    %v344 = vsel %vm207, %v152, 0
    %v347 = vsel %vm207, %v153, 0
    %349 = vmatprep.subr.mxu0 %v147
    %350 = vmatpush1.msra.mxu0 %v146
    %351 = vmatprep.subr.mxu0 %v149
    %352 = vmatpush1.msra.mxu0 %v148
    %353 = vmatprep.subr.mxu0 %v151
    %354 = vmatpush1.msra.mxu0 %v150
    %355 = vmatprep.subr.mxu0 %v347
    %356 = vmatpush1.msra.mxu0 %v344
    %357 = vmatprep.subr.mxu0 0.0
    %358 = vmatpush1.msra.mxu0 0.0
    %359 = vmatprep.subr.mxu0 0.0
    %360 = vmatpush1.msra.mxu0 0.0
    %361 = vmatprep.subr.mxu0 0.0
    %362 = vmatpush1.msra.mxu0 0.0
    %363 = vmatprep.subr.mxu0 0.0
    %364 = vmatpush1.msra.mxu0 0.0
    %365 = vmatprep.subr.mxu0 0.0
    %366 = vmatpush1.msra.mxu0 0.0
    %367 = vmatprep.subr.mxu0 0.0
    %368 = vmatpush1.msra.mxu0 0.0
    %369 = vmatprep.subr.mxu0 0.0
    %370 = vmatpush1.msra.mxu0 0.0
    %371 = vmatprep.subr.mxu0 0.0
    %372 = vmatpush1.msra.mxu0 0.0
    %373 = vmatprep.subr.mxu0 0.0
    %374 = vmatpush1.msra.mxu0 0.0
    %375 = vmatprep.subr.mxu0 0.0
    %376 = vmatpush1.msra.mxu0 0.0
    %377 = vmatprep.subr.mxu0 0.0
    %378 = vmatpush1.msra.mxu0 0.0
    %379 = vmatprep.subr.mxu0 0.0
    %380 = vmatpush1.msra.mxu0 0.0
    %381 = vmatprep.subr.mxu0 0.0
    %382 = vmatpush1.msra.mxu0 0.0
    %383 = vmatprep.subr.mxu0 0.0
    %384 = vmatpush1.msra.mxu0 0.0
    %385 = vmatprep.subr.mxu0 0.0
    %386 = vmatpush1.msra.mxu0 0.0
    %387 = vmatprep.subr.mxu0 0.0
    %388 = vmatpush1.msra.mxu0 0.0
    %389 = vmatprep.subr.mxu0 0.0
    %390 = vmatpush1.msra.mxu0 0.0
    %391 = vmatprep.subr.mxu0 0.0
    %392 = vmatpush1.msra.mxu0 0.0
    %393 = vmatprep.subr.mxu0 0.0
    %394 = vmatpush1.msra.mxu0 0.0
    %395 = vmatprep.subr.mxu0 0.0
    %396 = vmatpush1.msra.mxu0 0.0
    %397 = vmatprep.subr.mxu0 0.0
    %398 = vmatpush1.msra.mxu0 0.0
    %399 = vmatprep.subr.mxu0 0.0
    %400 = vmatpush1.msra.mxu0 0.0
    %401 = vmatprep.subr.mxu0 0.0
    %402 = vmatpush1.msra.mxu0 0.0
    %403 = vmatprep.subr.mxu0 0.0
    %404 = vmatpush1.msra.mxu0 0.0
    %405 = vmatprep.subr.mxu0 0.0
    %406 = vmatpush1.msra.mxu0 0.0
    %407 = vmatprep.subr.mxu0 0.0
    %408 = vmatpush1.msra.mxu0 0.0
    %409 = vmatprep.subr.mxu0 0.0
    %410 = vmatpush1.msra.mxu0 0.0
    %411 = vmatprep.subr.mxu0 0.0
    %412 = vmatpush1.msra.mxu0 0.0
    %413 = vmatprep.mubr.f32.mxu0 0.0
    %414 = vmatmul.mubr.f32.gmra.mrb[0].mxu0 %v327
    %v415 = vpop.f32.mrb[0].mxu0
    %v416 = vadd.f32 %v281, %v415
    %v417 = vpop.f32.mrb[0].mxu0
    %v418 = vadd.f32 %v283, %v417
    %419 = vmatprep.mubr.f32.mxu0 0.0
    %420 = vmatmul.mubr.f32.gmra.mrb[0].mxu0 %v329
    %v421 = vpop.f32.mrb[0].mxu0
    %v422 = vadd.f32 %v287, %v421
    %v423 = vpop.f32.mrb[0].mxu0
    %v424 = vadd.f32 %v289, %v423
    %425 = vmatprep.mubr.f32.mxu0 0.0
    %426 = vmatmul.mubr.f32.gmra.mrb[0].mxu0 %v331
    %v427 = vpop.f32.mrb[0].mxu0
    %v428 = vadd.f32 %v293, %v427
    %v429 = vpop.f32.mrb[0].mxu0
    %v430 = vadd.f32 %v295, %v429
    %431 = vmatprep.mubr.f32.mxu0 0.0
    %432 = vmatmul.mubr.f32.gmra.mrb[0].mxu0 %v333
    %v433 = vpop.f32.mrb[0].mxu0
    %v434 = vadd.f32 %v299, %v433
    %v435 = vpop.f32.mrb[0].mxu0
    %v436 = vadd.f32 %v301, %v435
    %437 = vmatprep.mubr.f32.mxu0 0.0
    %438 = vmatmul.mubr.f32.gmra.mrb[0].mxu0 %v335
    %v439 = vpop.f32.mrb[0].mxu0
    %v440 = vadd.f32 %v305, %v439
    %v441 = vpop.f32.mrb[0].mxu0
    %v442 = vadd.f32 %v307, %v441
    %443 = vmatprep.mubr.f32.mxu0 0.0
    %444 = vmatmul.mubr.f32.gmra.mrb[0].mxu0 %v337
    %v445 = vpop.f32.mrb[0].mxu0
    %v446 = vadd.f32 %v311, %v445
    %v447 = vpop.f32.mrb[0].mxu0
    %v448 = vadd.f32 %v313, %v447
    %449 = vmatprep.mubr.f32.mxu0 0.0
    %450 = vmatmul.mubr.f32.gmra.mrb[0].mxu0 %v339
    %v451 = vpop.f32.mrb[0].mxu0
    %v452 = vadd.f32 %v317, %v451
    %v453 = vpop.f32.mrb[0].mxu0
    %v454 = vadd.f32 %v319, %v453
    %455 = vmatprep.mubr.f32.mxu0 0.0
    %456 = vmatmul.mubr.f32.gmra.mrb[0].mxu0 %v341
    %v457 = vpop.f32.mrb[0].mxu0
    %v458 = vadd.f32 %v323, %v457
    %v459 = vpop.f32.mrb[0].mxu0
    %v460 = vadd.f32 %v325, %v459
    %461 = vdwg.mxu0
    %s462 = scalar_lea.vmem %s1, 128
    %v463 = vld [vmem:[%s462] sm:$0xff]
    %v464 = vld [vmem:[%s462 + $0x8] sm:$0xff]
    %v465 = vld [vmem:[%s462 + $0x10] sm:$0xff]
    %v466 = vld [vmem:[%s462 + $0x18] sm:$0xff]
    %v467 = vld [vmem:[%s462 + $0x20] sm:$0xff]
    %v468 = vld [vmem:[%s462 + $0x28] sm:$0xff]
    %v469 = vld [vmem:[%s462 + $0x30] sm:$0xf]
    %v470 = vld [vmem:[%s462 + $0x38] sm:$0xf]
    %vm471 = vcmask 1045504
    %v472 = vrot.slane %v137, 2
    %v473 = vrot.slane %v138, 2
    %v474 = vsel %vm471, %v472, %v473
    %v475 = vrot.slane %v139, 2
    %v476 = vsel %vm471, %v473, %v475
    %v477 = vrot.slane %v140, 2
    %v478 = vsel %vm471, %v475, %v477
    %v479 = vrot.slane %v141, 2
    %v480 = vsel %vm471, %v477, %v479
    %v481 = vrot.slane %v142, 2
    %v482 = vsel %vm471, %v479, %v481
    %v483 = vrot.slane %v143, 2
    %v484 = vsel %vm471, %v481, %v483
    %v485 = vrot.slane %v144, 2
    %v486 = vsel %vm471, %v483, %v485
    %v487 = vrot.slane %v145, 2
    %v488 = vsel %vm471, %v485, %v487
    %v489 = vsel %vm190, %v474, 0
    %v491 = vsel %vm190, %v476, 0
    %v493 = vsel %vm190, %v478, 0
    %v495 = vsel %vm190, %v480, 0
    %v497 = vsel %vm190, %v482, 0
    %v499 = vsel %vm190, %v484, 0
    %v501 = vsel %vm190, %v486, 0
    %v503 = vsel %vm190, %v488, 0
    %v506 = vsel %vm207, %v469, 0
    %v509 = vsel %vm207, %v470, 0
    %511 = vmatprep.subr.mxu0 %v464
    %512 = vmatpush1.msra.mxu0 %v463
    %513 = vmatprep.subr.mxu0 %v466
    %514 = vmatpush1.msra.mxu0 %v465
    %515 = vmatprep.subr.mxu0 %v468
    %516 = vmatpush1.msra.mxu0 %v467
    %517 = vmatprep.subr.mxu0 %v509
    %518 = vmatpush1.msra.mxu0 %v506
    %519 = vmatprep.subr.mxu0 0.0
    %520 = vmatpush1.msra.mxu0 0.0
    %521 = vmatprep.subr.mxu0 0.0
    %522 = vmatpush1.msra.mxu0 0.0
    %523 = vmatprep.subr.mxu0 0.0
    %524 = vmatpush1.msra.mxu0 0.0
    %525 = vmatprep.subr.mxu0 0.0
    %526 = vmatpush1.msra.mxu0 0.0
    %527 = vmatprep.subr.mxu0 0.0
    %528 = vmatpush1.msra.mxu0 0.0
    %529 = vmatprep.subr.mxu0 0.0
    %530 = vmatpush1.msra.mxu0 0.0
    %531 = vmatprep.subr.mxu0 0.0
    %532 = vmatpush1.msra.mxu0 0.0
    %533 = vmatprep.subr.mxu0 0.0
    %534 = vmatpush1.msra.mxu0 0.0
    %535 = vmatprep.subr.mxu0 0.0
    %536 = vmatpush1.msra.mxu0 0.0
    %537 = vmatprep.subr.mxu0 0.0
    %538 = vmatpush1.msra.mxu0 0.0
    %539 = vmatprep.subr.mxu0 0.0
    %540 = vmatpush1.msra.mxu0 0.0
    %541 = vmatprep.subr.mxu0 0.0
    %542 = vmatpush1.msra.mxu0 0.0
    %543 = vmatprep.subr.mxu0 0.0
    %544 = vmatpush1.msra.mxu0 0.0
    %545 = vmatprep.subr.mxu0 0.0
    %546 = vmatpush1.msra.mxu0 0.0
    %547 = vmatprep.subr.mxu0 0.0
    %548 = vmatpush1.msra.mxu0 0.0
    %549 = vmatprep.subr.mxu0 0.0
    %550 = vmatpush1.msra.mxu0 0.0
    %551 = vmatprep.subr.mxu0 0.0
    %552 = vmatpush1.msra.mxu0 0.0
    %553 = vmatprep.subr.mxu0 0.0
    %554 = vmatpush1.msra.mxu0 0.0
    %555 = vmatprep.subr.mxu0 0.0
    %556 = vmatpush1.msra.mxu0 0.0
    %557 = vmatprep.subr.mxu0 0.0
    %558 = vmatpush1.msra.mxu0 0.0
    %559 = vmatprep.subr.mxu0 0.0
    %560 = vmatpush1.msra.mxu0 0.0
    %561 = vmatprep.subr.mxu0 0.0
    %562 = vmatpush1.msra.mxu0 0.0
    %563 = vmatprep.subr.mxu0 0.0
    %564 = vmatpush1.msra.mxu0 0.0
    %565 = vmatprep.subr.mxu0 0.0
    %566 = vmatpush1.msra.mxu0 0.0
    %567 = vmatprep.subr.mxu0 0.0
    %568 = vmatpush1.msra.mxu0 0.0
    %569 = vmatprep.subr.mxu0 0.0
    %570 = vmatpush1.msra.mxu0 0.0
    %571 = vmatprep.subr.mxu0 0.0
    %572 = vmatpush1.msra.mxu0 0.0
    %573 = vmatprep.subr.mxu0 0.0
    %574 = vmatpush1.msra.mxu0 0.0
    %575 = vmatprep.mubr.f32.mxu0 0.0
    %576 = vmatmul.mubr.f32.gmra.mrb[0].mxu0 %v489
    %v577 = vpop.f32.mrb[0].mxu0
    %v578 = vadd.f32 0.0, %v577
    %v579 = vpop.f32.mrb[0].mxu0
    %v580 = vadd.f32 0.0, %v579
    %581 = vmatprep.mubr.f32.mxu0 0.0
    %582 = vmatmul.mubr.f32.gmra.mrb[0].mxu0 %v491
    %v583 = vpop.f32.mrb[0].mxu0
    %v584 = vadd.f32 0.0, %v583
    %v585 = vpop.f32.mrb[0].mxu0
    %v586 = vadd.f32 0.0, %v585
    %587 = vmatprep.mubr.f32.mxu0 0.0
    %588 = vmatmul.mubr.f32.gmra.mrb[0].mxu0 %v493
    %v589 = vpop.f32.mrb[0].mxu0
    %v590 = vadd.f32 0.0, %v589
    %v591 = vpop.f32.mrb[0].mxu0
    %v592 = vadd.f32 0.0, %v591
    %593 = vmatprep.mubr.f32.mxu0 0.0
    %594 = vmatmul.mubr.f32.gmra.mrb[0].mxu0 %v495
    %v595 = vpop.f32.mrb[0].mxu0
    %v596 = vadd.f32 0.0, %v595
    %v597 = vpop.f32.mrb[0].mxu0
    %v598 = vadd.f32 0.0, %v597
    %599 = vmatprep.mubr.f32.mxu0 0.0
    %600 = vmatmul.mubr.f32.gmra.mrb[0].mxu0 %v497
    %v601 = vpop.f32.mrb[0].mxu0
    %v602 = vadd.f32 0.0, %v601
    %v603 = vpop.f32.mrb[0].mxu0
    %v604 = vadd.f32 0.0, %v603
    %605 = vmatprep.mubr.f32.mxu0 0.0
    %606 = vmatmul.mubr.f32.gmra.mrb[0].mxu0 %v499
    %v607 = vpop.f32.mrb[0].mxu0
    %v608 = vadd.f32 0.0, %v607
    %v609 = vpop.f32.mrb[0].mxu0
    %v610 = vadd.f32 0.0, %v609
    %611 = vmatprep.mubr.f32.mxu0 0.0
    %612 = vmatmul.mubr.f32.gmra.mrb[0].mxu0 %v501
    %v613 = vpop.f32.mrb[0].mxu0
    %v614 = vadd.f32 0.0, %v613
    %v615 = vpop.f32.mrb[0].mxu0
    %v616 = vadd.f32 0.0, %v615
    %617 = vmatprep.mubr.f32.mxu0 0.0
    %618 = vmatmul.mubr.f32.gmra.mrb[0].mxu0 %v503
    %v619 = vpop.f32.mrb[0].mxu0
    %v620 = vadd.f32 0.0, %v619
    %v621 = vpop.f32.mrb[0].mxu0
    %v622 = vadd.f32 0.0, %v621
    %623 = vdwg.mxu0
    %v624 = vadd.f32 %v416, %v578
    %v625 = vadd.f32 %v418, %v580
    %v626 = vadd.f32 %v422, %v584
    %v627 = vadd.f32 %v424, %v586
    %v628 = vadd.f32 %v428, %v590
    %v629 = vadd.f32 %v430, %v592
    %v630 = vadd.f32 %v434, %v596
    %v631 = vadd.f32 %v436, %v598
    %v632 = vadd.f32 %v440, %v602
    %v633 = vadd.f32 %v442, %v604
    %v634 = vadd.f32 %v446, %v608
    %v635 = vadd.f32 %v448, %v610
    %v636 = vadd.f32 %v452, %v614
    %v637 = vadd.f32 %v454, %v616
    %v638 = vadd.f32 %v458, %v620
    %v639 = vadd.f32 %v460, %v622
    %s640 = scalar_lea.vmem %s1, 192
    %v641 = vld [vmem:[%s640] sm:$0xff]
    %v642 = vld [vmem:[%s640 + $0x8] sm:$0xff]
    %v643 = vld [vmem:[%s640 + $0x10] sm:$0xff]
    %v644 = vld [vmem:[%s640 + $0x18] sm:$0xff]
    %v645 = vld [vmem:[%s640 + $0x20] sm:$0xff]
    %v646 = vld [vmem:[%s640 + $0x28] sm:$0xff]
    %v647 = vld [vmem:[%s640 + $0x30] sm:$0xf]
    %v648 = vld [vmem:[%s640 + $0x38] sm:$0xf]
    %vm649 = vcmask 1044480
    %v650 = vrot.slane %v137, 3
    %v651 = vrot.slane %v138, 3
    %v652 = vsel %vm649, %v650, %v651
    %v653 = vrot.slane %v139, 3
    %v654 = vsel %vm649, %v651, %v653
    %v655 = vrot.slane %v140, 3
    %v656 = vsel %vm649, %v653, %v655
    %v657 = vrot.slane %v141, 3
    %v658 = vsel %vm649, %v655, %v657
    %v659 = vrot.slane %v142, 3
    %v660 = vsel %vm649, %v657, %v659
    %v661 = vrot.slane %v143, 3
    %v662 = vsel %vm649, %v659, %v661
    %v663 = vrot.slane %v144, 3
    %v664 = vsel %vm649, %v661, %v663
    %v665 = vrot.slane %v145, 3
    %v666 = vsel %vm649, %v663, %v665
    %v667 = vsel %vm190, %v652, 0
    %v669 = vsel %vm190, %v654, 0
    %v671 = vsel %vm190, %v656, 0
    %v673 = vsel %vm190, %v658, 0
    %v675 = vsel %vm190, %v660, 0
    %v677 = vsel %vm190, %v662, 0
    %v679 = vsel %vm190, %v664, 0
    %v681 = vsel %vm190, %v666, 0
    %v684 = vsel %vm207, %v647, 0
    %v687 = vsel %vm207, %v648, 0
    %689 = vmatprep.subr.mxu0 %v642
    %690 = vmatpush1.msra.mxu0 %v641
    %691 = vmatprep.subr.mxu0 %v644
    %692 = vmatpush1.msra.mxu0 %v643
    %693 = vmatprep.subr.mxu0 %v646
    %694 = vmatpush1.msra.mxu0 %v645
    %695 = vmatprep.subr.mxu0 %v687
    %696 = vmatpush1.msra.mxu0 %v684
    %697 = vmatprep.subr.mxu0 0.0
    %698 = vmatpush1.msra.mxu0 0.0
    %699 = vmatprep.subr.mxu0 0.0
    %700 = vmatpush1.msra.mxu0 0.0
    %701 = vmatprep.subr.mxu0 0.0
    %702 = vmatpush1.msra.mxu0 0.0
    %703 = vmatprep.subr.mxu0 0.0
    %704 = vmatpush1.msra.mxu0 0.0
    %705 = vmatprep.subr.mxu0 0.0
    %706 = vmatpush1.msra.mxu0 0.0
    %707 = vmatprep.subr.mxu0 0.0
    %708 = vmatpush1.msra.mxu0 0.0
    %709 = vmatprep.subr.mxu0 0.0
    %710 = vmatpush1.msra.mxu0 0.0
    %711 = vmatprep.subr.mxu0 0.0
    %712 = vmatpush1.msra.mxu0 0.0
    %713 = vmatprep.subr.mxu0 0.0
    %714 = vmatpush1.msra.mxu0 0.0
    %715 = vmatprep.subr.mxu0 0.0
    %716 = vmatpush1.msra.mxu0 0.0
    %717 = vmatprep.subr.mxu0 0.0
    %718 = vmatpush1.msra.mxu0 0.0
    %719 = vmatprep.subr.mxu0 0.0
    %720 = vmatpush1.msra.mxu0 0.0
    %721 = vmatprep.subr.mxu0 0.0
    %722 = vmatpush1.msra.mxu0 0.0
    %723 = vmatprep.subr.mxu0 0.0
    %724 = vmatpush1.msra.mxu0 0.0
    %725 = vmatprep.subr.mxu0 0.0
    %726 = vmatpush1.msra.mxu0 0.0
    %727 = vmatprep.subr.mxu0 0.0
    %728 = vmatpush1.msra.mxu0 0.0
    %729 = vmatprep.subr.mxu0 0.0
    %730 = vmatpush1.msra.mxu0 0.0
    %731 = vmatprep.subr.mxu0 0.0
    %732 = vmatpush1.msra.mxu0 0.0
    %733 = vmatprep.subr.mxu0 0.0
    %734 = vmatpush1.msra.mxu0 0.0
    %735 = vmatprep.subr.mxu0 0.0
    %736 = vmatpush1.msra.mxu0 0.0
    %737 = vmatprep.subr.mxu0 0.0
    %738 = vmatpush1.msra.mxu0 0.0
    %739 = vmatprep.subr.mxu0 0.0
    %740 = vmatpush1.msra.mxu0 0.0
    %741 = vmatprep.subr.mxu0 0.0
    %742 = vmatpush1.msra.mxu0 0.0
    %743 = vmatprep.subr.mxu0 0.0
    %744 = vmatpush1.msra.mxu0 0.0
    %745 = vmatprep.subr.mxu0 0.0
    %746 = vmatpush1.msra.mxu0 0.0
    %747 = vmatprep.subr.mxu0 0.0
    %748 = vmatpush1.msra.mxu0 0.0
    %749 = vmatprep.subr.mxu0 0.0
    %750 = vmatpush1.msra.mxu0 0.0
    %751 = vmatprep.subr.mxu0 0.0
    %752 = vmatpush1.msra.mxu0 0.0
    %753 = vmatprep.mubr.f32.mxu0 0.0
    %754 = vmatmul.mubr.f32.gmra.mrb[0].mxu0 %v667
    %v755 = vpop.f32.mrb[0].mxu0
    %v756 = vadd.f32 0.0, %v755
    %v757 = vpop.f32.mrb[0].mxu0
    %v758 = vadd.f32 0.0, %v757
    %759 = vmatprep.mubr.f32.mxu0 0.0
    %760 = vmatmul.mubr.f32.gmra.mrb[0].mxu0 %v669
    %v761 = vpop.f32.mrb[0].mxu0
    %v762 = vadd.f32 0.0, %v761
    %v763 = vpop.f32.mrb[0].mxu0
    %v764 = vadd.f32 0.0, %v763
    %765 = vmatprep.mubr.f32.mxu0 0.0
    %766 = vmatmul.mubr.f32.gmra.mrb[0].mxu0 %v671
    %v767 = vpop.f32.mrb[0].mxu0
    %v768 = vadd.f32 0.0, %v767
    %v769 = vpop.f32.mrb[0].mxu0
    %v770 = vadd.f32 0.0, %v769
    %771 = vmatprep.mubr.f32.mxu0 0.0
    %772 = vmatmul.mubr.f32.gmra.mrb[0].mxu0 %v673
    %v773 = vpop.f32.mrb[0].mxu0
    %v774 = vadd.f32 0.0, %v773
    %v775 = vpop.f32.mrb[0].mxu0
    %v776 = vadd.f32 0.0, %v775
    %777 = vmatprep.mubr.f32.mxu0 0.0
    %778 = vmatmul.mubr.f32.gmra.mrb[0].mxu0 %v675
    %v779 = vpop.f32.mrb[0].mxu0
    %v780 = vadd.f32 0.0, %v779
    %v781 = vpop.f32.mrb[0].mxu0
    %v782 = vadd.f32 0.0, %v781
    %783 = vmatprep.mubr.f32.mxu0 0.0
    %784 = vmatmul.mubr.f32.gmra.mrb[0].mxu0 %v677
    %v785 = vpop.f32.mrb[0].mxu0
    %v786 = vadd.f32 0.0, %v785
    %v787 = vpop.f32.mrb[0].mxu0
    %v788 = vadd.f32 0.0, %v787
    %789 = vmatprep.mubr.f32.mxu0 0.0
    %790 = vmatmul.mubr.f32.gmra.mrb[0].mxu0 %v679
    %v791 = vpop.f32.mrb[0].mxu0
    %v792 = vadd.f32 0.0, %v791
    %v793 = vpop.f32.mrb[0].mxu0
    %v794 = vadd.f32 0.0, %v793
    %795 = vmatprep.mubr.f32.mxu0 0.0
    %796 = vmatmul.mubr.f32.gmra.mrb[0].mxu0 %v681
    %v797 = vpop.f32.mrb[0].mxu0
    %v798 = vadd.f32 0.0, %v797
    %v799 = vpop.f32.mrb[0].mxu0
    %v800 = vadd.f32 0.0, %v799
    %801 = vdwg.mxu0
    %v802 = vadd.f32 %v624, %v756
    %v803 = vadd.f32 %v625, %v758
    %v804 = vadd.f32 %v626, %v762
    %v805 = vadd.f32 %v627, %v764
    %v806 = vadd.f32 %v628, %v768
    %v807 = vadd.f32 %v629, %v770
    %v808 = vadd.f32 %v630, %v774
    %v809 = vadd.f32 %v631, %v776
    %v810 = vadd.f32 %v632, %v780
    %v811 = vadd.f32 %v633, %v782
    %v812 = vadd.f32 %v634, %v786
    %v813 = vadd.f32 %v635, %v788
    %v814 = vadd.f32 %v636, %v792
    %v815 = vadd.f32 %v637, %v794
    %v816 = vadd.f32 %v638, %v798
    %v817 = vadd.f32 %v639, %v800
    %s818 = scalar_lea.vmem %s1, 256
    %v819 = vld [vmem:[%s818] sm:$0xff]
    %v820 = vld [vmem:[%s818 + $0x8] sm:$0xff]
    %v821 = vld [vmem:[%s818 + $0x10] sm:$0xff]
    %v822 = vld [vmem:[%s818 + $0x18] sm:$0xff]
    %v823 = vld [vmem:[%s818 + $0x20] sm:$0xff]
    %v824 = vld [vmem:[%s818 + $0x28] sm:$0xff]
    %v825 = vld [vmem:[%s818 + $0x30] sm:$0xf]
    %v826 = vld [vmem:[%s818 + $0x38] sm:$0xf]
    %v827 = vrot.slane %v137, 4
    %v828 = vrot.slane %v138, 4
    %v829 = vsel %vm207, %v827, %v828
    %v830 = vrot.slane %v139, 4
    %v831 = vsel %vm207, %v828, %v830
    %v832 = vrot.slane %v140, 4
    %v833 = vsel %vm207, %v830, %v832
    %v834 = vrot.slane %v141, 4
    %v835 = vsel %vm207, %v832, %v834
    %v836 = vrot.slane %v142, 4
    %v837 = vsel %vm207, %v834, %v836
    %v838 = vrot.slane %v143, 4
    %v839 = vsel %vm207, %v836, %v838
    %v840 = vrot.slane %v144, 4
    %v841 = vsel %vm207, %v838, %v840
    %v842 = vrot.slane %v145, 4
    %v843 = vsel %vm207, %v840, %v842
    %v844 = vsel %vm190, %v829, 0
    %v846 = vsel %vm190, %v831, 0
    %v848 = vsel %vm190, %v833, 0
    %v850 = vsel %vm190, %v835, 0
    %v852 = vsel %vm190, %v837, 0
    %v854 = vsel %vm190, %v839, 0
    %v856 = vsel %vm190, %v841, 0
    %v858 = vsel %vm190, %v843, 0
    %v861 = vsel %vm207, %v825, 0
    %v864 = vsel %vm207, %v826, 0
    %866 = vmatprep.subr.mxu0 %v820
    %867 = vmatpush1.msra.mxu0 %v819
    %868 = vmatprep.subr.mxu0 %v822
    %869 = vmatpush1.msra.mxu0 %v821
    %870 = vmatprep.subr.mxu0 %v824
    %871 = vmatpush1.msra.mxu0 %v823
    %872 = vmatprep.subr.mxu0 %v864
    %873 = vmatpush1.msra.mxu0 %v861
    %874 = vmatprep.subr.mxu0 0.0
    %875 = vmatpush1.msra.mxu0 0.0
    %876 = vmatprep.subr.mxu0 0.0
    %877 = vmatpush1.msra.mxu0 0.0
    %878 = vmatprep.subr.mxu0 0.0
    %879 = vmatpush1.msra.mxu0 0.0
    %880 = vmatprep.subr.mxu0 0.0
    %881 = vmatpush1.msra.mxu0 0.0
    %882 = vmatprep.subr.mxu0 0.0
    %883 = vmatpush1.msra.mxu0 0.0
    %884 = vmatprep.subr.mxu0 0.0
    %885 = vmatpush1.msra.mxu0 0.0
    %886 = vmatprep.subr.mxu0 0.0
    %887 = vmatpush1.msra.mxu0 0.0
    %888 = vmatprep.subr.mxu0 0.0
    %889 = vmatpush1.msra.mxu0 0.0
    %890 = vmatprep.subr.mxu0 0.0
    %891 = vmatpush1.msra.mxu0 0.0
    %892 = vmatprep.subr.mxu0 0.0
    %893 = vmatpush1.msra.mxu0 0.0
    %894 = vmatprep.subr.mxu0 0.0
    %895 = vmatpush1.msra.mxu0 0.0
    %896 = vmatprep.subr.mxu0 0.0
    %897 = vmatpush1.msra.mxu0 0.0
    %898 = vmatprep.subr.mxu0 0.0
    %899 = vmatpush1.msra.mxu0 0.0
    %900 = vmatprep.subr.mxu0 0.0
    %901 = vmatpush1.msra.mxu0 0.0
    %902 = vmatprep.subr.mxu0 0.0
    %903 = vmatpush1.msra.mxu0 0.0
    %904 = vmatprep.subr.mxu0 0.0
    %905 = vmatpush1.msra.mxu0 0.0
    %906 = vmatprep.subr.mxu0 0.0
    %907 = vmatpush1.msra.mxu0 0.0
    %908 = vmatprep.subr.mxu0 0.0
    %909 = vmatpush1.msra.mxu0 0.0
    %910 = vmatprep.subr.mxu0 0.0
    %911 = vmatpush1.msra.mxu0 0.0
    %912 = vmatprep.subr.mxu0 0.0
    %913 = vmatpush1.msra.mxu0 0.0
    %914 = vmatprep.subr.mxu0 0.0
    %915 = vmatpush1.msra.mxu0 0.0
    %916 = vmatprep.subr.mxu0 0.0
    %917 = vmatpush1.msra.mxu0 0.0
    %918 = vmatprep.subr.mxu0 0.0
    %919 = vmatpush1.msra.mxu0 0.0
    %920 = vmatprep.subr.mxu0 0.0
    %921 = vmatpush1.msra.mxu0 0.0
    %922 = vmatprep.subr.mxu0 0.0
    %923 = vmatpush1.msra.mxu0 0.0
    %924 = vmatprep.subr.mxu0 0.0
    %925 = vmatpush1.msra.mxu0 0.0
    %926 = vmatprep.subr.mxu0 0.0
    %927 = vmatpush1.msra.mxu0 0.0
    %928 = vmatprep.subr.mxu0 0.0
    %929 = vmatpush1.msra.mxu0 0.0
    %930 = vmatprep.mubr.f32.mxu0 0.0
    %931 = vmatmul.mubr.f32.gmra.mrb[0].mxu0 %v844
    %v932 = vpop.f32.mrb[0].mxu0
    %v933 = vadd.f32 0.0, %v932
    %v934 = vpop.f32.mrb[0].mxu0
    %v935 = vadd.f32 0.0, %v934
    %936 = vmatprep.mubr.f32.mxu0 0.0
    %937 = vmatmul.mubr.f32.gmra.mrb[0].mxu0 %v846
    %v938 = vpop.f32.mrb[0].mxu0
    %v939 = vadd.f32 0.0, %v938
    %v940 = vpop.f32.mrb[0].mxu0
    %v941 = vadd.f32 0.0, %v940
    %942 = vmatprep.mubr.f32.mxu0 0.0
    %943 = vmatmul.mubr.f32.gmra.mrb[0].mxu0 %v848
    %v944 = vpop.f32.mrb[0].mxu0
    %v945 = vadd.f32 0.0, %v944
    %v946 = vpop.f32.mrb[0].mxu0
    %v947 = vadd.f32 0.0, %v946
    %948 = vmatprep.mubr.f32.mxu0 0.0
    %949 = vmatmul.mubr.f32.gmra.mrb[0].mxu0 %v850
    %v950 = vpop.f32.mrb[0].mxu0
    %v951 = vadd.f32 0.0, %v950
    %v952 = vpop.f32.mrb[0].mxu0
    %v953 = vadd.f32 0.0, %v952
    %954 = vmatprep.mubr.f32.mxu0 0.0
    %955 = vmatmul.mubr.f32.gmra.mrb[0].mxu0 %v852
    %v956 = vpop.f32.mrb[0].mxu0
    %v957 = vadd.f32 0.0, %v956
    %v958 = vpop.f32.mrb[0].mxu0
    %v959 = vadd.f32 0.0, %v958
    %960 = vmatprep.mubr.f32.mxu0 0.0
    %961 = vmatmul.mubr.f32.gmra.mrb[0].mxu0 %v854
    %v962 = vpop.f32.mrb[0].mxu0
    %v963 = vadd.f32 0.0, %v962
    %v964 = vpop.f32.mrb[0].mxu0
    %v965 = vadd.f32 0.0, %v964
    %966 = vmatprep.mubr.f32.mxu0 0.0
    %967 = vmatmul.mubr.f32.gmra.mrb[0].mxu0 %v856
    %v968 = vpop.f32.mrb[0].mxu0
    %v969 = vadd.f32 0.0, %v968
    %v970 = vpop.f32.mrb[0].mxu0
    %v971 = vadd.f32 0.0, %v970
    %972 = vmatprep.mubr.f32.mxu0 0.0
    %973 = vmatmul.mubr.f32.gmra.mrb[0].mxu0 %v858
    %v974 = vpop.f32.mrb[0].mxu0
    %v975 = vadd.f32 0.0, %v974
    %v976 = vpop.f32.mrb[0].mxu0
    %v977 = vadd.f32 0.0, %v976
    %978 = vdwg.mxu0
    %v979 = vadd.f32 %v802, %v933
    %v980 = vadd.f32 %v803, %v935
    %v981 = vadd.f32 %v804, %v939
    %v982 = vadd.f32 %v805, %v941
    %v983 = vadd.f32 %v806, %v945
    %v984 = vadd.f32 %v807, %v947
    %v985 = vadd.f32 %v808, %v951
    %v986 = vadd.f32 %v809, %v953
    %v987 = vadd.f32 %v810, %v957
    %v988 = vadd.f32 %v811, %v959
    %v989 = vadd.f32 %v812, %v963
    %v990 = vadd.f32 %v813, %v965
    %v991 = vadd.f32 %v814, %v969
    %v992 = vadd.f32 %v815, %v971
    %v993 = vadd.f32 %v816, %v975
    %v994 = vadd.f32 %v817, %v977
    %v996 = vlaneseq
    %v997 = vshrl.u32 %v996, 7
    %v998 = vsub.s32 0, %v997
    %v999 = vrot.slane %v51, %v998
    %v1000 = vlaneseq
    %v1001 = vshrl.u32 %v1000, 7
    %v1002 = vsub.s32 1, %v1001
    %v1003 = vrot.slane %v51, %v1002
    %v1006 = vadd.f32 %v979, %v999
    %v1007 = vadd.f32 %v980, %v1003
    %v1008 = vadd.f32 %v981, %v999
    %v1009 = vadd.f32 %v982, %v1003
    %v1010 = vadd.f32 %v983, %v999
    %v1011 = vadd.f32 %v984, %v1003
    %v1012 = vadd.f32 %v985, %v999
    %v1013 = vadd.f32 %v986, %v1003
    %v1014 = vadd.f32 %v987, %v999
    %v1015 = vadd.f32 %v988, %v1003
    %v1016 = vadd.f32 %v989, %v999
    %v1017 = vadd.f32 %v990, %v1003
    %v1018 = vadd.f32 %v991, %v999
    %v1019 = vadd.f32 %v992, %v1003
    %v1020 = vadd.f32 %v993, %v999
    %v1021 = vadd.f32 %v994, %v1003
    %v1022 = vmax.f32 %v1006, 0.0
    %v1023 = vmax.f32 %v1007, 0.0
    %v1024 = vmax.f32 %v1008, 0.0
    %v1025 = vmax.f32 %v1009, 0.0
    %v1026 = vmax.f32 %v1010, 0.0
    %v1027 = vmax.f32 %v1011, 0.0
    %v1028 = vmax.f32 %v1012, 0.0
    %v1029 = vmax.f32 %v1013, 0.0
    %v1030 = vmax.f32 %v1014, 0.0
    %v1031 = vmax.f32 %v1015, 0.0
    %v1032 = vmax.f32 %v1016, 0.0
    %v1033 = vmax.f32 %v1017, 0.0
    %v1034 = vmax.f32 %v1018, 0.0
    %v1035 = vmax.f32 %v1019, 0.0
    %v1036 = vmax.f32 %v1020, 0.0
    %v1037 = vmax.f32 %v1021, 0.0
    %vm1038 = vcmask 523264
    %v1040 = vsel %vm1038, %v53, 0
    %v1043 = vsel %vm1038, %v54, 0
    %v1046 = vsel %vm1038, %v55, 0
    %v1049 = vsel %vm1038, %v56, 0
    %1051 = vmatprep.subr.mxu0 %v1023
    %1052 = vmatpush1.msra.mxu0 %v1022
    %1053 = vmatprep.subr.mxu0 %v1025
    %1054 = vmatpush1.msra.mxu0 %v1024
    %1055 = vmatprep.subr.mxu0 %v1027
    %1056 = vmatpush1.msra.mxu0 %v1026
    %1057 = vmatprep.subr.mxu0 %v1029
    %1058 = vmatpush1.msra.mxu0 %v1028
    %1059 = vmatprep.subr.mxu0 %v1031
    %1060 = vmatpush1.msra.mxu0 %v1030
    %1061 = vmatprep.subr.mxu0 %v1033
    %1062 = vmatpush1.msra.mxu0 %v1032
    %1063 = vmatprep.subr.mxu0 %v1035
    %1064 = vmatpush1.msra.mxu0 %v1034
    %1065 = vmatprep.subr.mxu0 %v1037
    %1066 = vmatpush1.msra.mxu0 %v1036
    %1067 = vmatprep.subr.mxu0 0.0
    %1068 = vmatpush1.msra.mxu0 0.0
    %1069 = vmatprep.subr.mxu0 0.0
    %1070 = vmatpush1.msra.mxu0 0.0
    %1071 = vmatprep.subr.mxu0 0.0
    %1072 = vmatpush1.msra.mxu0 0.0
    %1073 = vmatprep.subr.mxu0 0.0
    %1074 = vmatpush1.msra.mxu0 0.0
    %1075 = vmatprep.subr.mxu0 0.0
    %1076 = vmatpush1.msra.mxu0 0.0
    %1077 = vmatprep.subr.mxu0 0.0
    %1078 = vmatpush1.msra.mxu0 0.0
    %1079 = vmatprep.subr.mxu0 0.0
    %1080 = vmatpush1.msra.mxu0 0.0
    %1081 = vmatprep.subr.mxu0 0.0
    %1082 = vmatpush1.msra.mxu0 0.0
    %1083 = vmatprep.subr.mxu0 0.0
    %1084 = vmatpush1.msra.mxu0 0.0
    %1085 = vmatprep.subr.mxu0 0.0
    %1086 = vmatpush1.msra.mxu0 0.0
    %1087 = vmatprep.subr.mxu0 0.0
    %1088 = vmatpush1.msra.mxu0 0.0
    %1089 = vmatprep.subr.mxu0 0.0
    %1090 = vmatpush1.msra.mxu0 0.0
    %1091 = vmatprep.subr.mxu0 0.0
    %1092 = vmatpush1.msra.mxu0 0.0
    %1093 = vmatprep.subr.mxu0 0.0
    %1094 = vmatpush1.msra.mxu0 0.0
    %1095 = vmatprep.subr.mxu0 0.0
    %1096 = vmatpush1.msra.mxu0 0.0
    %1097 = vmatprep.subr.mxu0 0.0
    %1098 = vmatpush1.msra.mxu0 0.0
    %1099 = vmatprep.subr.mxu0 0.0
    %1100 = vmatpush1.msra.mxu0 0.0
    %1101 = vmatprep.subr.mxu0 0.0
    %1102 = vmatpush1.msra.mxu0 0.0
    %1103 = vmatprep.subr.mxu0 0.0
    %1104 = vmatpush1.msra.mxu0 0.0
    %1105 = vmatprep.subr.mxu0 0.0
    %1106 = vmatpush1.msra.mxu0 0.0
    %1107 = vmatprep.subr.mxu0 0.0
    %1108 = vmatpush1.msra.mxu0 0.0
    %1109 = vmatprep.subr.mxu0 0.0
    %1110 = vmatpush1.msra.mxu0 0.0
    %1111 = vmatprep.subr.mxu0 0.0
    %1112 = vmatpush1.msra.mxu0 0.0
    %1113 = vmatprep.subr.mxu0 0.0
    %1114 = vmatpush1.msra.mxu0 0.0
    %1115 = vmatprep.mubr.f32.mxu0 0.0
    %1116 = vmatmul.mubr.f32.gmra.mrb[0].mxu0 %v1040
    %v1117 = vpop.f32.mrb[0].mxu0
    %v1118 = vadd.f32 0.0, %v1117
    %v1119 = vpop.f32.mrb[0].mxu0
    %v1120 = vadd.f32 0.0, %v1119
    %1121 = vmatprep.mubr.f32.mxu0 0.0
    %1122 = vmatmul.mubr.f32.gmra.mrb[0].mxu0 %v1043
    %v1123 = vpop.f32.mrb[0].mxu0
    %v1124 = vadd.f32 0.0, %v1123
    %v1125 = vpop.f32.mrb[0].mxu0
    %v1126 = vadd.f32 0.0, %v1125
    %1127 = vmatprep.mubr.f32.mxu0 0.0
    %1128 = vmatmul.mubr.f32.gmra.mrb[0].mxu0 %v1046
    %v1129 = vpop.f32.mrb[0].mxu0
    %v1130 = vadd.f32 0.0, %v1129
    %v1131 = vpop.f32.mrb[0].mxu0
    %v1132 = vadd.f32 0.0, %v1131
    %1133 = vmatprep.mubr.f32.mxu0 0.0
    %1134 = vmatmul.mubr.f32.gmra.mrb[0].mxu0 %v1049
    %v1135 = vpop.f32.mrb[0].mxu0
    %v1136 = vadd.f32 0.0, %v1135
    %v1137 = vpop.f32.mrb[0].mxu0
    %v1138 = vadd.f32 0.0, %v1137
    %1139 = vdwg.mxu0
    %v1141 = vsel %vm1038, %v58, 0
    %v1144 = vsel %vm1038, %v59, 0
    %v1147 = vsel %vm1038, %v60, 0
    %v1150 = vsel %vm1038, %v61, 0
    %1152 = vmatprep.subr.mxu0 %v1023
    %1153 = vmatpush1.msra.mxu0 %v1022
    %1154 = vmatprep.subr.mxu0 %v1025
    %1155 = vmatpush1.msra.mxu0 %v1024
    %1156 = vmatprep.subr.mxu0 %v1027
    %1157 = vmatpush1.msra.mxu0 %v1026
    %1158 = vmatprep.subr.mxu0 %v1029
    %1159 = vmatpush1.msra.mxu0 %v1028
    %1160 = vmatprep.subr.mxu0 %v1031
    %1161 = vmatpush1.msra.mxu0 %v1030
    %1162 = vmatprep.subr.mxu0 %v1033
    %1163 = vmatpush1.msra.mxu0 %v1032
    %1164 = vmatprep.subr.mxu0 %v1035
    %1165 = vmatpush1.msra.mxu0 %v1034
    %1166 = vmatprep.subr.mxu0 %v1037
    %1167 = vmatpush1.msra.mxu0 %v1036
    %1168 = vmatprep.subr.mxu0 0.0
    %1169 = vmatpush1.msra.mxu0 0.0
    %1170 = vmatprep.subr.mxu0 0.0
    %1171 = vmatpush1.msra.mxu0 0.0
    %1172 = vmatprep.subr.mxu0 0.0
    %1173 = vmatpush1.msra.mxu0 0.0
    %1174 = vmatprep.subr.mxu0 0.0
    %1175 = vmatpush1.msra.mxu0 0.0
    %1176 = vmatprep.subr.mxu0 0.0
    %1177 = vmatpush1.msra.mxu0 0.0
    %1178 = vmatprep.subr.mxu0 0.0
    %1179 = vmatpush1.msra.mxu0 0.0
    %1180 = vmatprep.subr.mxu0 0.0
    %1181 = vmatpush1.msra.mxu0 0.0
    %1182 = vmatprep.subr.mxu0 0.0
    %1183 = vmatpush1.msra.mxu0 0.0
    %1184 = vmatprep.subr.mxu0 0.0
    %1185 = vmatpush1.msra.mxu0 0.0
    %1186 = vmatprep.subr.mxu0 0.0
    %1187 = vmatpush1.msra.mxu0 0.0
    %1188 = vmatprep.subr.mxu0 0.0
    %1189 = vmatpush1.msra.mxu0 0.0
    %1190 = vmatprep.subr.mxu0 0.0
    %1191 = vmatpush1.msra.mxu0 0.0
    %1192 = vmatprep.subr.mxu0 0.0
    %1193 = vmatpush1.msra.mxu0 0.0
    %1194 = vmatprep.subr.mxu0 0.0
    %1195 = vmatpush1.msra.mxu0 0.0
    %1196 = vmatprep.subr.mxu0 0.0
    %1197 = vmatpush1.msra.mxu0 0.0
    %1198 = vmatprep.subr.mxu0 0.0
    %1199 = vmatpush1.msra.mxu0 0.0
    %1200 = vmatprep.subr.mxu0 0.0
    %1201 = vmatpush1.msra.mxu0 0.0
    %1202 = vmatprep.subr.mxu0 0.0
    %1203 = vmatpush1.msra.mxu0 0.0
    %1204 = vmatprep.subr.mxu0 0.0
    %1205 = vmatpush1.msra.mxu0 0.0
    %1206 = vmatprep.subr.mxu0 0.0
    %1207 = vmatpush1.msra.mxu0 0.0
    %1208 = vmatprep.subr.mxu0 0.0
    %1209 = vmatpush1.msra.mxu0 0.0
    %1210 = vmatprep.subr.mxu0 0.0
    %1211 = vmatpush1.msra.mxu0 0.0
    %1212 = vmatprep.subr.mxu0 0.0
    %1213 = vmatpush1.msra.mxu0 0.0
    %1214 = vmatprep.subr.mxu0 0.0
    %1215 = vmatpush1.msra.mxu0 0.0
    %1216 = vmatprep.mubr.f32.mxu0 0.0
    %1217 = vmatmul.mubr.f32.gmra.mrb[0].mxu0 %v1141
    %v1218 = vpop.f32.mrb[0].mxu0
    %v1219 = vadd.f32 0.0, %v1218
    %v1220 = vpop.f32.mrb[0].mxu0
    %v1221 = vadd.f32 0.0, %v1220
    %1222 = vmatprep.mubr.f32.mxu0 0.0
    %1223 = vmatmul.mubr.f32.gmra.mrb[0].mxu0 %v1144
    %v1224 = vpop.f32.mrb[0].mxu0
    %v1225 = vadd.f32 0.0, %v1224
    %v1226 = vpop.f32.mrb[0].mxu0
    %v1227 = vadd.f32 0.0, %v1226
    %1228 = vmatprep.mubr.f32.mxu0 0.0
    %1229 = vmatmul.mubr.f32.gmra.mrb[0].mxu0 %v1147
    %v1230 = vpop.f32.mrb[0].mxu0
    %v1231 = vadd.f32 0.0, %v1230
    %v1232 = vpop.f32.mrb[0].mxu0
    %v1233 = vadd.f32 0.0, %v1232
    %1234 = vmatprep.mubr.f32.mxu0 0.0
    %1235 = vmatmul.mubr.f32.gmra.mrb[0].mxu0 %v1150
    %v1236 = vpop.f32.mrb[0].mxu0
    %v1237 = vadd.f32 0.0, %v1236
    %v1238 = vpop.f32.mrb[0].mxu0
    %v1239 = vadd.f32 0.0, %v1238
    %1240 = vdwg.mxu0
    %v1241 = vmax.f32 %v1118, %v1219
    %v1242 = vmax.f32 %v1120, %v1221
    %v1243 = vmax.f32 %v1124, %v1225
    %v1244 = vmax.f32 %v1126, %v1227
    %v1245 = vmax.f32 %v1130, %v1231
    %v1246 = vmax.f32 %v1132, %v1233
    %v1247 = vmax.f32 %v1136, %v1237
    %v1248 = vmax.f32 %v1138, %v1239
    %vm1249 = vcmask 130048
    %v1251 = vsel %vm1249, %v1242, 0
    %v1254 = vsel %vm1249, %v1244, 0
    %v1257 = vsel %vm1249, %v1246, 0
    %v1260 = vsel %vm1249, %v1248, 0
    %1262 = vmatprep.subr.mxu0 0.0
    %1263 = vmatpush1.msra.mxu0 %v62
    %1264 = vmatprep.subr.mxu0 0.0
    %1265 = vmatpush1.msra.mxu0 %v63
    %1266 = vmatprep.subr.mxu0 0.0
    %1267 = vmatpush1.msra.mxu0 %v64
    %1268 = vmatprep.subr.mxu0 0.0
    %1269 = vmatpush1.msra.mxu0 %v65
    %1270 = vmatprep.subr.mxu0 0.0
    %1271 = vmatpush1.msra.mxu0 %v66
    %1272 = vmatprep.subr.mxu0 0.0
    %1273 = vmatpush1.msra.mxu0 %v67
    %1274 = vmatprep.subr.mxu0 0.0
    %1275 = vmatpush1.msra.mxu0 %v68
    %1276 = vmatprep.subr.mxu0 0.0
    %1277 = vmatpush1.msra.mxu0 %v69
    %1278 = vmatprep.subr.mxu0 0.0
    %1279 = vmatpush1.msra.mxu0 %v70
    %1280 = vmatprep.subr.mxu0 0.0
    %1281 = vmatpush1.msra.mxu0 %v71
    %1282 = vmatprep.subr.mxu0 0.0
    %1283 = vmatpush1.msra.mxu0 %v72
    %1284 = vmatprep.subr.mxu0 0.0
    %1285 = vmatpush1.msra.mxu0 %v73
    %1286 = vmatprep.subr.mxu0 0.0
    %1287 = vmatpush1.msra.mxu0 %v74
    %1288 = vmatprep.subr.mxu0 0.0
    %1289 = vmatpush1.msra.mxu0 %v75
    %1290 = vmatprep.subr.mxu0 0.0
    %1291 = vmatpush1.msra.mxu0 %v76
    %1292 = vmatprep.subr.mxu0 0.0
    %1293 = vmatpush1.msra.mxu0 %v77
    %1294 = vmatprep.subr.mxu0 0.0
    %1295 = vmatpush1.msra.mxu0 %v78
    %1296 = vmatprep.subr.mxu0 0.0
    %1297 = vmatpush1.msra.mxu0 %v79
    %1298 = vmatprep.subr.mxu0 0.0
    %1299 = vmatpush1.msra.mxu0 0.0
    %1300 = vmatprep.subr.mxu0 0.0
    %1301 = vmatpush1.msra.mxu0 0.0
    %1302 = vmatprep.subr.mxu0 0.0
    %1303 = vmatpush1.msra.mxu0 0.0
    %1304 = vmatprep.subr.mxu0 0.0
    %1305 = vmatpush1.msra.mxu0 0.0
    %1306 = vmatprep.subr.mxu0 0.0
    %1307 = vmatpush1.msra.mxu0 0.0
    %1308 = vmatprep.subr.mxu0 0.0
    %1309 = vmatpush1.msra.mxu0 0.0
    %1310 = vmatprep.subr.mxu0 0.0
    %1311 = vmatpush1.msra.mxu0 0.0
    %1312 = vmatprep.subr.mxu0 0.0
    %1313 = vmatpush1.msra.mxu0 0.0
    %1314 = vmatprep.subr.mxu0 0.0
    %1315 = vmatpush1.msra.mxu0 0.0
    %1316 = vmatprep.subr.mxu0 0.0
    %1317 = vmatpush1.msra.mxu0 0.0
    %1318 = vmatprep.subr.mxu0 0.0
    %1319 = vmatpush1.msra.mxu0 0.0
    %1320 = vmatprep.subr.mxu0 0.0
    %1321 = vmatpush1.msra.mxu0 0.0
    %1322 = vmatprep.subr.mxu0 0.0
    %1323 = vmatpush1.msra.mxu0 0.0
    %1324 = vmatprep.subr.mxu0 0.0
    %1325 = vmatpush1.msra.mxu0 0.0
    %1326 = vmatprep.mubr.f32.mxu0 %v1251
    %1327 = vmatmul.mubr.f32.gmra.mrb[0].mxu0 %v1241
    %v1328 = vpop.f32.mrb[0].mxu0
    %v1329 = vadd.f32 0.0, %v1328
    %v1330 = vpop.f32.mrb[0].mxu0
    %1331 = vmatprep.mubr.f32.mxu0 %v1254
    %1332 = vmatmul.mubr.f32.gmra.mrb[0].mxu0 %v1243
    %v1333 = vpop.f32.mrb[0].mxu0
    %v1334 = vadd.f32 0.0, %v1333
    %v1335 = vpop.f32.mrb[0].mxu0
    %1336 = vmatprep.mubr.f32.mxu0 %v1257
    %1337 = vmatmul.mubr.f32.gmra.mrb[0].mxu0 %v1245
    %v1338 = vpop.f32.mrb[0].mxu0
    %v1339 = vadd.f32 0.0, %v1338
    %v1340 = vpop.f32.mrb[0].mxu0
    %1341 = vmatprep.mubr.f32.mxu0 %v1260
    %1342 = vmatmul.mubr.f32.gmra.mrb[0].mxu0 %v1247
    %v1343 = vpop.f32.mrb[0].mxu0
    %v1344 = vadd.f32 0.0, %v1343
    %v1345 = vpop.f32.mrb[0].mxu0
    %1346 = vdwg.mxu0
    %1347 = vmatprep.subr.mxu0 0.0
    %1348 = vmatpush1.msra.mxu0 %v81
    %1349 = vmatprep.subr.mxu0 0.0
    %1350 = vmatpush1.msra.mxu0 %v82
    %1351 = vmatprep.subr.mxu0 0.0
    %1352 = vmatpush1.msra.mxu0 %v83
    %1353 = vmatprep.subr.mxu0 0.0
    %1354 = vmatpush1.msra.mxu0 %v84
    %1355 = vmatprep.subr.mxu0 0.0
    %1356 = vmatpush1.msra.mxu0 %v85
    %1357 = vmatprep.subr.mxu0 0.0
    %1358 = vmatpush1.msra.mxu0 %v86
    %1359 = vmatprep.subr.mxu0 0.0
    %1360 = vmatpush1.msra.mxu0 %v87
    %1361 = vmatprep.subr.mxu0 0.0
    %1362 = vmatpush1.msra.mxu0 %v88
    %1363 = vmatprep.subr.mxu0 0.0
    %1364 = vmatpush1.msra.mxu0 %v89
    %1365 = vmatprep.subr.mxu0 0.0
    %1366 = vmatpush1.msra.mxu0 %v90
    %1367 = vmatprep.subr.mxu0 0.0
    %1368 = vmatpush1.msra.mxu0 %v91
    %1369 = vmatprep.subr.mxu0 0.0
    %1370 = vmatpush1.msra.mxu0 %v92
    %1371 = vmatprep.subr.mxu0 0.0
    %1372 = vmatpush1.msra.mxu0 %v93
    %1373 = vmatprep.subr.mxu0 0.0
    %1374 = vmatpush1.msra.mxu0 %v94
    %1375 = vmatprep.subr.mxu0 0.0
    %1376 = vmatpush1.msra.mxu0 %v95
    %1377 = vmatprep.subr.mxu0 0.0
    %1378 = vmatpush1.msra.mxu0 %v96
    %1379 = vmatprep.subr.mxu0 0.0
    %1380 = vmatpush1.msra.mxu0 %v97
    %1381 = vmatprep.subr.mxu0 0.0
    %1382 = vmatpush1.msra.mxu0 %v98
    %1383 = vmatprep.subr.mxu0 0.0
    %1384 = vmatpush1.msra.mxu0 0.0
    %1385 = vmatprep.subr.mxu0 0.0
    %1386 = vmatpush1.msra.mxu0 0.0
    %1387 = vmatprep.subr.mxu0 0.0
    %1388 = vmatpush1.msra.mxu0 0.0
    %1389 = vmatprep.subr.mxu0 0.0
    %1390 = vmatpush1.msra.mxu0 0.0
    %1391 = vmatprep.subr.mxu0 0.0
    %1392 = vmatpush1.msra.mxu0 0.0
    %1393 = vmatprep.subr.mxu0 0.0
    %1394 = vmatpush1.msra.mxu0 0.0
    %1395 = vmatprep.subr.mxu0 0.0
    %1396 = vmatpush1.msra.mxu0 0.0
    %1397 = vmatprep.subr.mxu0 0.0
    %1398 = vmatpush1.msra.mxu0 0.0
    %1399 = vmatprep.subr.mxu0 0.0
    %1400 = vmatpush1.msra.mxu0 0.0
    %1401 = vmatprep.subr.mxu0 0.0
    %1402 = vmatpush1.msra.mxu0 0.0
    %1403 = vmatprep.subr.mxu0 0.0
    %1404 = vmatpush1.msra.mxu0 0.0
    %1405 = vmatprep.subr.mxu0 0.0
    %1406 = vmatpush1.msra.mxu0 0.0
    %1407 = vmatprep.subr.mxu0 0.0
    %1408 = vmatpush1.msra.mxu0 0.0
    %1409 = vmatprep.subr.mxu0 0.0
    %1410 = vmatpush1.msra.mxu0 0.0
    %1411 = vmatprep.mubr.f32.mxu0 %v1251
    %1412 = vmatmul.mubr.f32.gmra.mrb[0].mxu0 %v1241
    %v1413 = vpop.f32.mrb[0].mxu0
    %v1414 = vadd.f32 0.0, %v1413
    %v1415 = vpop.f32.mrb[0].mxu0
    %1416 = vmatprep.mubr.f32.mxu0 %v1254
    %1417 = vmatmul.mubr.f32.gmra.mrb[0].mxu0 %v1243
    %v1418 = vpop.f32.mrb[0].mxu0
    %v1419 = vadd.f32 0.0, %v1418
    %v1420 = vpop.f32.mrb[0].mxu0
    %1421 = vmatprep.mubr.f32.mxu0 %v1257
    %1422 = vmatmul.mubr.f32.gmra.mrb[0].mxu0 %v1245
    %v1423 = vpop.f32.mrb[0].mxu0
    %v1424 = vadd.f32 0.0, %v1423
    %v1425 = vpop.f32.mrb[0].mxu0
    %1426 = vmatprep.mubr.f32.mxu0 %v1260
    %1427 = vmatmul.mubr.f32.gmra.mrb[0].mxu0 %v1247
    %v1428 = vpop.f32.mrb[0].mxu0
    %v1429 = vadd.f32 0.0, %v1428
    %v1430 = vpop.f32.mrb[0].mxu0
    %1431 = vdwg.mxu0
    %v1432 = vmax.f32 %v1329, %v1414
    %v1433 = vmax.f32 %v1334, %v1419
    %v1434 = vmax.f32 %v1339, %v1424
    %v1435 = vmax.f32 %v1344, %v1429
    %v1436 = vld [vmem:[%s5] sm:$0xff]
    %v1437 = vld [vmem:[%s5 + $0x8] sm:$0xff]
    %v1438 = vld [vmem:[%s5 + $0x10] sm:$0xff]
    %v1439 = vld [vmem:[%s5 + $0x18] sm:$0xff]
    %v1440 = vld [vmem:[%s5 + $0x20] sm:$0xff]
    %v1441 = vld [vmem:[%s5 + $0x28] sm:$0xff]
    %v1442 = vld [vmem:[%s5 + $0x30] sm:$0xff]
    %v1443 = vld [vmem:[%s5 + $0x38] sm:$0xff]
    %v1444 = vld [vmem:[%s5 + $0x40] sm:$0xff]
    %s1445 = scalar_lea.vmem %s5, 72
    %v1446 = vld [vmem:[%s1445] sm:$0xff]
    %v1447 = vld [vmem:[%s1445 + $0x8] sm:$0xff]
    %v1448 = vld [vmem:[%s1445 + $0x10] sm:$0xff]
    %v1449 = vld [vmem:[%s1445 + $0x18] sm:$0xff]
    %v1450 = vld [vmem:[%s1445 + $0x20] sm:$0xff]
    %v1451 = vld [vmem:[%s1445 + $0x28] sm:$0xff]
    %v1452 = vld [vmem:[%s1445 + $0x30] sm:$0xff]
    %v1453 = vld [vmem:[%s1445 + $0x38] sm:$0xff]
    %v1454 = vld [vmem:[%s1445 + $0x40] sm:$0xff]
    %v1459 = vrot.slane %v1432, 1
    %v1460 = vrot.slane %v1433, 1
    %v1461 = vsel %vm172, %v1459, %v1460
    %v1462 = vrot.slane %v1434, 1
    %v1463 = vsel %vm172, %v1460, %v1462
    %v1464 = vrot.slane %v1435, 1
    %v1465 = vsel %vm172, %v1462, %v1464
    %vm1466 = vcmask 588800
    %v1467 = vsel %vm1466, %v1461, 0
    %v1469 = vsel %vm1466, %v1463, 0
    %v1471 = vsel %vm1466, %v1465, 0
    %v1473 = vsel %vm1466, %v1464, 0
    %1475 = vmatprep.subr.mxu0 0.0
    %1476 = vmatpush1.msra.mxu0 %v1446
    %1477 = vmatprep.subr.mxu0 0.0
    %1478 = vmatpush1.msra.mxu0 %v1447
    %1479 = vmatprep.subr.mxu0 0.0
    %1480 = vmatpush1.msra.mxu0 %v1448
    %1481 = vmatprep.subr.mxu0 0.0
    %1482 = vmatpush1.msra.mxu0 %v1449
    %1483 = vmatprep.subr.mxu0 0.0
    %1484 = vmatpush1.msra.mxu0 %v1450
    %1485 = vmatprep.subr.mxu0 0.0
    %1486 = vmatpush1.msra.mxu0 %v1451
    %1487 = vmatprep.subr.mxu0 0.0
    %1488 = vmatpush1.msra.mxu0 %v1452
    %1489 = vmatprep.subr.mxu0 0.0
    %1490 = vmatpush1.msra.mxu0 %v1453
    %1491 = vmatprep.subr.mxu0 0.0
    %1492 = vmatpush1.msra.mxu0 %v1454
    %1493 = vmatprep.subr.mxu0 0.0
    %1494 = vmatpush1.msra.mxu0 0.0
    %1495 = vmatprep.subr.mxu0 0.0
    %1496 = vmatpush1.msra.mxu0 0.0
    %1497 = vmatprep.subr.mxu0 0.0
    %1498 = vmatpush1.msra.mxu0 0.0
    %1499 = vmatprep.subr.mxu0 0.0
    %1500 = vmatpush1.msra.mxu0 0.0
    %1501 = vmatprep.subr.mxu0 0.0
    %1502 = vmatpush1.msra.mxu0 0.0
    %1503 = vmatprep.subr.mxu0 0.0
    %1504 = vmatpush1.msra.mxu0 0.0
    %1505 = vmatprep.subr.mxu0 0.0
    %1506 = vmatpush1.msra.mxu0 0.0
    %1507 = vmatprep.subr.mxu0 0.0
    %1508 = vmatpush1.msra.mxu0 0.0
    %1509 = vmatprep.subr.mxu0 0.0
    %1510 = vmatpush1.msra.mxu0 0.0
    %1511 = vmatprep.subr.mxu0 0.0
    %1512 = vmatpush1.msra.mxu0 0.0
    %1513 = vmatprep.subr.mxu0 0.0
    %1514 = vmatpush1.msra.mxu0 0.0
    %1515 = vmatprep.subr.mxu0 0.0
    %1516 = vmatpush1.msra.mxu0 0.0
    %1517 = vmatprep.subr.mxu0 0.0
    %1518 = vmatpush1.msra.mxu0 0.0
    %1519 = vmatprep.subr.mxu0 0.0
    %1520 = vmatpush1.msra.mxu0 0.0
    %1521 = vmatprep.subr.mxu0 0.0
    %1522 = vmatpush1.msra.mxu0 0.0
    %1523 = vmatprep.subr.mxu0 0.0
    %1524 = vmatpush1.msra.mxu0 0.0
    %1525 = vmatprep.subr.mxu0 0.0
    %1526 = vmatpush1.msra.mxu0 0.0
    %1527 = vmatprep.subr.mxu0 0.0
    %1528 = vmatpush1.msra.mxu0 0.0
    %1529 = vmatprep.subr.mxu0 0.0
    %1530 = vmatpush1.msra.mxu0 0.0
    %1531 = vmatprep.subr.mxu0 0.0
    %1532 = vmatpush1.msra.mxu0 0.0
    %1533 = vmatprep.subr.mxu0 0.0
    %1534 = vmatpush1.msra.mxu0 0.0
    %1535 = vmatprep.subr.mxu0 0.0
    %1536 = vmatpush1.msra.mxu0 0.0
    %1537 = vmatprep.subr.mxu0 0.0
    %1538 = vmatpush1.msra.mxu0 0.0
    %1539 = vmatprep.mubr.f32.mxu0 0.0
    %1540 = vmatmul.mubr.f32.gmra.mrb[0].mxu0 %v1467
    %v1541 = vpop.f32.mrb[0].mxu0
    %v1542 = vadd.f32 0.0, %v1541
    %v1543 = vpop.f32.mrb[0].mxu0
    %1544 = vmatprep.mubr.f32.mxu0 0.0
    %1545 = vmatmul.mubr.f32.gmra.mrb[0].mxu0 %v1469
    %v1546 = vpop.f32.mrb[0].mxu0
    %v1547 = vadd.f32 0.0, %v1546
    %v1548 = vpop.f32.mrb[0].mxu0
    %1549 = vmatprep.mubr.f32.mxu0 0.0
    %1550 = vmatmul.mubr.f32.gmra.mrb[0].mxu0 %v1471
    %v1551 = vpop.f32.mrb[0].mxu0
    %v1552 = vadd.f32 0.0, %v1551
    %v1553 = vpop.f32.mrb[0].mxu0
    %1554 = vmatprep.mubr.f32.mxu0 0.0
    %1555 = vmatmul.mubr.f32.gmra.mrb[0].mxu0 %v1473
    %v1556 = vpop.f32.mrb[0].mxu0
    %v1557 = vadd.f32 0.0, %v1556
    %v1558 = vpop.f32.mrb[0].mxu0
    %1559 = vdwg.mxu0
    %v1560 = vsel %vm1466, %v1432, 0
    %v1562 = vsel %vm1466, %v1433, 0
    %v1564 = vsel %vm1466, %v1434, 0
    %v1566 = vsel %vm1466, %v1435, 0
    %1568 = vmatprep.subr.mxu0 0.0
    %1569 = vmatpush1.msra.mxu0 %v1436
    %1570 = vmatprep.subr.mxu0 0.0
    %1571 = vmatpush1.msra.mxu0 %v1437
    %1572 = vmatprep.subr.mxu0 0.0
    %1573 = vmatpush1.msra.mxu0 %v1438
    %1574 = vmatprep.subr.mxu0 0.0
    %1575 = vmatpush1.msra.mxu0 %v1439
    %1576 = vmatprep.subr.mxu0 0.0
    %1577 = vmatpush1.msra.mxu0 %v1440
    %1578 = vmatprep.subr.mxu0 0.0
    %1579 = vmatpush1.msra.mxu0 %v1441
    %1580 = vmatprep.subr.mxu0 0.0
    %1581 = vmatpush1.msra.mxu0 %v1442
    %1582 = vmatprep.subr.mxu0 0.0
    %1583 = vmatpush1.msra.mxu0 %v1443
    %1584 = vmatprep.subr.mxu0 0.0
    %1585 = vmatpush1.msra.mxu0 %v1444
    %1586 = vmatprep.subr.mxu0 0.0
    %1587 = vmatpush1.msra.mxu0 0.0
    %1588 = vmatprep.subr.mxu0 0.0
    %1589 = vmatpush1.msra.mxu0 0.0
    %1590 = vmatprep.subr.mxu0 0.0
    %1591 = vmatpush1.msra.mxu0 0.0
    %1592 = vmatprep.subr.mxu0 0.0
    %1593 = vmatpush1.msra.mxu0 0.0
    %1594 = vmatprep.subr.mxu0 0.0
    %1595 = vmatpush1.msra.mxu0 0.0
    %1596 = vmatprep.subr.mxu0 0.0
    %1597 = vmatpush1.msra.mxu0 0.0
    %1598 = vmatprep.subr.mxu0 0.0
    %1599 = vmatpush1.msra.mxu0 0.0
    %1600 = vmatprep.subr.mxu0 0.0
    %1601 = vmatpush1.msra.mxu0 0.0
    %1602 = vmatprep.subr.mxu0 0.0
    %1603 = vmatpush1.msra.mxu0 0.0
    %1604 = vmatprep.subr.mxu0 0.0
    %1605 = vmatpush1.msra.mxu0 0.0
    %1606 = vmatprep.subr.mxu0 0.0
    %1607 = vmatpush1.msra.mxu0 0.0
    %1608 = vmatprep.subr.mxu0 0.0
    %1609 = vmatpush1.msra.mxu0 0.0
    %1610 = vmatprep.subr.mxu0 0.0
    %1611 = vmatpush1.msra.mxu0 0.0
    %1612 = vmatprep.subr.mxu0 0.0
    %1613 = vmatpush1.msra.mxu0 0.0
    %1614 = vmatprep.subr.mxu0 0.0
    %1615 = vmatpush1.msra.mxu0 0.0
    %1616 = vmatprep.subr.mxu0 0.0
    %1617 = vmatpush1.msra.mxu0 0.0
    %1618 = vmatprep.subr.mxu0 0.0
    %1619 = vmatpush1.msra.mxu0 0.0
    %1620 = vmatprep.subr.mxu0 0.0
    %1621 = vmatpush1.msra.mxu0 0.0
    %1622 = vmatprep.subr.mxu0 0.0
    %1623 = vmatpush1.msra.mxu0 0.0
    %1624 = vmatprep.subr.mxu0 0.0
    %1625 = vmatpush1.msra.mxu0 0.0
    %1626 = vmatprep.subr.mxu0 0.0
    %1627 = vmatpush1.msra.mxu0 0.0
    %1628 = vmatprep.subr.mxu0 0.0
    %1629 = vmatpush1.msra.mxu0 0.0
    %1630 = vmatprep.subr.mxu0 0.0
    %1631 = vmatpush1.msra.mxu0 0.0
    %1632 = vmatprep.mubr.f32.mxu0 0.0
    %1633 = vmatmul.mubr.f32.gmra.mrb[0].mxu0 %v1560
    %v1634 = vpop.f32.mrb[0].mxu0
    %v1635 = vadd.f32 %v1542, %v1634
    %v1636 = vpop.f32.mrb[0].mxu0
    %1637 = vmatprep.mubr.f32.mxu0 0.0
    %1638 = vmatmul.mubr.f32.gmra.mrb[0].mxu0 %v1562
    %v1639 = vpop.f32.mrb[0].mxu0
    %v1640 = vadd.f32 %v1547, %v1639
    %v1641 = vpop.f32.mrb[0].mxu0
    %1642 = vmatprep.mubr.f32.mxu0 0.0
    %1643 = vmatmul.mubr.f32.gmra.mrb[0].mxu0 %v1564
    %v1644 = vpop.f32.mrb[0].mxu0
    %v1645 = vadd.f32 %v1552, %v1644
    %v1646 = vpop.f32.mrb[0].mxu0
    %1647 = vmatprep.mubr.f32.mxu0 0.0
    %1648 = vmatmul.mubr.f32.gmra.mrb[0].mxu0 %v1566
    %v1649 = vpop.f32.mrb[0].mxu0
    %v1650 = vadd.f32 %v1557, %v1649
    %v1651 = vpop.f32.mrb[0].mxu0
    %1652 = vdwg.mxu0
    %s1653 = scalar_lea.vmem %s5, 144
    %v1654 = vld [vmem:[%s1653] sm:$0xff]
    %v1655 = vld [vmem:[%s1653 + $0x8] sm:$0xff]
    %v1656 = vld [vmem:[%s1653 + $0x10] sm:$0xff]
    %v1657 = vld [vmem:[%s1653 + $0x18] sm:$0xff]
    %v1658 = vld [vmem:[%s1653 + $0x20] sm:$0xff]
    %v1659 = vld [vmem:[%s1653 + $0x28] sm:$0xff]
    %v1660 = vld [vmem:[%s1653 + $0x30] sm:$0xff]
    %v1661 = vld [vmem:[%s1653 + $0x38] sm:$0xff]
    %v1662 = vld [vmem:[%s1653 + $0x40] sm:$0xff]
    %v1663 = vrot.slane %v1432, 2
    %v1664 = vrot.slane %v1433, 2
    %v1665 = vsel %vm471, %v1663, %v1664
    %v1666 = vrot.slane %v1434, 2
    %v1667 = vsel %vm471, %v1664, %v1666
    %v1668 = vrot.slane %v1435, 2
    %v1669 = vsel %vm471, %v1666, %v1668
    %v1670 = vsel %vm1466, %v1665, 0
    %v1672 = vsel %vm1466, %v1667, 0
    %v1674 = vsel %vm1466, %v1669, 0
    %v1676 = vsel %vm1466, %v1668, 0
    %1678 = vmatprep.subr.mxu0 0.0
    %1679 = vmatpush1.msra.mxu0 %v1654
    %1680 = vmatprep.subr.mxu0 0.0
    %1681 = vmatpush1.msra.mxu0 %v1655
    %1682 = vmatprep.subr.mxu0 0.0
    %1683 = vmatpush1.msra.mxu0 %v1656
    %1684 = vmatprep.subr.mxu0 0.0
    %1685 = vmatpush1.msra.mxu0 %v1657
    %1686 = vmatprep.subr.mxu0 0.0
    %1687 = vmatpush1.msra.mxu0 %v1658
    %1688 = vmatprep.subr.mxu0 0.0
    %1689 = vmatpush1.msra.mxu0 %v1659
    %1690 = vmatprep.subr.mxu0 0.0
    %1691 = vmatpush1.msra.mxu0 %v1660
    %1692 = vmatprep.subr.mxu0 0.0
    %1693 = vmatpush1.msra.mxu0 %v1661
    %1694 = vmatprep.subr.mxu0 0.0
    %1695 = vmatpush1.msra.mxu0 %v1662
    %1696 = vmatprep.subr.mxu0 0.0
    %1697 = vmatpush1.msra.mxu0 0.0
    %1698 = vmatprep.subr.mxu0 0.0
    %1699 = vmatpush1.msra.mxu0 0.0
    %1700 = vmatprep.subr.mxu0 0.0
    %1701 = vmatpush1.msra.mxu0 0.0
    %1702 = vmatprep.subr.mxu0 0.0
    %1703 = vmatpush1.msra.mxu0 0.0
    %1704 = vmatprep.subr.mxu0 0.0
    %1705 = vmatpush1.msra.mxu0 0.0
    %1706 = vmatprep.subr.mxu0 0.0
    %1707 = vmatpush1.msra.mxu0 0.0
    %1708 = vmatprep.subr.mxu0 0.0
    %1709 = vmatpush1.msra.mxu0 0.0
    %1710 = vmatprep.subr.mxu0 0.0
    %1711 = vmatpush1.msra.mxu0 0.0
    %1712 = vmatprep.subr.mxu0 0.0
    %1713 = vmatpush1.msra.mxu0 0.0
    %1714 = vmatprep.subr.mxu0 0.0
    %1715 = vmatpush1.msra.mxu0 0.0
    %1716 = vmatprep.subr.mxu0 0.0
    %1717 = vmatpush1.msra.mxu0 0.0
    %1718 = vmatprep.subr.mxu0 0.0
    %1719 = vmatpush1.msra.mxu0 0.0
    %1720 = vmatprep.subr.mxu0 0.0
    %1721 = vmatpush1.msra.mxu0 0.0
    %1722 = vmatprep.subr.mxu0 0.0
    %1723 = vmatpush1.msra.mxu0 0.0
    %1724 = vmatprep.subr.mxu0 0.0
    %1725 = vmatpush1.msra.mxu0 0.0
    %1726 = vmatprep.subr.mxu0 0.0
    %1727 = vmatpush1.msra.mxu0 0.0
    %1728 = vmatprep.subr.mxu0 0.0
    %1729 = vmatpush1.msra.mxu0 0.0
    %1730 = vmatprep.subr.mxu0 0.0
    %1731 = vmatpush1.msra.mxu0 0.0
    %1732 = vmatprep.subr.mxu0 0.0
    %1733 = vmatpush1.msra.mxu0 0.0
    %1734 = vmatprep.subr.mxu0 0.0
    %1735 = vmatpush1.msra.mxu0 0.0
    %1736 = vmatprep.subr.mxu0 0.0
    %1737 = vmatpush1.msra.mxu0 0.0
    %1738 = vmatprep.subr.mxu0 0.0
    %1739 = vmatpush1.msra.mxu0 0.0
    %1740 = vmatprep.subr.mxu0 0.0
    %1741 = vmatpush1.msra.mxu0 0.0
    %1742 = vmatprep.mubr.f32.mxu0 0.0
    %1743 = vmatmul.mubr.f32.gmra.mrb[0].mxu0 %v1670
    %v1744 = vpop.f32.mrb[0].mxu0
    %v1745 = vadd.f32 0.0, %v1744
    %v1746 = vpop.f32.mrb[0].mxu0
    %1747 = vmatprep.mubr.f32.mxu0 0.0
    %1748 = vmatmul.mubr.f32.gmra.mrb[0].mxu0 %v1672
    %v1749 = vpop.f32.mrb[0].mxu0
    %v1750 = vadd.f32 0.0, %v1749
    %v1751 = vpop.f32.mrb[0].mxu0
    %1752 = vmatprep.mubr.f32.mxu0 0.0
    %1753 = vmatmul.mubr.f32.gmra.mrb[0].mxu0 %v1674
    %v1754 = vpop.f32.mrb[0].mxu0
    %v1755 = vadd.f32 0.0, %v1754
    %v1756 = vpop.f32.mrb[0].mxu0
    %1757 = vmatprep.mubr.f32.mxu0 0.0
    %1758 = vmatmul.mubr.f32.gmra.mrb[0].mxu0 %v1676
    %v1759 = vpop.f32.mrb[0].mxu0
    %v1760 = vadd.f32 0.0, %v1759
    %v1761 = vpop.f32.mrb[0].mxu0
    %1762 = vdwg.mxu0
    %v1763 = vadd.f32 %v1635, %v1745
    %v1764 = vadd.f32 %v1640, %v1750
    %v1765 = vadd.f32 %v1645, %v1755
    %v1766 = vadd.f32 %v1650, %v1760
    %s1767 = scalar_lea.vmem %s5, 216
    %v1768 = vld [vmem:[%s1767] sm:$0xff]
    %v1769 = vld [vmem:[%s1767 + $0x8] sm:$0xff]
    %v1770 = vld [vmem:[%s1767 + $0x10] sm:$0xff]
    %v1771 = vld [vmem:[%s1767 + $0x18] sm:$0xff]
    %v1772 = vld [vmem:[%s1767 + $0x20] sm:$0xff]
    %v1773 = vld [vmem:[%s1767 + $0x28] sm:$0xff]
    %v1774 = vld [vmem:[%s1767 + $0x30] sm:$0xff]
    %v1775 = vld [vmem:[%s1767 + $0x38] sm:$0xff]
    %v1776 = vld [vmem:[%s1767 + $0x40] sm:$0xff]
    %v1777 = vrot.slane %v1432, 3
    %v1778 = vrot.slane %v1433, 3
    %v1779 = vsel %vm649, %v1777, %v1778
    %v1780 = vrot.slane %v1434, 3
    %v1781 = vsel %vm649, %v1778, %v1780
    %v1782 = vrot.slane %v1435, 3
    %v1783 = vsel %vm649, %v1780, %v1782
    %v1784 = vsel %vm1466, %v1779, 0
    %v1786 = vsel %vm1466, %v1781, 0
    %v1788 = vsel %vm1466, %v1783, 0
    %v1790 = vsel %vm1466, %v1782, 0
    %1792 = vmatprep.subr.mxu0 0.0
    %1793 = vmatpush1.msra.mxu0 %v1768
    %1794 = vmatprep.subr.mxu0 0.0
    %1795 = vmatpush1.msra.mxu0 %v1769
    %1796 = vmatprep.subr.mxu0 0.0
    %1797 = vmatpush1.msra.mxu0 %v1770
    %1798 = vmatprep.subr.mxu0 0.0
    %1799 = vmatpush1.msra.mxu0 %v1771
    %1800 = vmatprep.subr.mxu0 0.0
    %1801 = vmatpush1.msra.mxu0 %v1772
    %1802 = vmatprep.subr.mxu0 0.0
    %1803 = vmatpush1.msra.mxu0 %v1773
    %1804 = vmatprep.subr.mxu0 0.0
    %1805 = vmatpush1.msra.mxu0 %v1774
    %1806 = vmatprep.subr.mxu0 0.0
    %1807 = vmatpush1.msra.mxu0 %v1775
    %1808 = vmatprep.subr.mxu0 0.0
    %1809 = vmatpush1.msra.mxu0 %v1776
    %1810 = vmatprep.subr.mxu0 0.0
    %1811 = vmatpush1.msra.mxu0 0.0
    %1812 = vmatprep.subr.mxu0 0.0
    %1813 = vmatpush1.msra.mxu0 0.0
    %1814 = vmatprep.subr.mxu0 0.0
    %1815 = vmatpush1.msra.mxu0 0.0
    %1816 = vmatprep.subr.mxu0 0.0
    %1817 = vmatpush1.msra.mxu0 0.0
    %1818 = vmatprep.subr.mxu0 0.0
    %1819 = vmatpush1.msra.mxu0 0.0
    %1820 = vmatprep.subr.mxu0 0.0
    %1821 = vmatpush1.msra.mxu0 0.0
    %1822 = vmatprep.subr.mxu0 0.0
    %1823 = vmatpush1.msra.mxu0 0.0
    %1824 = vmatprep.subr.mxu0 0.0
    %1825 = vmatpush1.msra.mxu0 0.0
    %1826 = vmatprep.subr.mxu0 0.0
    %1827 = vmatpush1.msra.mxu0 0.0
    %1828 = vmatprep.subr.mxu0 0.0
    %1829 = vmatpush1.msra.mxu0 0.0
    %1830 = vmatprep.subr.mxu0 0.0
    %1831 = vmatpush1.msra.mxu0 0.0
    %1832 = vmatprep.subr.mxu0 0.0
    %1833 = vmatpush1.msra.mxu0 0.0
    %1834 = vmatprep.subr.mxu0 0.0
    %1835 = vmatpush1.msra.mxu0 0.0
    %1836 = vmatprep.subr.mxu0 0.0
    %1837 = vmatpush1.msra.mxu0 0.0
    %1838 = vmatprep.subr.mxu0 0.0
    %1839 = vmatpush1.msra.mxu0 0.0
    %1840 = vmatprep.subr.mxu0 0.0
    %1841 = vmatpush1.msra.mxu0 0.0
    %1842 = vmatprep.subr.mxu0 0.0
    %1843 = vmatpush1.msra.mxu0 0.0
    %1844 = vmatprep.subr.mxu0 0.0
    %1845 = vmatpush1.msra.mxu0 0.0
    %1846 = vmatprep.subr.mxu0 0.0
    %1847 = vmatpush1.msra.mxu0 0.0
    %1848 = vmatprep.subr.mxu0 0.0
    %1849 = vmatpush1.msra.mxu0 0.0
    %1850 = vmatprep.subr.mxu0 0.0
    %1851 = vmatpush1.msra.mxu0 0.0
    %1852 = vmatprep.subr.mxu0 0.0
    %1853 = vmatpush1.msra.mxu0 0.0
    %1854 = vmatprep.subr.mxu0 0.0
    %1855 = vmatpush1.msra.mxu0 0.0
    %1856 = vmatprep.mubr.f32.mxu0 0.0
    %1857 = vmatmul.mubr.f32.gmra.mrb[0].mxu0 %v1784
    %v1858 = vpop.f32.mrb[0].mxu0
    %v1859 = vadd.f32 0.0, %v1858
    %v1860 = vpop.f32.mrb[0].mxu0
    %1861 = vmatprep.mubr.f32.mxu0 0.0
    %1862 = vmatmul.mubr.f32.gmra.mrb[0].mxu0 %v1786
    %v1863 = vpop.f32.mrb[0].mxu0
    %v1864 = vadd.f32 0.0, %v1863
    %v1865 = vpop.f32.mrb[0].mxu0
    %1866 = vmatprep.mubr.f32.mxu0 0.0
    %1867 = vmatmul.mubr.f32.gmra.mrb[0].mxu0 %v1788
    %v1868 = vpop.f32.mrb[0].mxu0
    %v1869 = vadd.f32 0.0, %v1868
    %v1870 = vpop.f32.mrb[0].mxu0
    %1871 = vmatprep.mubr.f32.mxu0 0.0
    %1872 = vmatmul.mubr.f32.gmra.mrb[0].mxu0 %v1790
    %v1873 = vpop.f32.mrb[0].mxu0
    %v1874 = vadd.f32 0.0, %v1873
    %v1875 = vpop.f32.mrb[0].mxu0
    %1876 = vdwg.mxu0
    %v1877 = vadd.f32 %v1763, %v1859
    %v1878 = vadd.f32 %v1764, %v1864
    %v1879 = vadd.f32 %v1765, %v1869
    %v1880 = vadd.f32 %v1766, %v1874
    %s1881 = scalar_lea.vmem %s5, 288
    %v1882 = vld [vmem:[%s1881] sm:$0xff]
    %v1883 = vld [vmem:[%s1881 + $0x8] sm:$0xff]
    %v1884 = vld [vmem:[%s1881 + $0x10] sm:$0xff]
    %v1885 = vld [vmem:[%s1881 + $0x18] sm:$0xff]
    %v1886 = vld [vmem:[%s1881 + $0x20] sm:$0xff]
    %v1887 = vld [vmem:[%s1881 + $0x28] sm:$0xff]
    %v1888 = vld [vmem:[%s1881 + $0x30] sm:$0xff]
    %v1889 = vld [vmem:[%s1881 + $0x38] sm:$0xff]
    %v1890 = vld [vmem:[%s1881 + $0x40] sm:$0xff]
    %v1891 = vrot.slane %v1432, 4
    %v1892 = vrot.slane %v1433, 4
    %v1893 = vsel %vm207, %v1891, %v1892
    %v1894 = vrot.slane %v1434, 4
    %v1895 = vsel %vm207, %v1892, %v1894
    %v1896 = vrot.slane %v1435, 4
    %v1897 = vsel %vm207, %v1894, %v1896
    %v1898 = vsel %vm1466, %v1893, 0
    %v1900 = vsel %vm1466, %v1895, 0
    %v1902 = vsel %vm1466, %v1897, 0
    %v1904 = vsel %vm1466, %v1896, 0
    %1906 = vmatprep.subr.mxu0 0.0
    %1907 = vmatpush1.msra.mxu0 %v1882
    %1908 = vmatprep.subr.mxu0 0.0
    %1909 = vmatpush1.msra.mxu0 %v1883
    %1910 = vmatprep.subr.mxu0 0.0
    %1911 = vmatpush1.msra.mxu0 %v1884
    %1912 = vmatprep.subr.mxu0 0.0
    %1913 = vmatpush1.msra.mxu0 %v1885
    %1914 = vmatprep.subr.mxu0 0.0
    %1915 = vmatpush1.msra.mxu0 %v1886
    %1916 = vmatprep.subr.mxu0 0.0
    %1917 = vmatpush1.msra.mxu0 %v1887
    %1918 = vmatprep.subr.mxu0 0.0
    %1919 = vmatpush1.msra.mxu0 %v1888
    %1920 = vmatprep.subr.mxu0 0.0
    %1921 = vmatpush1.msra.mxu0 %v1889
    %1922 = vmatprep.subr.mxu0 0.0
    %1923 = vmatpush1.msra.mxu0 %v1890
    %1924 = vmatprep.subr.mxu0 0.0
    %1925 = vmatpush1.msra.mxu0 0.0
    %1926 = vmatprep.subr.mxu0 0.0
    %1927 = vmatpush1.msra.mxu0 0.0
    %1928 = vmatprep.subr.mxu0 0.0
    %1929 = vmatpush1.msra.mxu0 0.0
    %1930 = vmatprep.subr.mxu0 0.0
    %1931 = vmatpush1.msra.mxu0 0.0
    %1932 = vmatprep.subr.mxu0 0.0
    %1933 = vmatpush1.msra.mxu0 0.0
    %1934 = vmatprep.subr.mxu0 0.0
    %1935 = vmatpush1.msra.mxu0 0.0
    %1936 = vmatprep.subr.mxu0 0.0
    %1937 = vmatpush1.msra.mxu0 0.0
    %1938 = vmatprep.subr.mxu0 0.0
    %1939 = vmatpush1.msra.mxu0 0.0
    %1940 = vmatprep.subr.mxu0 0.0
    %1941 = vmatpush1.msra.mxu0 0.0
    %1942 = vmatprep.subr.mxu0 0.0
    %1943 = vmatpush1.msra.mxu0 0.0
    %1944 = vmatprep.subr.mxu0 0.0
    %1945 = vmatpush1.msra.mxu0 0.0
    %1946 = vmatprep.subr.mxu0 0.0
    %1947 = vmatpush1.msra.mxu0 0.0
    %1948 = vmatprep.subr.mxu0 0.0
    %1949 = vmatpush1.msra.mxu0 0.0
    %1950 = vmatprep.subr.mxu0 0.0
    %1951 = vmatpush1.msra.mxu0 0.0
    %1952 = vmatprep.subr.mxu0 0.0
    %1953 = vmatpush1.msra.mxu0 0.0
    %1954 = vmatprep.subr.mxu0 0.0
    %1955 = vmatpush1.msra.mxu0 0.0
    %1956 = vmatprep.subr.mxu0 0.0
    %1957 = vmatpush1.msra.mxu0 0.0
    %1958 = vmatprep.subr.mxu0 0.0
    %1959 = vmatpush1.msra.mxu0 0.0
    %1960 = vmatprep.subr.mxu0 0.0
    %1961 = vmatpush1.msra.mxu0 0.0
    %1962 = vmatprep.subr.mxu0 0.0
    %1963 = vmatpush1.msra.mxu0 0.0
    %1964 = vmatprep.subr.mxu0 0.0
    %1965 = vmatpush1.msra.mxu0 0.0
    %1966 = vmatprep.subr.mxu0 0.0
    %1967 = vmatpush1.msra.mxu0 0.0
    %1968 = vmatprep.subr.mxu0 0.0
    %1969 = vmatpush1.msra.mxu0 0.0
    %1970 = vmatprep.mubr.f32.mxu0 0.0
    %1971 = vmatmul.mubr.f32.gmra.mrb[0].mxu0 %v1898
    %v1972 = vpop.f32.mrb[0].mxu0
    %v1973 = vadd.f32 0.0, %v1972
    %v1974 = vpop.f32.mrb[0].mxu0
    %1975 = vmatprep.mubr.f32.mxu0 0.0
    %1976 = vmatmul.mubr.f32.gmra.mrb[0].mxu0 %v1900
    %v1977 = vpop.f32.mrb[0].mxu0
    %v1978 = vadd.f32 0.0, %v1977
    %v1979 = vpop.f32.mrb[0].mxu0
    %1980 = vmatprep.mubr.f32.mxu0 0.0
    %1981 = vmatmul.mubr.f32.gmra.mrb[0].mxu0 %v1902
    %v1982 = vpop.f32.mrb[0].mxu0
    %v1983 = vadd.f32 0.0, %v1982
    %v1984 = vpop.f32.mrb[0].mxu0
    %1985 = vmatprep.mubr.f32.mxu0 0.0
    %1986 = vmatmul.mubr.f32.gmra.mrb[0].mxu0 %v1904
    %v1987 = vpop.f32.mrb[0].mxu0
    %v1988 = vadd.f32 0.0, %v1987
    %v1989 = vpop.f32.mrb[0].mxu0
    %1990 = vdwg.mxu0
    %v1991 = vadd.f32 %v1877, %v1973
    %v1992 = vadd.f32 %v1878, %v1978
    %v1993 = vadd.f32 %v1879, %v1983
    %v1994 = vadd.f32 %v1880, %v1988
    %v1996 = vlaneseq
    %v1997 = vshrl.u32 %v1996, 7
    %v1998 = vsub.s32 0, %v1997
    %v1999 = vrot.slane %v52, %v1998
    %v2001 = vadd.f32 %v1991, %v1999
    %v2002 = vadd.f32 %v1992, %v1999
    %v2003 = vadd.f32 %v1993, %v1999
    %v2004 = vadd.f32 %v1994, %v1999
    %v2005 = vmax.f32 %v2001, 0.0
    %v2006 = vmax.f32 %v2002, 0.0
    %v2007 = vmax.f32 %v2003, 0.0
    %v2008 = vmax.f32 %v2004, 0.0
    %v2010 = vsel %vm190, %v99, 0
    %v2013 = vsel %vm190, %v100, 0
    %v2016 = vsel %vm207, %v2008, 0
    %2018 = vmatprep.subr.mxu0 0.0
    %2019 = vmatpush1.msra.mxu0 %v2005
    %2020 = vmatprep.subr.mxu0 0.0
    %2021 = vmatpush1.msra.mxu0 %v2006
    %2022 = vmatprep.subr.mxu0 0.0
    %2023 = vmatpush1.msra.mxu0 %v2007
    %2024 = vmatprep.subr.mxu0 0.0
    %2025 = vmatpush1.msra.mxu0 %v2016
    %2026 = vmatprep.subr.mxu0 0.0
    %2027 = vmatpush1.msra.mxu0 0.0
    %2028 = vmatprep.subr.mxu0 0.0
    %2029 = vmatpush1.msra.mxu0 0.0
    %2030 = vmatprep.subr.mxu0 0.0
    %2031 = vmatpush1.msra.mxu0 0.0
    %2032 = vmatprep.subr.mxu0 0.0
    %2033 = vmatpush1.msra.mxu0 0.0
    %2034 = vmatprep.subr.mxu0 0.0
    %2035 = vmatpush1.msra.mxu0 0.0
    %2036 = vmatprep.subr.mxu0 0.0
    %2037 = vmatpush1.msra.mxu0 0.0
    %2038 = vmatprep.subr.mxu0 0.0
    %2039 = vmatpush1.msra.mxu0 0.0
    %2040 = vmatprep.subr.mxu0 0.0
    %2041 = vmatpush1.msra.mxu0 0.0
    %2042 = vmatprep.subr.mxu0 0.0
    %2043 = vmatpush1.msra.mxu0 0.0
    %2044 = vmatprep.subr.mxu0 0.0
    %2045 = vmatpush1.msra.mxu0 0.0
    %2046 = vmatprep.subr.mxu0 0.0
    %2047 = vmatpush1.msra.mxu0 0.0
    %2048 = vmatprep.subr.mxu0 0.0
    %2049 = vmatpush1.msra.mxu0 0.0
    %2050 = vmatprep.subr.mxu0 0.0
    %2051 = vmatpush1.msra.mxu0 0.0
    %2052 = vmatprep.subr.mxu0 0.0
    %2053 = vmatpush1.msra.mxu0 0.0
    %2054 = vmatprep.subr.mxu0 0.0
    %2055 = vmatpush1.msra.mxu0 0.0
    %2056 = vmatprep.subr.mxu0 0.0
    %2057 = vmatpush1.msra.mxu0 0.0
    %2058 = vmatprep.subr.mxu0 0.0
    %2059 = vmatpush1.msra.mxu0 0.0
    %2060 = vmatprep.subr.mxu0 0.0
    %2061 = vmatpush1.msra.mxu0 0.0
    %2062 = vmatprep.subr.mxu0 0.0
    %2063 = vmatpush1.msra.mxu0 0.0
    %2064 = vmatprep.subr.mxu0 0.0
    %2065 = vmatpush1.msra.mxu0 0.0
    %2066 = vmatprep.subr.mxu0 0.0
    %2067 = vmatpush1.msra.mxu0 0.0
    %2068 = vmatprep.subr.mxu0 0.0
    %2069 = vmatpush1.msra.mxu0 0.0
    %2070 = vmatprep.subr.mxu0 0.0
    %2071 = vmatpush1.msra.mxu0 0.0
    %2072 = vmatprep.subr.mxu0 0.0
    %2073 = vmatpush1.msra.mxu0 0.0
    %2074 = vmatprep.subr.mxu0 0.0
    %2075 = vmatpush1.msra.mxu0 0.0
    %2076 = vmatprep.subr.mxu0 0.0
    %2077 = vmatpush1.msra.mxu0 0.0
    %2078 = vmatprep.subr.mxu0 0.0
    %2079 = vmatpush1.msra.mxu0 0.0
    %2080 = vmatprep.subr.mxu0 0.0
    %2081 = vmatpush1.msra.mxu0 0.0
    %2082 = vmatprep.mubr.f32.mxu0 0.0
    %2083 = vmatmul.mubr.f32.gmra.mrb[0].mxu0 %v2010
    %v2084 = vpop.f32.mrb[0].mxu0
    %v2085 = vadd.f32 0.0, %v2084
    %v2086 = vpop.f32.mrb[0].mxu0
    %2087 = vmatprep.mubr.f32.mxu0 0.0
    %2088 = vmatmul.mubr.f32.gmra.mrb[0].mxu0 %v2013
    %v2089 = vpop.f32.mrb[0].mxu0
    %v2090 = vadd.f32 0.0, %v2089
    %v2091 = vpop.f32.mrb[0].mxu0
    %2092 = vdwg.mxu0
    %v2094 = vsel %vm190, %v102, 0
    %v2097 = vsel %vm190, %v103, 0
    %2099 = vmatprep.subr.mxu0 0.0
    %2100 = vmatpush1.msra.mxu0 %v2005
    %2101 = vmatprep.subr.mxu0 0.0
    %2102 = vmatpush1.msra.mxu0 %v2006
    %2103 = vmatprep.subr.mxu0 0.0
    %2104 = vmatpush1.msra.mxu0 %v2007
    %2105 = vmatprep.subr.mxu0 0.0
    %2106 = vmatpush1.msra.mxu0 %v2016
    %2107 = vmatprep.subr.mxu0 0.0
    %2108 = vmatpush1.msra.mxu0 0.0
    %2109 = vmatprep.subr.mxu0 0.0
    %2110 = vmatpush1.msra.mxu0 0.0
    %2111 = vmatprep.subr.mxu0 0.0
    %2112 = vmatpush1.msra.mxu0 0.0
    %2113 = vmatprep.subr.mxu0 0.0
    %2114 = vmatpush1.msra.mxu0 0.0
    %2115 = vmatprep.subr.mxu0 0.0
    %2116 = vmatpush1.msra.mxu0 0.0
    %2117 = vmatprep.subr.mxu0 0.0
    %2118 = vmatpush1.msra.mxu0 0.0
    %2119 = vmatprep.subr.mxu0 0.0
    %2120 = vmatpush1.msra.mxu0 0.0
    %2121 = vmatprep.subr.mxu0 0.0
    %2122 = vmatpush1.msra.mxu0 0.0
    %2123 = vmatprep.subr.mxu0 0.0
    %2124 = vmatpush1.msra.mxu0 0.0
    %2125 = vmatprep.subr.mxu0 0.0
    %2126 = vmatpush1.msra.mxu0 0.0
    %2127 = vmatprep.subr.mxu0 0.0
    %2128 = vmatpush1.msra.mxu0 0.0
    %2129 = vmatprep.subr.mxu0 0.0
    %2130 = vmatpush1.msra.mxu0 0.0
    %2131 = vmatprep.subr.mxu0 0.0
    %2132 = vmatpush1.msra.mxu0 0.0
    %2133 = vmatprep.subr.mxu0 0.0
    %2134 = vmatpush1.msra.mxu0 0.0
    %2135 = vmatprep.subr.mxu0 0.0
    %2136 = vmatpush1.msra.mxu0 0.0
    %2137 = vmatprep.subr.mxu0 0.0
    %2138 = vmatpush1.msra.mxu0 0.0
    %2139 = vmatprep.subr.mxu0 0.0
    %2140 = vmatpush1.msra.mxu0 0.0
    %2141 = vmatprep.subr.mxu0 0.0
    %2142 = vmatpush1.msra.mxu0 0.0
    %2143 = vmatprep.subr.mxu0 0.0
    %2144 = vmatpush1.msra.mxu0 0.0
    %2145 = vmatprep.subr.mxu0 0.0
    %2146 = vmatpush1.msra.mxu0 0.0
    %2147 = vmatprep.subr.mxu0 0.0
    %2148 = vmatpush1.msra.mxu0 0.0
    %2149 = vmatprep.subr.mxu0 0.0
    %2150 = vmatpush1.msra.mxu0 0.0
    %2151 = vmatprep.subr.mxu0 0.0
    %2152 = vmatpush1.msra.mxu0 0.0
    %2153 = vmatprep.subr.mxu0 0.0
    %2154 = vmatpush1.msra.mxu0 0.0
    %2155 = vmatprep.subr.mxu0 0.0
    %2156 = vmatpush1.msra.mxu0 0.0
    %2157 = vmatprep.subr.mxu0 0.0
    %2158 = vmatpush1.msra.mxu0 0.0
    %2159 = vmatprep.subr.mxu0 0.0
    %2160 = vmatpush1.msra.mxu0 0.0
    %2161 = vmatprep.subr.mxu0 0.0
    %2162 = vmatpush1.msra.mxu0 0.0
    %2163 = vmatprep.mubr.f32.mxu0 0.0
    %2164 = vmatmul.mubr.f32.gmra.mrb[0].mxu0 %v2094
    %v2165 = vpop.f32.mrb[0].mxu0
    %v2166 = vadd.f32 0.0, %v2165
    %v2167 = vpop.f32.mrb[0].mxu0
    %2168 = vmatprep.mubr.f32.mxu0 0.0
    %2169 = vmatmul.mubr.f32.gmra.mrb[0].mxu0 %v2097
    %v2170 = vpop.f32.mrb[0].mxu0
    %v2171 = vadd.f32 0.0, %v2170
    %v2172 = vpop.f32.mrb[0].mxu0
    %2173 = vdwg.mxu0
    %v2174 = vmax.f32 %v2085, %v2166
    %v2175 = vmax.f32 %v2090, %v2171
    %2176 = vmatprep.subr.mxu0 0.0
    %2177 = vmatpush1.msra.mxu0 %v104
    %2178 = vmatprep.subr.mxu0 0.0
    %2179 = vmatpush1.msra.mxu0 %v105
    %2180 = vmatprep.subr.mxu0 0.0
    %2181 = vmatpush1.msra.mxu0 %v106
    %2182 = vmatprep.subr.mxu0 0.0
    %2183 = vmatpush1.msra.mxu0 %v107
    %2184 = vmatprep.subr.mxu0 0.0
    %2185 = vmatpush1.msra.mxu0 %v108
    %2186 = vmatprep.subr.mxu0 0.0
    %2187 = vmatpush1.msra.mxu0 %v109
    %2188 = vmatprep.subr.mxu0 0.0
    %2189 = vmatpush1.msra.mxu0 %v110
    %2190 = vmatprep.subr.mxu0 0.0
    %2191 = vmatpush1.msra.mxu0 %v111
    %2192 = vmatprep.subr.mxu0 0.0
    %2193 = vmatpush1.msra.mxu0 %v112
    %2194 = vmatprep.subr.mxu0 0.0
    %2195 = vmatpush1.msra.mxu0 %v113
    %2196 = vmatprep.subr.mxu0 0.0
    %2197 = vmatpush1.msra.mxu0 %v114
    %2198 = vmatprep.subr.mxu0 0.0
    %2199 = vmatpush1.msra.mxu0 %v115
    %2200 = vmatprep.subr.mxu0 0.0
    %2201 = vmatpush1.msra.mxu0 %v116
    %2202 = vmatprep.subr.mxu0 0.0
    %2203 = vmatpush1.msra.mxu0 %v117
    %2204 = vmatprep.subr.mxu0 0.0
    %2205 = vmatpush1.msra.mxu0 %v118
    %2206 = vmatprep.subr.mxu0 0.0
    %2207 = vmatpush1.msra.mxu0 %v119
    %2208 = vmatprep.subr.mxu0 0.0
    %2209 = vmatpush1.msra.mxu0 0.0
    %2210 = vmatprep.subr.mxu0 0.0
    %2211 = vmatpush1.msra.mxu0 0.0
    %2212 = vmatprep.subr.mxu0 0.0
    %2213 = vmatpush1.msra.mxu0 0.0
    %2214 = vmatprep.subr.mxu0 0.0
    %2215 = vmatpush1.msra.mxu0 0.0
    %2216 = vmatprep.subr.mxu0 0.0
    %2217 = vmatpush1.msra.mxu0 0.0
    %2218 = vmatprep.subr.mxu0 0.0
    %2219 = vmatpush1.msra.mxu0 0.0
    %2220 = vmatprep.subr.mxu0 0.0
    %2221 = vmatpush1.msra.mxu0 0.0
    %2222 = vmatprep.subr.mxu0 0.0
    %2223 = vmatpush1.msra.mxu0 0.0
    %2224 = vmatprep.subr.mxu0 0.0
    %2225 = vmatpush1.msra.mxu0 0.0
    %2226 = vmatprep.subr.mxu0 0.0
    %2227 = vmatpush1.msra.mxu0 0.0
    %2228 = vmatprep.subr.mxu0 0.0
    %2229 = vmatpush1.msra.mxu0 0.0
    %2230 = vmatprep.subr.mxu0 0.0
    %2231 = vmatpush1.msra.mxu0 0.0
    %2232 = vmatprep.subr.mxu0 0.0
    %2233 = vmatpush1.msra.mxu0 0.0
    %2234 = vmatprep.subr.mxu0 0.0
    %2235 = vmatpush1.msra.mxu0 0.0
    %2236 = vmatprep.subr.mxu0 0.0
    %2237 = vmatpush1.msra.mxu0 0.0
    %2238 = vmatprep.subr.mxu0 0.0
    %2239 = vmatpush1.msra.mxu0 0.0
    %2240 = vmatprep.mubr.f32.mxu0 0.0
    %2241 = vmatmul.mubr.f32.gmra.mrb[0].mxu0 %v2174
    %v2242 = vpop.f32.mrb[0].mxu0
    %v2243 = vadd.f32 0.0, %v2242
    %v2244 = vpop.f32.mrb[0].mxu0
    %2245 = vmatprep.mubr.f32.mxu0 0.0
    %2246 = vmatmul.mubr.f32.gmra.mrb[0].mxu0 %v2175
    %v2247 = vpop.f32.mrb[0].mxu0
    %v2248 = vadd.f32 0.0, %v2247
    %v2249 = vpop.f32.mrb[0].mxu0
    %2250 = vdwg.mxu0
    %2251 = vmatprep.subr.mxu0 0.0
    %2252 = vmatpush1.msra.mxu0 %v121
    %2253 = vmatprep.subr.mxu0 0.0
    %2254 = vmatpush1.msra.mxu0 %v122
    %2255 = vmatprep.subr.mxu0 0.0
    %2256 = vmatpush1.msra.mxu0 %v123
    %2257 = vmatprep.subr.mxu0 0.0
    %2258 = vmatpush1.msra.mxu0 %v124
    %2259 = vmatprep.subr.mxu0 0.0
    %2260 = vmatpush1.msra.mxu0 %v125
    %2261 = vmatprep.subr.mxu0 0.0
    %2262 = vmatpush1.msra.mxu0 %v126
    %2263 = vmatprep.subr.mxu0 0.0
    %2264 = vmatpush1.msra.mxu0 %v127
    %2265 = vmatprep.subr.mxu0 0.0
    %2266 = vmatpush1.msra.mxu0 %v128
    %2267 = vmatprep.subr.mxu0 0.0
    %2268 = vmatpush1.msra.mxu0 %v129
    %2269 = vmatprep.subr.mxu0 0.0
    %2270 = vmatpush1.msra.mxu0 %v130
    %2271 = vmatprep.subr.mxu0 0.0
    %2272 = vmatpush1.msra.mxu0 %v131
    %2273 = vmatprep.subr.mxu0 0.0
    %2274 = vmatpush1.msra.mxu0 %v132
    %2275 = vmatprep.subr.mxu0 0.0
    %2276 = vmatpush1.msra.mxu0 %v133
    %2277 = vmatprep.subr.mxu0 0.0
    %2278 = vmatpush1.msra.mxu0 %v134
    %2279 = vmatprep.subr.mxu0 0.0
    %2280 = vmatpush1.msra.mxu0 %v135
    %2281 = vmatprep.subr.mxu0 0.0
    %2282 = vmatpush1.msra.mxu0 %v136
    %2283 = vmatprep.subr.mxu0 0.0
    %2284 = vmatpush1.msra.mxu0 0.0
    %2285 = vmatprep.subr.mxu0 0.0
    %2286 = vmatpush1.msra.mxu0 0.0
    %2287 = vmatprep.subr.mxu0 0.0
    %2288 = vmatpush1.msra.mxu0 0.0
    %2289 = vmatprep.subr.mxu0 0.0
    %2290 = vmatpush1.msra.mxu0 0.0
    %2291 = vmatprep.subr.mxu0 0.0
    %2292 = vmatpush1.msra.mxu0 0.0
    %2293 = vmatprep.subr.mxu0 0.0
    %2294 = vmatpush1.msra.mxu0 0.0
    %2295 = vmatprep.subr.mxu0 0.0
    %2296 = vmatpush1.msra.mxu0 0.0
    %2297 = vmatprep.subr.mxu0 0.0
    %2298 = vmatpush1.msra.mxu0 0.0
    %2299 = vmatprep.subr.mxu0 0.0
    %2300 = vmatpush1.msra.mxu0 0.0
    %2301 = vmatprep.subr.mxu0 0.0
    %2302 = vmatpush1.msra.mxu0 0.0
    %2303 = vmatprep.subr.mxu0 0.0
    %2304 = vmatpush1.msra.mxu0 0.0
    %2305 = vmatprep.subr.mxu0 0.0
    %2306 = vmatpush1.msra.mxu0 0.0
    %2307 = vmatprep.subr.mxu0 0.0
    %2308 = vmatpush1.msra.mxu0 0.0
    %2309 = vmatprep.subr.mxu0 0.0
    %2310 = vmatpush1.msra.mxu0 0.0
    %2311 = vmatprep.subr.mxu0 0.0
    %2312 = vmatpush1.msra.mxu0 0.0
    %2313 = vmatprep.subr.mxu0 0.0
    %2314 = vmatpush1.msra.mxu0 0.0
    %2315 = vmatprep.mubr.f32.mxu0 0.0
    %2316 = vmatmul.mubr.f32.gmra.mrb[0].mxu0 %v2174
    %v2317 = vpop.f32.mrb[0].mxu0
    %v2318 = vadd.f32 0.0, %v2317
    %v2319 = vpop.f32.mrb[0].mxu0
    %2320 = vmatprep.mubr.f32.mxu0 0.0
    %2321 = vmatmul.mubr.f32.gmra.mrb[0].mxu0 %v2175
    %v2322 = vpop.f32.mrb[0].mxu0
    %v2323 = vadd.f32 0.0, %v2322
    %v2324 = vpop.f32.mrb[0].mxu0
    %2325 = vdwg.mxu0
    %v2326 = vmax.f32 %v2243, %v2318
    %v2327 = vmax.f32 %v2248, %v2323
    %vm2328 = vcmask 516096
    %2329 = vst.msk [vmem:[#allocation2] sm:$0x1] %vm2328, %v2326
    %v2332 = vunpack.c.l.s4 1983009808
    %v2333 = vunpack.c.0.s8 %v2332
    %v2334 = vlaneseq
    %v2335 = vshrl.u32 %v2334, 7
    %v2336 = vsub.s32 %v2333, %v2335
    %v2337 = vrot.slane %v2326, %v2336
    %v2338 = vrot.slane %v2337, 7
    %v2339 = vrot.slane %v2338, 2
    %2340 = vrot.lane.b32.xlu0 %v2339, 64
    %v2341 = vpop.permute.xlu0 %2340
    %vm2343 = vcmask 1040896
    %2344 = vst.msk [vmem:[#allocation2] sm:$0x1] %vm2343, %v2341
    %v2345 = vcombine.high %v2337, %v2337
    %2347 = vst.msk [vmem:[#allocation2 + $0x2] sm:$0x1] %vm2328, %v2345
    %v2348 = vrot.slane %v2345, 7
    %v2349 = vrot.slane %v2348, 2
    %2350 = vrot.lane.b32.xlu0 %v2349, 64
    %v2351 = vpop.permute.xlu0 %2350
    %2353 = vst.msk [vmem:[#allocation2 + $0x2] sm:$0x1] %vm2343, %v2351
    %v2354 = vcombine.high %v2326, %v2326
    %v2356 = vunpack.c.l.s4 1983009808
    %v2357 = vunpack.c.0.s8 %v2356
    %v2358 = vlaneseq
    %v2359 = vshrl.u32 %v2358, 7
    %v2360 = vsub.s32 %v2357, %v2359
    %v2361 = vrot.slane %v2354, %v2360
    %2363 = vst.msk [vmem:[#allocation2 + $0x4] sm:$0x1] %vm2328, %v2361
    %v2364 = vrot.slane %v2361, 7
    %v2365 = vrot.slane %v2364, 2
    %2366 = vrot.lane.b32.xlu0 %v2365, 64
    %v2367 = vpop.permute.xlu0 %2366
    %2369 = vst.msk [vmem:[#allocation2 + $0x4] sm:$0x1] %vm2343, %v2367
    %v2370 = vcombine.high %v2361, %v2361
    %2372 = vst.msk [vmem:[#allocation2 + $0x6] sm:$0x1] %vm2328, %v2370
    %v2373 = vrot.slane %v2370, 7
    %v2374 = vrot.slane %v2373, 2
    %2375 = vrot.lane.b32.xlu0 %v2374, 64
    %v2376 = vpop.permute.xlu0 %2375
    %2378 = vst.msk [vmem:[#allocation2 + $0x6] sm:$0x1] %vm2343, %v2376
    %2379 = vst.msk [vmem:[#allocation2 + $0x8] sm:$0x1] %vm2328, %v2327
    %v2382 = vunpack.c.l.s4 1983009808
    %v2383 = vunpack.c.0.s8 %v2382
    %v2384 = vlaneseq
    %v2385 = vshrl.u32 %v2384, 7
    %v2386 = vsub.s32 %v2383, %v2385
    %v2387 = vrot.slane %v2327, %v2386
    %v2388 = vrot.slane %v2387, 7
    %v2389 = vrot.slane %v2388, 2
    %2390 = vrot.lane.b32.xlu0 %v2389, 64
    %v2391 = vpop.permute.xlu0 %2390
    %2393 = vst.msk [vmem:[#allocation2 + $0x8] sm:$0x1] %vm2343, %v2391
    %v2394 = vcombine.high %v2387, %v2387
    %2396 = vst.msk [vmem:[#allocation2 + $0xa] sm:$0x1] %vm2328, %v2394
    %v2397 = vrot.slane %v2394, 7
    %v2398 = vrot.slane %v2397, 2
    %2399 = vrot.lane.b32.xlu0 %v2398, 64
    %v2400 = vpop.permute.xlu0 %2399
    %2402 = vst.msk [vmem:[#allocation2 + $0xa] sm:$0x1] %vm2343, %v2400
    %v2403 = vcombine.high %v2327, %v2327
    %v2405 = vunpack.c.l.s4 1983009808
    %v2406 = vunpack.c.0.s8 %v2405
    %v2407 = vlaneseq
    %v2408 = vshrl.u32 %v2407, 7
    %v2409 = vsub.s32 %v2406, %v2408
    %v2410 = vrot.slane %v2403, %v2409
    %2412 = vst.msk [vmem:[#allocation2 + $0xc] sm:$0x1] %vm2328, %v2410
    %v2413 = vrot.slane %v2410, 7
    %v2414 = vrot.slane %v2413, 2
    %2415 = vrot.lane.b32.xlu0 %v2414, 64
    %v2416 = vpop.permute.xlu0 %2415
    %2418 = vst.msk [vmem:[#allocation2 + $0xc] sm:$0x1] %vm2343, %v2416
    %s2419 = scalar_lea.vmem %s0, 72
    %v2420 = vld [vmem:[%s2419] sm:$0xff]
    %v2421 = vld [vmem:[%s2419 + $0x8] sm:$0xff]
    %v2422 = vld [vmem:[%s2419 + $0x10] sm:$0xff]
    %v2423 = vld [vmem:[%s2419 + $0x18] sm:$0xff]
    %v2424 = vld [vmem:[%s2419 + $0x20] sm:$0xff]
    %v2425 = vld [vmem:[%s2419 + $0x28] sm:$0xff]
    %v2426 = vld [vmem:[%s2419 + $0x30] sm:$0xff]
    %v2427 = vld [vmem:[%s2419 + $0x38] sm:$0xff]
    %v2428 = vld [vmem:[%s2419 + $0x40] sm:$0xf]
    %v2429 = vld [vmem:[%s1] sm:$0xff]
    %v2430 = vld [vmem:[%s1 + $0x8] sm:$0xff]
    %v2431 = vld [vmem:[%s1 + $0x10] sm:$0xff]
    %v2432 = vld [vmem:[%s1 + $0x18] sm:$0xff]
    %v2433 = vld [vmem:[%s1 + $0x20] sm:$0xff]
    %v2434 = vld [vmem:[%s1 + $0x28] sm:$0xff]
    %v2435 = vld [vmem:[%s1 + $0x30] sm:$0xf]
    %v2436 = vld [vmem:[%s1 + $0x38] sm:$0xf]
    %v2437 = vld [vmem:[%s154] sm:$0xff]
    %v2438 = vld [vmem:[%s154 + $0x8] sm:$0xff]
    %v2439 = vld [vmem:[%s154 + $0x10] sm:$0xff]
    %v2440 = vld [vmem:[%s154 + $0x18] sm:$0xff]
    %v2441 = vld [vmem:[%s154 + $0x20] sm:$0xff]
    %v2442 = vld [vmem:[%s154 + $0x28] sm:$0xff]
    %v2443 = vld [vmem:[%s154 + $0x30] sm:$0xf]
    %v2444 = vld [vmem:[%s154 + $0x38] sm:$0xf]
    %v2454 = vrot.slane %v2420, 1
    %v2455 = vrot.slane %v2421, 1
    %v2456 = vsel %vm172, %v2454, %v2455
    %v2457 = vrot.slane %v2422, 1
    %v2458 = vsel %vm172, %v2455, %v2457
    %v2459 = vrot.slane %v2423, 1
    %v2460 = vsel %vm172, %v2457, %v2459
    %v2461 = vrot.slane %v2424, 1
    %v2462 = vsel %vm172, %v2459, %v2461
    %v2463 = vrot.slane %v2425, 1
    %v2464 = vsel %vm172, %v2461, %v2463
    %v2465 = vrot.slane %v2426, 1
    %v2466 = vsel %vm172, %v2463, %v2465
    %v2467 = vrot.slane %v2427, 1
    %v2468 = vsel %vm172, %v2465, %v2467
    %v2469 = vrot.slane %v2428, 1
    %v2470 = vsel %vm172, %v2467, %v2469
    %v2471 = vsel %vm190, %v2456, 0
    %v2473 = vsel %vm190, %v2458, 0
    %v2475 = vsel %vm190, %v2460, 0
    %v2477 = vsel %vm190, %v2462, 0
    %v2479 = vsel %vm190, %v2464, 0
    %v2481 = vsel %vm190, %v2466, 0
    %v2483 = vsel %vm190, %v2468, 0
    %v2485 = vsel %vm190, %v2470, 0
    %v2488 = vsel %vm207, %v2443, 0
    %v2491 = vsel %vm207, %v2444, 0
    %2493 = vmatprep.subr.mxu0 %v2438
    %2494 = vmatpush1.msra.mxu0 %v2437
    %2495 = vmatprep.subr.mxu0 %v2440
    %2496 = vmatpush1.msra.mxu0 %v2439
    %2497 = vmatprep.subr.mxu0 %v2442
    %2498 = vmatpush1.msra.mxu0 %v2441
    %2499 = vmatprep.subr.mxu0 %v2491
    %2500 = vmatpush1.msra.mxu0 %v2488
    %2501 = vmatprep.subr.mxu0 0.0
    %2502 = vmatpush1.msra.mxu0 0.0
    %2503 = vmatprep.subr.mxu0 0.0
    %2504 = vmatpush1.msra.mxu0 0.0
    %2505 = vmatprep.subr.mxu0 0.0
    %2506 = vmatpush1.msra.mxu0 0.0
    %2507 = vmatprep.subr.mxu0 0.0
    %2508 = vmatpush1.msra.mxu0 0.0
    %2509 = vmatprep.subr.mxu0 0.0
    %2510 = vmatpush1.msra.mxu0 0.0
    %2511 = vmatprep.subr.mxu0 0.0
    %2512 = vmatpush1.msra.mxu0 0.0
    %2513 = vmatprep.subr.mxu0 0.0
    %2514 = vmatpush1.msra.mxu0 0.0
    %2515 = vmatprep.subr.mxu0 0.0
    %2516 = vmatpush1.msra.mxu0 0.0
    %2517 = vmatprep.subr.mxu0 0.0
    %2518 = vmatpush1.msra.mxu0 0.0
    %2519 = vmatprep.subr.mxu0 0.0
    %2520 = vmatpush1.msra.mxu0 0.0
    %2521 = vmatprep.subr.mxu0 0.0
    %2522 = vmatpush1.msra.mxu0 0.0
    %2523 = vmatprep.subr.mxu0 0.0
    %2524 = vmatpush1.msra.mxu0 0.0
    %2525 = vmatprep.subr.mxu0 0.0
    %2526 = vmatpush1.msra.mxu0 0.0
    %2527 = vmatprep.subr.mxu0 0.0
    %2528 = vmatpush1.msra.mxu0 0.0
    %2529 = vmatprep.subr.mxu0 0.0
    %2530 = vmatpush1.msra.mxu0 0.0
    %2531 = vmatprep.subr.mxu0 0.0
    %2532 = vmatpush1.msra.mxu0 0.0
    %2533 = vmatprep.subr.mxu0 0.0
    %2534 = vmatpush1.msra.mxu0 0.0
    %2535 = vmatprep.subr.mxu0 0.0
    %2536 = vmatpush1.msra.mxu0 0.0
    %2537 = vmatprep.subr.mxu0 0.0
    %2538 = vmatpush1.msra.mxu0 0.0
    %2539 = vmatprep.subr.mxu0 0.0
    %2540 = vmatpush1.msra.mxu0 0.0
    %2541 = vmatprep.subr.mxu0 0.0
    %2542 = vmatpush1.msra.mxu0 0.0
    %2543 = vmatprep.subr.mxu0 0.0
    %2544 = vmatpush1.msra.mxu0 0.0
    %2545 = vmatprep.subr.mxu0 0.0
    %2546 = vmatpush1.msra.mxu0 0.0
    %2547 = vmatprep.subr.mxu0 0.0
    %2548 = vmatpush1.msra.mxu0 0.0
    %2549 = vmatprep.subr.mxu0 0.0
    %2550 = vmatpush1.msra.mxu0 0.0
    %2551 = vmatprep.subr.mxu0 0.0
    %2552 = vmatpush1.msra.mxu0 0.0
    %2553 = vmatprep.subr.mxu0 0.0
    %2554 = vmatpush1.msra.mxu0 0.0
    %2555 = vmatprep.subr.mxu0 0.0
    %2556 = vmatpush1.msra.mxu0 0.0
    %2557 = vmatprep.mubr.f32.mxu0 0.0
    %2558 = vmatmul.mubr.f32.gmra.mrb[0].mxu0 %v2471
    %v2559 = vpop.f32.mrb[0].mxu0
    %v2560 = vadd.f32 0.0, %v2559
    %v2561 = vpop.f32.mrb[0].mxu0
    %v2562 = vadd.f32 0.0, %v2561
    %2563 = vmatprep.mubr.f32.mxu0 0.0
    %2564 = vmatmul.mubr.f32.gmra.mrb[0].mxu0 %v2473
    %v2565 = vpop.f32.mrb[0].mxu0
    %v2566 = vadd.f32 0.0, %v2565
    %v2567 = vpop.f32.mrb[0].mxu0
    %v2568 = vadd.f32 0.0, %v2567
    %2569 = vmatprep.mubr.f32.mxu0 0.0
    %2570 = vmatmul.mubr.f32.gmra.mrb[0].mxu0 %v2475
    %v2571 = vpop.f32.mrb[0].mxu0
    %v2572 = vadd.f32 0.0, %v2571
    %v2573 = vpop.f32.mrb[0].mxu0
    %v2574 = vadd.f32 0.0, %v2573
    %2575 = vmatprep.mubr.f32.mxu0 0.0
    %2576 = vmatmul.mubr.f32.gmra.mrb[0].mxu0 %v2477
    %v2577 = vpop.f32.mrb[0].mxu0
    %v2578 = vadd.f32 0.0, %v2577
    %v2579 = vpop.f32.mrb[0].mxu0
    %v2580 = vadd.f32 0.0, %v2579
    %2581 = vmatprep.mubr.f32.mxu0 0.0
    %2582 = vmatmul.mubr.f32.gmra.mrb[0].mxu0 %v2479
    %v2583 = vpop.f32.mrb[0].mxu0
    %v2584 = vadd.f32 0.0, %v2583
    %v2585 = vpop.f32.mrb[0].mxu0
    %v2586 = vadd.f32 0.0, %v2585
    %2587 = vmatprep.mubr.f32.mxu0 0.0
    %2588 = vmatmul.mubr.f32.gmra.mrb[0].mxu0 %v2481
    %v2589 = vpop.f32.mrb[0].mxu0
    %v2590 = vadd.f32 0.0, %v2589
    %v2591 = vpop.f32.mrb[0].mxu0
    %v2592 = vadd.f32 0.0, %v2591
    %2593 = vmatprep.mubr.f32.mxu0 0.0
    %2594 = vmatmul.mubr.f32.gmra.mrb[0].mxu0 %v2483
    %v2595 = vpop.f32.mrb[0].mxu0
    %v2596 = vadd.f32 0.0, %v2595
    %v2597 = vpop.f32.mrb[0].mxu0
    %v2598 = vadd.f32 0.0, %v2597
    %2599 = vmatprep.mubr.f32.mxu0 0.0
    %2600 = vmatmul.mubr.f32.gmra.mrb[0].mxu0 %v2485
    %v2601 = vpop.f32.mrb[0].mxu0
    %v2602 = vadd.f32 0.0, %v2601
    %v2603 = vpop.f32.mrb[0].mxu0
    %v2604 = vadd.f32 0.0, %v2603
    %2605 = vdwg.mxu0
    %v2606 = vsel %vm190, %v2420, 0
    %v2608 = vsel %vm190, %v2421, 0
    %v2610 = vsel %vm190, %v2422, 0
    %v2612 = vsel %vm190, %v2423, 0
    %v2614 = vsel %vm190, %v2424, 0
    %v2616 = vsel %vm190, %v2425, 0
    %v2618 = vsel %vm190, %v2426, 0
    %v2620 = vsel %vm190, %v2427, 0
    %v2623 = vsel %vm207, %v2435, 0
    %v2626 = vsel %vm207, %v2436, 0
    %2628 = vmatprep.subr.mxu0 %v2430
    %2629 = vmatpush1.msra.mxu0 %v2429
    %2630 = vmatprep.subr.mxu0 %v2432
    %2631 = vmatpush1.msra.mxu0 %v2431
    %2632 = vmatprep.subr.mxu0 %v2434
    %2633 = vmatpush1.msra.mxu0 %v2433
    %2634 = vmatprep.subr.mxu0 %v2626
    %2635 = vmatpush1.msra.mxu0 %v2623
    %2636 = vmatprep.subr.mxu0 0.0
    %2637 = vmatpush1.msra.mxu0 0.0
    %2638 = vmatprep.subr.mxu0 0.0
    %2639 = vmatpush1.msra.mxu0 0.0
    %2640 = vmatprep.subr.mxu0 0.0
    %2641 = vmatpush1.msra.mxu0 0.0
    %2642 = vmatprep.subr.mxu0 0.0
    %2643 = vmatpush1.msra.mxu0 0.0
    %2644 = vmatprep.subr.mxu0 0.0
    %2645 = vmatpush1.msra.mxu0 0.0
    %2646 = vmatprep.subr.mxu0 0.0
    %2647 = vmatpush1.msra.mxu0 0.0
    %2648 = vmatprep.subr.mxu0 0.0
    %2649 = vmatpush1.msra.mxu0 0.0
    %2650 = vmatprep.subr.mxu0 0.0
    %2651 = vmatpush1.msra.mxu0 0.0
    %2652 = vmatprep.subr.mxu0 0.0
    %2653 = vmatpush1.msra.mxu0 0.0
    %2654 = vmatprep.subr.mxu0 0.0
    %2655 = vmatpush1.msra.mxu0 0.0
    %2656 = vmatprep.subr.mxu0 0.0
    %2657 = vmatpush1.msra.mxu0 0.0
    %2658 = vmatprep.subr.mxu0 0.0
    %2659 = vmatpush1.msra.mxu0 0.0
    %2660 = vmatprep.subr.mxu0 0.0
    %2661 = vmatpush1.msra.mxu0 0.0
    %2662 = vmatprep.subr.mxu0 0.0
    %2663 = vmatpush1.msra.mxu0 0.0
    %2664 = vmatprep.subr.mxu0 0.0
    %2665 = vmatpush1.msra.mxu0 0.0
    %2666 = vmatprep.subr.mxu0 0.0
    %2667 = vmatpush1.msra.mxu0 0.0
    %2668 = vmatprep.subr.mxu0 0.0
    %2669 = vmatpush1.msra.mxu0 0.0
    %2670 = vmatprep.subr.mxu0 0.0
    %2671 = vmatpush1.msra.mxu0 0.0
    %2672 = vmatprep.subr.mxu0 0.0
    %2673 = vmatpush1.msra.mxu0 0.0
    %2674 = vmatprep.subr.mxu0 0.0
    %2675 = vmatpush1.msra.mxu0 0.0
    %2676 = vmatprep.subr.mxu0 0.0
    %2677 = vmatpush1.msra.mxu0 0.0
    %2678 = vmatprep.subr.mxu0 0.0
    %2679 = vmatpush1.msra.mxu0 0.0
    %2680 = vmatprep.subr.mxu0 0.0
    %2681 = vmatpush1.msra.mxu0 0.0
    %2682 = vmatprep.subr.mxu0 0.0
    %2683 = vmatpush1.msra.mxu0 0.0
    %2684 = vmatprep.subr.mxu0 0.0
    %2685 = vmatpush1.msra.mxu0 0.0
    %2686 = vmatprep.subr.mxu0 0.0
    %2687 = vmatpush1.msra.mxu0 0.0
    %2688 = vmatprep.subr.mxu0 0.0
    %2689 = vmatpush1.msra.mxu0 0.0
    %2690 = vmatprep.subr.mxu0 0.0
    %2691 = vmatpush1.msra.mxu0 0.0
    %2692 = vmatprep.mubr.f32.mxu0 0.0
    %2693 = vmatmul.mubr.f32.gmra.mrb[0].mxu0 %v2606
    %v2694 = vpop.f32.mrb[0].mxu0
    %v2695 = vadd.f32 %v2560, %v2694
    %v2696 = vpop.f32.mrb[0].mxu0
    %v2697 = vadd.f32 %v2562, %v2696
    %2698 = vmatprep.mubr.f32.mxu0 0.0
    %2699 = vmatmul.mubr.f32.gmra.mrb[0].mxu0 %v2608
    %v2700 = vpop.f32.mrb[0].mxu0
    %v2701 = vadd.f32 %v2566, %v2700
    %v2702 = vpop.f32.mrb[0].mxu0
    %v2703 = vadd.f32 %v2568, %v2702
    %2704 = vmatprep.mubr.f32.mxu0 0.0
    %2705 = vmatmul.mubr.f32.gmra.mrb[0].mxu0 %v2610
    %v2706 = vpop.f32.mrb[0].mxu0
    %v2707 = vadd.f32 %v2572, %v2706
    %v2708 = vpop.f32.mrb[0].mxu0
    %v2709 = vadd.f32 %v2574, %v2708
    %2710 = vmatprep.mubr.f32.mxu0 0.0
    %2711 = vmatmul.mubr.f32.gmra.mrb[0].mxu0 %v2612
    %v2712 = vpop.f32.mrb[0].mxu0
    %v2713 = vadd.f32 %v2578, %v2712
    %v2714 = vpop.f32.mrb[0].mxu0
    %v2715 = vadd.f32 %v2580, %v2714
    %2716 = vmatprep.mubr.f32.mxu0 0.0
    %2717 = vmatmul.mubr.f32.gmra.mrb[0].mxu0 %v2614
    %v2718 = vpop.f32.mrb[0].mxu0
    %v2719 = vadd.f32 %v2584, %v2718
    %v2720 = vpop.f32.mrb[0].mxu0
    %v2721 = vadd.f32 %v2586, %v2720
    %2722 = vmatprep.mubr.f32.mxu0 0.0
    %2723 = vmatmul.mubr.f32.gmra.mrb[0].mxu0 %v2616
    %v2724 = vpop.f32.mrb[0].mxu0
    %v2725 = vadd.f32 %v2590, %v2724
    %v2726 = vpop.f32.mrb[0].mxu0
    %v2727 = vadd.f32 %v2592, %v2726
    %2728 = vmatprep.mubr.f32.mxu0 0.0
    %2729 = vmatmul.mubr.f32.gmra.mrb[0].mxu0 %v2618
    %v2730 = vpop.f32.mrb[0].mxu0
    %v2731 = vadd.f32 %v2596, %v2730
    %v2732 = vpop.f32.mrb[0].mxu0
    %v2733 = vadd.f32 %v2598, %v2732
    %2734 = vmatprep.mubr.f32.mxu0 0.0
    %2735 = vmatmul.mubr.f32.gmra.mrb[0].mxu0 %v2620
    %v2736 = vpop.f32.mrb[0].mxu0
    %v2737 = vadd.f32 %v2602, %v2736
    %v2738 = vpop.f32.mrb[0].mxu0
    %v2739 = vadd.f32 %v2604, %v2738
    %2740 = vdwg.mxu0
    %v2741 = vld [vmem:[%s462] sm:$0xff]
    %v2742 = vld [vmem:[%s462 + $0x8] sm:$0xff]
    %v2743 = vld [vmem:[%s462 + $0x10] sm:$0xff]
    %v2744 = vld [vmem:[%s462 + $0x18] sm:$0xff]
    %v2745 = vld [vmem:[%s462 + $0x20] sm:$0xff]
    %v2746 = vld [vmem:[%s462 + $0x28] sm:$0xff]
    %v2747 = vld [vmem:[%s462 + $0x30] sm:$0xf]
    %v2748 = vld [vmem:[%s462 + $0x38] sm:$0xf]
    %v2749 = vrot.slane %v2420, 2
    %v2750 = vrot.slane %v2421, 2
    %v2751 = vsel %vm471, %v2749, %v2750
    %v2752 = vrot.slane %v2422, 2
    %v2753 = vsel %vm471, %v2750, %v2752
    %v2754 = vrot.slane %v2423, 2
    %v2755 = vsel %vm471, %v2752, %v2754
    %v2756 = vrot.slane %v2424, 2
    %v2757 = vsel %vm471, %v2754, %v2756
    %v2758 = vrot.slane %v2425, 2
    %v2759 = vsel %vm471, %v2756, %v2758
    %v2760 = vrot.slane %v2426, 2
    %v2761 = vsel %vm471, %v2758, %v2760
    %v2762 = vrot.slane %v2427, 2
    %v2763 = vsel %vm471, %v2760, %v2762
    %v2764 = vrot.slane %v2428, 2
    %v2765 = vsel %vm471, %v2762, %v2764
    %v2766 = vsel %vm190, %v2751, 0
    %v2768 = vsel %vm190, %v2753, 0
    %v2770 = vsel %vm190, %v2755, 0
    %v2772 = vsel %vm190, %v2757, 0
    %v2774 = vsel %vm190, %v2759, 0
    %v2776 = vsel %vm190, %v2761, 0
    %v2778 = vsel %vm190, %v2763, 0
    %v2780 = vsel %vm190, %v2765, 0
    %v2783 = vsel %vm207, %v2747, 0
    %v2786 = vsel %vm207, %v2748, 0
    %2788 = vmatprep.subr.mxu0 %v2742
    %2789 = vmatpush1.msra.mxu0 %v2741
    %2790 = vmatprep.subr.mxu0 %v2744
    %2791 = vmatpush1.msra.mxu0 %v2743
    %2792 = vmatprep.subr.mxu0 %v2746
    %2793 = vmatpush1.msra.mxu0 %v2745
    %2794 = vmatprep.subr.mxu0 %v2786
    %2795 = vmatpush1.msra.mxu0 %v2783
    %2796 = vmatprep.subr.mxu0 0.0
    %2797 = vmatpush1.msra.mxu0 0.0
    %2798 = vmatprep.subr.mxu0 0.0
    %2799 = vmatpush1.msra.mxu0 0.0
    %2800 = vmatprep.subr.mxu0 0.0
    %2801 = vmatpush1.msra.mxu0 0.0
    %2802 = vmatprep.subr.mxu0 0.0
    %2803 = vmatpush1.msra.mxu0 0.0
    %2804 = vmatprep.subr.mxu0 0.0
    %2805 = vmatpush1.msra.mxu0 0.0
    %2806 = vmatprep.subr.mxu0 0.0
    %2807 = vmatpush1.msra.mxu0 0.0
    %2808 = vmatprep.subr.mxu0 0.0
    %2809 = vmatpush1.msra.mxu0 0.0
    %2810 = vmatprep.subr.mxu0 0.0
    %2811 = vmatpush1.msra.mxu0 0.0
    %2812 = vmatprep.subr.mxu0 0.0
    %2813 = vmatpush1.msra.mxu0 0.0
    %2814 = vmatprep.subr.mxu0 0.0
    %2815 = vmatpush1.msra.mxu0 0.0
    %2816 = vmatprep.subr.mxu0 0.0
    %2817 = vmatpush1.msra.mxu0 0.0
    %2818 = vmatprep.subr.mxu0 0.0
    %2819 = vmatpush1.msra.mxu0 0.0
    %2820 = vmatprep.subr.mxu0 0.0
    %2821 = vmatpush1.msra.mxu0 0.0
    %2822 = vmatprep.subr.mxu0 0.0
    %2823 = vmatpush1.msra.mxu0 0.0
    %2824 = vmatprep.subr.mxu0 0.0
    %2825 = vmatpush1.msra.mxu0 0.0
    %2826 = vmatprep.subr.mxu0 0.0
    %2827 = vmatpush1.msra.mxu0 0.0
    %2828 = vmatprep.subr.mxu0 0.0
    %2829 = vmatpush1.msra.mxu0 0.0
    %2830 = vmatprep.subr.mxu0 0.0
    %2831 = vmatpush1.msra.mxu0 0.0
    %2832 = vmatprep.subr.mxu0 0.0
    %2833 = vmatpush1.msra.mxu0 0.0
    %2834 = vmatprep.subr.mxu0 0.0
    %2835 = vmatpush1.msra.mxu0 0.0
    %2836 = vmatprep.subr.mxu0 0.0
    %2837 = vmatpush1.msra.mxu0 0.0
    %2838 = vmatprep.subr.mxu0 0.0
    %2839 = vmatpush1.msra.mxu0 0.0
    %2840 = vmatprep.subr.mxu0 0.0
    %2841 = vmatpush1.msra.mxu0 0.0
    %2842 = vmatprep.subr.mxu0 0.0
    %2843 = vmatpush1.msra.mxu0 0.0
    %2844 = vmatprep.subr.mxu0 0.0
    %2845 = vmatpush1.msra.mxu0 0.0
    %2846 = vmatprep.subr.mxu0 0.0
    %2847 = vmatpush1.msra.mxu0 0.0
    %2848 = vmatprep.subr.mxu0 0.0
    %2849 = vmatpush1.msra.mxu0 0.0
    %2850 = vmatprep.subr.mxu0 0.0
    %2851 = vmatpush1.msra.mxu0 0.0
    %2852 = vmatprep.mubr.f32.mxu0 0.0
    %2853 = vmatmul.mubr.f32.gmra.mrb[0].mxu0 %v2766
    %v2854 = vpop.f32.mrb[0].mxu0
    %v2855 = vadd.f32 0.0, %v2854
    %v2856 = vpop.f32.mrb[0].mxu0
    %v2857 = vadd.f32 0.0, %v2856
    %2858 = vmatprep.mubr.f32.mxu0 0.0
    %2859 = vmatmul.mubr.f32.gmra.mrb[0].mxu0 %v2768
    %v2860 = vpop.f32.mrb[0].mxu0
    %v2861 = vadd.f32 0.0, %v2860
    %v2862 = vpop.f32.mrb[0].mxu0
    %v2863 = vadd.f32 0.0, %v2862
    %2864 = vmatprep.mubr.f32.mxu0 0.0
    %2865 = vmatmul.mubr.f32.gmra.mrb[0].mxu0 %v2770
    %v2866 = vpop.f32.mrb[0].mxu0
    %v2867 = vadd.f32 0.0, %v2866
    %v2868 = vpop.f32.mrb[0].mxu0
    %v2869 = vadd.f32 0.0, %v2868
    %2870 = vmatprep.mubr.f32.mxu0 0.0
    %2871 = vmatmul.mubr.f32.gmra.mrb[0].mxu0 %v2772
    %v2872 = vpop.f32.mrb[0].mxu0
    %v2873 = vadd.f32 0.0, %v2872
    %v2874 = vpop.f32.mrb[0].mxu0
    %v2875 = vadd.f32 0.0, %v2874
    %2876 = vmatprep.mubr.f32.mxu0 0.0
    %2877 = vmatmul.mubr.f32.gmra.mrb[0].mxu0 %v2774
    %v2878 = vpop.f32.mrb[0].mxu0
    %v2879 = vadd.f32 0.0, %v2878
    %v2880 = vpop.f32.mrb[0].mxu0
    %v2881 = vadd.f32 0.0, %v2880
    %2882 = vmatprep.mubr.f32.mxu0 0.0
    %2883 = vmatmul.mubr.f32.gmra.mrb[0].mxu0 %v2776
    %v2884 = vpop.f32.mrb[0].mxu0
    %v2885 = vadd.f32 0.0, %v2884
    %v2886 = vpop.f32.mrb[0].mxu0
    %v2887 = vadd.f32 0.0, %v2886
    %2888 = vmatprep.mubr.f32.mxu0 0.0
    %2889 = vmatmul.mubr.f32.gmra.mrb[0].mxu0 %v2778
    %v2890 = vpop.f32.mrb[0].mxu0
    %v2891 = vadd.f32 0.0, %v2890
    %v2892 = vpop.f32.mrb[0].mxu0
    %v2893 = vadd.f32 0.0, %v2892
    %2894 = vmatprep.mubr.f32.mxu0 0.0
    %2895 = vmatmul.mubr.f32.gmra.mrb[0].mxu0 %v2780
    %v2896 = vpop.f32.mrb[0].mxu0
    %v2897 = vadd.f32 0.0, %v2896
    %v2898 = vpop.f32.mrb[0].mxu0
    %v2899 = vadd.f32 0.0, %v2898
    %2900 = vdwg.mxu0
    %v2901 = vadd.f32 %v2695, %v2855
    %v2902 = vadd.f32 %v2697, %v2857
    %v2903 = vadd.f32 %v2701, %v2861
    %v2904 = vadd.f32 %v2703, %v2863
    %v2905 = vadd.f32 %v2707, %v2867
    %v2906 = vadd.f32 %v2709, %v2869
    %v2907 = vadd.f32 %v2713, %v2873
    %v2908 = vadd.f32 %v2715, %v2875
    %v2909 = vadd.f32 %v2719, %v2879
    %v2910 = vadd.f32 %v2721, %v2881
    %v2911 = vadd.f32 %v2725, %v2885
    %v2912 = vadd.f32 %v2727, %v2887
    %v2913 = vadd.f32 %v2731, %v2891
    %v2914 = vadd.f32 %v2733, %v2893
    %v2915 = vadd.f32 %v2737, %v2897
    %v2916 = vadd.f32 %v2739, %v2899
    %v2917 = vld [vmem:[%s640] sm:$0xff]
    %v2918 = vld [vmem:[%s640 + $0x8] sm:$0xff]
    %v2919 = vld [vmem:[%s640 + $0x10] sm:$0xff]
    %v2920 = vld [vmem:[%s640 + $0x18] sm:$0xff]
    %v2921 = vld [vmem:[%s640 + $0x20] sm:$0xff]
    %v2922 = vld [vmem:[%s640 + $0x28] sm:$0xff]
    %v2923 = vld [vmem:[%s640 + $0x30] sm:$0xf]
    %v2924 = vld [vmem:[%s640 + $0x38] sm:$0xf]
    %v2925 = vrot.slane %v2420, 3
    %v2926 = vrot.slane %v2421, 3
    %v2927 = vsel %vm649, %v2925, %v2926
    %v2928 = vrot.slane %v2422, 3
    %v2929 = vsel %vm649, %v2926, %v2928
    %v2930 = vrot.slane %v2423, 3
    %v2931 = vsel %vm649, %v2928, %v2930
    %v2932 = vrot.slane %v2424, 3
    %v2933 = vsel %vm649, %v2930, %v2932
    %v2934 = vrot.slane %v2425, 3
    %v2935 = vsel %vm649, %v2932, %v2934
    %v2936 = vrot.slane %v2426, 3
    %v2937 = vsel %vm649, %v2934, %v2936
    %v2938 = vrot.slane %v2427, 3
    %v2939 = vsel %vm649, %v2936, %v2938
    %v2940 = vrot.slane %v2428, 3
    %v2941 = vsel %vm649, %v2938, %v2940
    %v2942 = vsel %vm190, %v2927, 0
    %v2944 = vsel %vm190, %v2929, 0
    %v2946 = vsel %vm190, %v2931, 0
    %v2948 = vsel %vm190, %v2933, 0
    %v2950 = vsel %vm190, %v2935, 0
    %v2952 = vsel %vm190, %v2937, 0
    %v2954 = vsel %vm190, %v2939, 0
    %v2956 = vsel %vm190, %v2941, 0
    %v2959 = vsel %vm207, %v2923, 0
    %v2962 = vsel %vm207, %v2924, 0
    %2964 = vmatprep.subr.mxu0 %v2918
    %2965 = vmatpush1.msra.mxu0 %v2917
    %2966 = vmatprep.subr.mxu0 %v2920
    %2967 = vmatpush1.msra.mxu0 %v2919
    %2968 = vmatprep.subr.mxu0 %v2922
    %2969 = vmatpush1.msra.mxu0 %v2921
    %2970 = vmatprep.subr.mxu0 %v2962
    %2971 = vmatpush1.msra.mxu0 %v2959
    %2972 = vmatprep.subr.mxu0 0.0
    %2973 = vmatpush1.msra.mxu0 0.0
    %2974 = vmatprep.subr.mxu0 0.0
    %2975 = vmatpush1.msra.mxu0 0.0
    %2976 = vmatprep.subr.mxu0 0.0
    %2977 = vmatpush1.msra.mxu0 0.0
    %2978 = vmatprep.subr.mxu0 0.0
    %2979 = vmatpush1.msra.mxu0 0.0
    %2980 = vmatprep.subr.mxu0 0.0
    %2981 = vmatpush1.msra.mxu0 0.0
    %2982 = vmatprep.subr.mxu0 0.0
    %2983 = vmatpush1.msra.mxu0 0.0
    %2984 = vmatprep.subr.mxu0 0.0
    %2985 = vmatpush1.msra.mxu0 0.0
    %2986 = vmatprep.subr.mxu0 0.0
    %2987 = vmatpush1.msra.mxu0 0.0
    %2988 = vmatprep.subr.mxu0 0.0
    %2989 = vmatpush1.msra.mxu0 0.0
    %2990 = vmatprep.subr.mxu0 0.0
    %2991 = vmatpush1.msra.mxu0 0.0
    %2992 = vmatprep.subr.mxu0 0.0
    %2993 = vmatpush1.msra.mxu0 0.0
    %2994 = vmatprep.subr.mxu0 0.0
    %2995 = vmatpush1.msra.mxu0 0.0
    %2996 = vmatprep.subr.mxu0 0.0
    %2997 = vmatpush1.msra.mxu0 0.0
    %2998 = vmatprep.subr.mxu0 0.0
    %2999 = vmatpush1.msra.mxu0 0.0
    %3000 = vmatprep.subr.mxu0 0.0
    %3001 = vmatpush1.msra.mxu0 0.0
    %3002 = vmatprep.subr.mxu0 0.0
    %3003 = vmatpush1.msra.mxu0 0.0
    %3004 = vmatprep.subr.mxu0 0.0
    %3005 = vmatpush1.msra.mxu0 0.0
    %3006 = vmatprep.subr.mxu0 0.0
    %3007 = vmatpush1.msra.mxu0 0.0
    %3008 = vmatprep.subr.mxu0 0.0
    %3009 = vmatpush1.msra.mxu0 0.0
    %3010 = vmatprep.subr.mxu0 0.0
    %3011 = vmatpush1.msra.mxu0 0.0
    %3012 = vmatprep.subr.mxu0 0.0
    %3013 = vmatpush1.msra.mxu0 0.0
    %3014 = vmatprep.subr.mxu0 0.0
    %3015 = vmatpush1.msra.mxu0 0.0
    %3016 = vmatprep.subr.mxu0 0.0
    %3017 = vmatpush1.msra.mxu0 0.0
    %3018 = vmatprep.subr.mxu0 0.0
    %3019 = vmatpush1.msra.mxu0 0.0
    %3020 = vmatprep.subr.mxu0 0.0
    %3021 = vmatpush1.msra.mxu0 0.0
    %3022 = vmatprep.subr.mxu0 0.0
    %3023 = vmatpush1.msra.mxu0 0.0
    %3024 = vmatprep.subr.mxu0 0.0
    %3025 = vmatpush1.msra.mxu0 0.0
    %3026 = vmatprep.subr.mxu0 0.0
    %3027 = vmatpush1.msra.mxu0 0.0
    %3028 = vmatprep.mubr.f32.mxu0 0.0
    %3029 = vmatmul.mubr.f32.gmra.mrb[0].mxu0 %v2942
    %v3030 = vpop.f32.mrb[0].mxu0
    %v3031 = vadd.f32 0.0, %v3030
    %v3032 = vpop.f32.mrb[0].mxu0
    %v3033 = vadd.f32 0.0, %v3032
    %3034 = vmatprep.mubr.f32.mxu0 0.0
    %3035 = vmatmul.mubr.f32.gmra.mrb[0].mxu0 %v2944
    %v3036 = vpop.f32.mrb[0].mxu0
    %v3037 = vadd.f32 0.0, %v3036
    %v3038 = vpop.f32.mrb[0].mxu0
    %v3039 = vadd.f32 0.0, %v3038
    %3040 = vmatprep.mubr.f32.mxu0 0.0
    %3041 = vmatmul.mubr.f32.gmra.mrb[0].mxu0 %v2946
    %v3042 = vpop.f32.mrb[0].mxu0
    %v3043 = vadd.f32 0.0, %v3042
    %v3044 = vpop.f32.mrb[0].mxu0
    %v3045 = vadd.f32 0.0, %v3044
    %3046 = vmatprep.mubr.f32.mxu0 0.0
    %3047 = vmatmul.mubr.f32.gmra.mrb[0].mxu0 %v2948
    %v3048 = vpop.f32.mrb[0].mxu0
    %v3049 = vadd.f32 0.0, %v3048
    %v3050 = vpop.f32.mrb[0].mxu0
    %v3051 = vadd.f32 0.0, %v3050
    %3052 = vmatprep.mubr.f32.mxu0 0.0
    %3053 = vmatmul.mubr.f32.gmra.mrb[0].mxu0 %v2950
    %v3054 = vpop.f32.mrb[0].mxu0
    %v3055 = vadd.f32 0.0, %v3054
    %v3056 = vpop.f32.mrb[0].mxu0
    %v3057 = vadd.f32 0.0, %v3056
    %3058 = vmatprep.mubr.f32.mxu0 0.0
    %3059 = vmatmul.mubr.f32.gmra.mrb[0].mxu0 %v2952
    %v3060 = vpop.f32.mrb[0].mxu0
    %v3061 = vadd.f32 0.0, %v3060
    %v3062 = vpop.f32.mrb[0].mxu0
    %v3063 = vadd.f32 0.0, %v3062
    %3064 = vmatprep.mubr.f32.mxu0 0.0
    %3065 = vmatmul.mubr.f32.gmra.mrb[0].mxu0 %v2954
    %v3066 = vpop.f32.mrb[0].mxu0
    %v3067 = vadd.f32 0.0, %v3066
    %v3068 = vpop.f32.mrb[0].mxu0
    %v3069 = vadd.f32 0.0, %v3068
    %3070 = vmatprep.mubr.f32.mxu0 0.0
    %3071 = vmatmul.mubr.f32.gmra.mrb[0].mxu0 %v2956
    %v3072 = vpop.f32.mrb[0].mxu0
    %v3073 = vadd.f32 0.0, %v3072
    %v3074 = vpop.f32.mrb[0].mxu0
    %v3075 = vadd.f32 0.0, %v3074
    %3076 = vdwg.mxu0
    %v3077 = vadd.f32 %v2901, %v3031
    %v3078 = vadd.f32 %v2902, %v3033
    %v3079 = vadd.f32 %v2903, %v3037
    %v3080 = vadd.f32 %v2904, %v3039
    %v3081 = vadd.f32 %v2905, %v3043
    %v3082 = vadd.f32 %v2906, %v3045
    %v3083 = vadd.f32 %v2907, %v3049
    %v3084 = vadd.f32 %v2908, %v3051
    %v3085 = vadd.f32 %v2909, %v3055
    %v3086 = vadd.f32 %v2910, %v3057
    %v3087 = vadd.f32 %v2911, %v3061
    %v3088 = vadd.f32 %v2912, %v3063
    %v3089 = vadd.f32 %v2913, %v3067
    %v3090 = vadd.f32 %v2914, %v3069
    %v3091 = vadd.f32 %v2915, %v3073
    %v3092 = vadd.f32 %v2916, %v3075
    %v3093 = vld [vmem:[%s818] sm:$0xff]
    %v3094 = vld [vmem:[%s818 + $0x8] sm:$0xff]
    %v3095 = vld [vmem:[%s818 + $0x10] sm:$0xff]
    %v3096 = vld [vmem:[%s818 + $0x18] sm:$0xff]
    %v3097 = vld [vmem:[%s818 + $0x20] sm:$0xff]
    %v3098 = vld [vmem:[%s818 + $0x28] sm:$0xff]
    %v3099 = vld [vmem:[%s818 + $0x30] sm:$0xf]
    %v3100 = vld [vmem:[%s818 + $0x38] sm:$0xf]
    %v3101 = vrot.slane %v2420, 4
    %v3102 = vrot.slane %v2421, 4
    %v3103 = vsel %vm207, %v3101, %v3102
    %v3104 = vrot.slane %v2422, 4
    %v3105 = vsel %vm207, %v3102, %v3104
    %v3106 = vrot.slane %v2423, 4
    %v3107 = vsel %vm207, %v3104, %v3106
    %v3108 = vrot.slane %v2424, 4
    %v3109 = vsel %vm207, %v3106, %v3108
    %v3110 = vrot.slane %v2425, 4
    %v3111 = vsel %vm207, %v3108, %v3110
    %v3112 = vrot.slane %v2426, 4
    %v3113 = vsel %vm207, %v3110, %v3112
    %v3114 = vrot.slane %v2427, 4
    %v3115 = vsel %vm207, %v3112, %v3114
    %v3116 = vrot.slane %v2428, 4
    %v3117 = vsel %vm207, %v3114, %v3116
    %v3118 = vsel %vm190, %v3103, 0
    %v3120 = vsel %vm190, %v3105, 0
    %v3122 = vsel %vm190, %v3107, 0
    %v3124 = vsel %vm190, %v3109, 0
    %v3126 = vsel %vm190, %v3111, 0
    %v3128 = vsel %vm190, %v3113, 0
    %v3130 = vsel %vm190, %v3115, 0
    %v3132 = vsel %vm190, %v3117, 0
    %v3135 = vsel %vm207, %v3099, 0
    %v3138 = vsel %vm207, %v3100, 0
    %3140 = vmatprep.subr.mxu0 %v3094
    %3141 = vmatpush1.msra.mxu0 %v3093
    %3142 = vmatprep.subr.mxu0 %v3096
    %3143 = vmatpush1.msra.mxu0 %v3095
    %3144 = vmatprep.subr.mxu0 %v3098
    %3145 = vmatpush1.msra.mxu0 %v3097
    %3146 = vmatprep.subr.mxu0 %v3138
    %3147 = vmatpush1.msra.mxu0 %v3135
    %3148 = vmatprep.subr.mxu0 0.0
    %3149 = vmatpush1.msra.mxu0 0.0
    %3150 = vmatprep.subr.mxu0 0.0
    %3151 = vmatpush1.msra.mxu0 0.0
    %3152 = vmatprep.subr.mxu0 0.0
    %3153 = vmatpush1.msra.mxu0 0.0
    %3154 = vmatprep.subr.mxu0 0.0
    %3155 = vmatpush1.msra.mxu0 0.0
    %3156 = vmatprep.subr.mxu0 0.0
    %3157 = vmatpush1.msra.mxu0 0.0
    %3158 = vmatprep.subr.mxu0 0.0
    %3159 = vmatpush1.msra.mxu0 0.0
    %3160 = vmatprep.subr.mxu0 0.0
    %3161 = vmatpush1.msra.mxu0 0.0
    %3162 = vmatprep.subr.mxu0 0.0
    %3163 = vmatpush1.msra.mxu0 0.0
    %3164 = vmatprep.subr.mxu0 0.0
    %3165 = vmatpush1.msra.mxu0 0.0
    %3166 = vmatprep.subr.mxu0 0.0
    %3167 = vmatpush1.msra.mxu0 0.0
    %3168 = vmatprep.subr.mxu0 0.0
    %3169 = vmatpush1.msra.mxu0 0.0
    %3170 = vmatprep.subr.mxu0 0.0
    %3171 = vmatpush1.msra.mxu0 0.0
    %3172 = vmatprep.subr.mxu0 0.0
    %3173 = vmatpush1.msra.mxu0 0.0
    %3174 = vmatprep.subr.mxu0 0.0
    %3175 = vmatpush1.msra.mxu0 0.0
    %3176 = vmatprep.subr.mxu0 0.0
    %3177 = vmatpush1.msra.mxu0 0.0
    %3178 = vmatprep.subr.mxu0 0.0
    %3179 = vmatpush1.msra.mxu0 0.0
    %3180 = vmatprep.subr.mxu0 0.0
    %3181 = vmatpush1.msra.mxu0 0.0
    %3182 = vmatprep.subr.mxu0 0.0
    %3183 = vmatpush1.msra.mxu0 0.0
    %3184 = vmatprep.subr.mxu0 0.0
    %3185 = vmatpush1.msra.mxu0 0.0
    %3186 = vmatprep.subr.mxu0 0.0
    %3187 = vmatpush1.msra.mxu0 0.0
    %3188 = vmatprep.subr.mxu0 0.0
    %3189 = vmatpush1.msra.mxu0 0.0
    %3190 = vmatprep.subr.mxu0 0.0
    %3191 = vmatpush1.msra.mxu0 0.0
    %3192 = vmatprep.subr.mxu0 0.0
    %3193 = vmatpush1.msra.mxu0 0.0
    %3194 = vmatprep.subr.mxu0 0.0
    %3195 = vmatpush1.msra.mxu0 0.0
    %3196 = vmatprep.subr.mxu0 0.0
    %3197 = vmatpush1.msra.mxu0 0.0
    %3198 = vmatprep.subr.mxu0 0.0
    %3199 = vmatpush1.msra.mxu0 0.0
    %3200 = vmatprep.subr.mxu0 0.0
    %3201 = vmatpush1.msra.mxu0 0.0
    %3202 = vmatprep.subr.mxu0 0.0
    %3203 = vmatpush1.msra.mxu0 0.0
    %3204 = vmatprep.mubr.f32.mxu0 0.0
    %3205 = vmatmul.mubr.f32.gmra.mrb[0].mxu0 %v3118
    %v3206 = vpop.f32.mrb[0].mxu0
    %v3207 = vadd.f32 0.0, %v3206
    %v3208 = vpop.f32.mrb[0].mxu0
    %v3209 = vadd.f32 0.0, %v3208
    %3210 = vmatprep.mubr.f32.mxu0 0.0
    %3211 = vmatmul.mubr.f32.gmra.mrb[0].mxu0 %v3120
    %v3212 = vpop.f32.mrb[0].mxu0
    %v3213 = vadd.f32 0.0, %v3212
    %v3214 = vpop.f32.mrb[0].mxu0
    %v3215 = vadd.f32 0.0, %v3214
    %3216 = vmatprep.mubr.f32.mxu0 0.0
    %3217 = vmatmul.mubr.f32.gmra.mrb[0].mxu0 %v3122
    %v3218 = vpop.f32.mrb[0].mxu0
    %v3219 = vadd.f32 0.0, %v3218
    %v3220 = vpop.f32.mrb[0].mxu0
    %v3221 = vadd.f32 0.0, %v3220
    %3222 = vmatprep.mubr.f32.mxu0 0.0
    %3223 = vmatmul.mubr.f32.gmra.mrb[0].mxu0 %v3124
    %v3224 = vpop.f32.mrb[0].mxu0
    %v3225 = vadd.f32 0.0, %v3224
    %v3226 = vpop.f32.mrb[0].mxu0
    %v3227 = vadd.f32 0.0, %v3226
    %3228 = vmatprep.mubr.f32.mxu0 0.0
    %3229 = vmatmul.mubr.f32.gmra.mrb[0].mxu0 %v3126
    %v3230 = vpop.f32.mrb[0].mxu0
    %v3231 = vadd.f32 0.0, %v3230
    %v3232 = vpop.f32.mrb[0].mxu0
    %v3233 = vadd.f32 0.0, %v3232
    %3234 = vmatprep.mubr.f32.mxu0 0.0
    %3235 = vmatmul.mubr.f32.gmra.mrb[0].mxu0 %v3128
    %v3236 = vpop.f32.mrb[0].mxu0
    %v3237 = vadd.f32 0.0, %v3236
    %v3238 = vpop.f32.mrb[0].mxu0
    %v3239 = vadd.f32 0.0, %v3238
    %3240 = vmatprep.mubr.f32.mxu0 0.0
    %3241 = vmatmul.mubr.f32.gmra.mrb[0].mxu0 %v3130
    %v3242 = vpop.f32.mrb[0].mxu0
    %v3243 = vadd.f32 0.0, %v3242
    %v3244 = vpop.f32.mrb[0].mxu0
    %v3245 = vadd.f32 0.0, %v3244
    %3246 = vmatprep.mubr.f32.mxu0 0.0
    %3247 = vmatmul.mubr.f32.gmra.mrb[0].mxu0 %v3132
    %v3248 = vpop.f32.mrb[0].mxu0
    %v3249 = vadd.f32 0.0, %v3248
    %v3250 = vpop.f32.mrb[0].mxu0
    %v3251 = vadd.f32 0.0, %v3250
    %3252 = vdwg.mxu0
    %v3253 = vadd.f32 %v3077, %v3207
    %v3254 = vadd.f32 %v3078, %v3209
    %v3255 = vadd.f32 %v3079, %v3213
    %v3256 = vadd.f32 %v3080, %v3215
    %v3257 = vadd.f32 %v3081, %v3219
    %v3258 = vadd.f32 %v3082, %v3221
    %v3259 = vadd.f32 %v3083, %v3225
    %v3260 = vadd.f32 %v3084, %v3227
    %v3261 = vadd.f32 %v3085, %v3231
    %v3262 = vadd.f32 %v3086, %v3233
    %v3263 = vadd.f32 %v3087, %v3237
    %v3264 = vadd.f32 %v3088, %v3239
    %v3265 = vadd.f32 %v3089, %v3243
    %v3266 = vadd.f32 %v3090, %v3245
    %v3267 = vadd.f32 %v3091, %v3249
    %v3268 = vadd.f32 %v3092, %v3251
    %v3269 = vadd.f32 %v3253, %v999
    %v3270 = vadd.f32 %v3254, %v1003
    %v3271 = vadd.f32 %v3255, %v999
    %v3272 = vadd.f32 %v3256, %v1003
    %v3273 = vadd.f32 %v3257, %v999
    %v3274 = vadd.f32 %v3258, %v1003
    %v3275 = vadd.f32 %v3259, %v999
    %v3276 = vadd.f32 %v3260, %v1003
    %v3277 = vadd.f32 %v3261, %v999
    %v3278 = vadd.f32 %v3262, %v1003
    %v3279 = vadd.f32 %v3263, %v999
    %v3280 = vadd.f32 %v3264, %v1003
    %v3281 = vadd.f32 %v3265, %v999
    %v3282 = vadd.f32 %v3266, %v1003
    %v3283 = vadd.f32 %v3267, %v999
    %v3284 = vadd.f32 %v3268, %v1003
    %v3285 = vmax.f32 %v3269, 0.0
    %v3286 = vmax.f32 %v3270, 0.0
    %v3287 = vmax.f32 %v3271, 0.0
    %v3288 = vmax.f32 %v3272, 0.0
    %v3289 = vmax.f32 %v3273, 0.0
    %v3290 = vmax.f32 %v3274, 0.0
    %v3291 = vmax.f32 %v3275, 0.0
    %v3292 = vmax.f32 %v3276, 0.0
    %v3293 = vmax.f32 %v3277, 0.0
    %v3294 = vmax.f32 %v3278, 0.0
    %v3295 = vmax.f32 %v3279, 0.0
    %v3296 = vmax.f32 %v3280, 0.0
    %v3297 = vmax.f32 %v3281, 0.0
    %v3298 = vmax.f32 %v3282, 0.0
    %v3299 = vmax.f32 %v3283, 0.0
    %v3300 = vmax.f32 %v3284, 0.0
    %3301 = vmatprep.subr.mxu0 %v3286
    %3302 = vmatpush1.msra.mxu0 %v3285
    %3303 = vmatprep.subr.mxu0 %v3288
    %3304 = vmatpush1.msra.mxu0 %v3287
    %3305 = vmatprep.subr.mxu0 %v3290
    %3306 = vmatpush1.msra.mxu0 %v3289
    %3307 = vmatprep.subr.mxu0 %v3292
    %3308 = vmatpush1.msra.mxu0 %v3291
    %3309 = vmatprep.subr.mxu0 %v3294
    %3310 = vmatpush1.msra.mxu0 %v3293
    %3311 = vmatprep.subr.mxu0 %v3296
    %3312 = vmatpush1.msra.mxu0 %v3295
    %3313 = vmatprep.subr.mxu0 %v3298
    %3314 = vmatpush1.msra.mxu0 %v3297
    %3315 = vmatprep.subr.mxu0 %v3300
    %3316 = vmatpush1.msra.mxu0 %v3299
    %3317 = vmatprep.subr.mxu0 0.0
    %3318 = vmatpush1.msra.mxu0 0.0
    %3319 = vmatprep.subr.mxu0 0.0
    %3320 = vmatpush1.msra.mxu0 0.0
    %3321 = vmatprep.subr.mxu0 0.0
    %3322 = vmatpush1.msra.mxu0 0.0
    %3323 = vmatprep.subr.mxu0 0.0
    %3324 = vmatpush1.msra.mxu0 0.0
    %3325 = vmatprep.subr.mxu0 0.0
    %3326 = vmatpush1.msra.mxu0 0.0
    %3327 = vmatprep.subr.mxu0 0.0
    %3328 = vmatpush1.msra.mxu0 0.0
    %3329 = vmatprep.subr.mxu0 0.0
    %3330 = vmatpush1.msra.mxu0 0.0
    %3331 = vmatprep.subr.mxu0 0.0
    %3332 = vmatpush1.msra.mxu0 0.0
    %3333 = vmatprep.subr.mxu0 0.0
    %3334 = vmatpush1.msra.mxu0 0.0
    %3335 = vmatprep.subr.mxu0 0.0
    %3336 = vmatpush1.msra.mxu0 0.0
    %3337 = vmatprep.subr.mxu0 0.0
    %3338 = vmatpush1.msra.mxu0 0.0
    %3339 = vmatprep.subr.mxu0 0.0
    %3340 = vmatpush1.msra.mxu0 0.0
    %3341 = vmatprep.subr.mxu0 0.0
    %3342 = vmatpush1.msra.mxu0 0.0
    %3343 = vmatprep.subr.mxu0 0.0
    %3344 = vmatpush1.msra.mxu0 0.0
    %3345 = vmatprep.subr.mxu0 0.0
    %3346 = vmatpush1.msra.mxu0 0.0
    %3347 = vmatprep.subr.mxu0 0.0
    %3348 = vmatpush1.msra.mxu0 0.0
    %3349 = vmatprep.subr.mxu0 0.0
    %3350 = vmatpush1.msra.mxu0 0.0
    %3351 = vmatprep.subr.mxu0 0.0
    %3352 = vmatpush1.msra.mxu0 0.0
    %3353 = vmatprep.subr.mxu0 0.0
    %3354 = vmatpush1.msra.mxu0 0.0
    %3355 = vmatprep.subr.mxu0 0.0
    %3356 = vmatpush1.msra.mxu0 0.0
    %3357 = vmatprep.subr.mxu0 0.0
    %3358 = vmatpush1.msra.mxu0 0.0
    %3359 = vmatprep.subr.mxu0 0.0
    %3360 = vmatpush1.msra.mxu0 0.0
    %3361 = vmatprep.subr.mxu0 0.0
    %3362 = vmatpush1.msra.mxu0 0.0
    %3363 = vmatprep.subr.mxu0 0.0
    %3364 = vmatpush1.msra.mxu0 0.0
    %3365 = vmatprep.mubr.f32.mxu0 0.0
    %3366 = vmatmul.mubr.f32.gmra.mrb[0].mxu0 %v1040
    %v3367 = vpop.f32.mrb[0].mxu0
    %v3368 = vadd.f32 0.0, %v3367
    %v3369 = vpop.f32.mrb[0].mxu0
    %v3370 = vadd.f32 0.0, %v3369
    %3371 = vmatprep.mubr.f32.mxu0 0.0
    %3372 = vmatmul.mubr.f32.gmra.mrb[0].mxu0 %v1043
    %v3373 = vpop.f32.mrb[0].mxu0
    %v3374 = vadd.f32 0.0, %v3373
    %v3375 = vpop.f32.mrb[0].mxu0
    %v3376 = vadd.f32 0.0, %v3375
    %3377 = vmatprep.mubr.f32.mxu0 0.0
    %3378 = vmatmul.mubr.f32.gmra.mrb[0].mxu0 %v1046
    %v3379 = vpop.f32.mrb[0].mxu0
    %v3380 = vadd.f32 0.0, %v3379
    %v3381 = vpop.f32.mrb[0].mxu0
    %v3382 = vadd.f32 0.0, %v3381
    %3383 = vmatprep.mubr.f32.mxu0 0.0
    %3384 = vmatmul.mubr.f32.gmra.mrb[0].mxu0 %v1049
    %v3385 = vpop.f32.mrb[0].mxu0
    %v3386 = vadd.f32 0.0, %v3385
    %v3387 = vpop.f32.mrb[0].mxu0
    %v3388 = vadd.f32 0.0, %v3387
    %3389 = vdwg.mxu0
    %3390 = vmatprep.subr.mxu0 %v3286
    %3391 = vmatpush1.msra.mxu0 %v3285
    %3392 = vmatprep.subr.mxu0 %v3288
    %3393 = vmatpush1.msra.mxu0 %v3287
    %3394 = vmatprep.subr.mxu0 %v3290
    %3395 = vmatpush1.msra.mxu0 %v3289
    %3396 = vmatprep.subr.mxu0 %v3292
    %3397 = vmatpush1.msra.mxu0 %v3291
    %3398 = vmatprep.subr.mxu0 %v3294
    %3399 = vmatpush1.msra.mxu0 %v3293
    %3400 = vmatprep.subr.mxu0 %v3296
    %3401 = vmatpush1.msra.mxu0 %v3295
    %3402 = vmatprep.subr.mxu0 %v3298
    %3403 = vmatpush1.msra.mxu0 %v3297
    %3404 = vmatprep.subr.mxu0 %v3300
    %3405 = vmatpush1.msra.mxu0 %v3299
    %3406 = vmatprep.subr.mxu0 0.0
    %3407 = vmatpush1.msra.mxu0 0.0
    %3408 = vmatprep.subr.mxu0 0.0
    %3409 = vmatpush1.msra.mxu0 0.0
    %3410 = vmatprep.subr.mxu0 0.0
    %3411 = vmatpush1.msra.mxu0 0.0
    %3412 = vmatprep.subr.mxu0 0.0
    %3413 = vmatpush1.msra.mxu0 0.0
    %3414 = vmatprep.subr.mxu0 0.0
    %3415 = vmatpush1.msra.mxu0 0.0
    %3416 = vmatprep.subr.mxu0 0.0
    %3417 = vmatpush1.msra.mxu0 0.0
    %3418 = vmatprep.subr.mxu0 0.0
    %3419 = vmatpush1.msra.mxu0 0.0
    %3420 = vmatprep.subr.mxu0 0.0
    %3421 = vmatpush1.msra.mxu0 0.0
    %3422 = vmatprep.subr.mxu0 0.0
    %3423 = vmatpush1.msra.mxu0 0.0
    %3424 = vmatprep.subr.mxu0 0.0
    %3425 = vmatpush1.msra.mxu0 0.0
    %3426 = vmatprep.subr.mxu0 0.0
    %3427 = vmatpush1.msra.mxu0 0.0
    %3428 = vmatprep.subr.mxu0 0.0
    %3429 = vmatpush1.msra.mxu0 0.0
    %3430 = vmatprep.subr.mxu0 0.0
    %3431 = vmatpush1.msra.mxu0 0.0
    %3432 = vmatprep.subr.mxu0 0.0
    %3433 = vmatpush1.msra.mxu0 0.0
    %3434 = vmatprep.subr.mxu0 0.0
    %3435 = vmatpush1.msra.mxu0 0.0
    %3436 = vmatprep.subr.mxu0 0.0
    %3437 = vmatpush1.msra.mxu0 0.0
    %3438 = vmatprep.subr.mxu0 0.0
    %3439 = vmatpush1.msra.mxu0 0.0
    %3440 = vmatprep.subr.mxu0 0.0
    %3441 = vmatpush1.msra.mxu0 0.0
    %3442 = vmatprep.subr.mxu0 0.0
    %3443 = vmatpush1.msra.mxu0 0.0
    %3444 = vmatprep.subr.mxu0 0.0
    %3445 = vmatpush1.msra.mxu0 0.0
    %3446 = vmatprep.subr.mxu0 0.0
    %3447 = vmatpush1.msra.mxu0 0.0
    %3448 = vmatprep.subr.mxu0 0.0
    %3449 = vmatpush1.msra.mxu0 0.0
    %3450 = vmatprep.subr.mxu0 0.0
    %3451 = vmatpush1.msra.mxu0 0.0
    %3452 = vmatprep.subr.mxu0 0.0
    %3453 = vmatpush1.msra.mxu0 0.0
    %3454 = vmatprep.mubr.f32.mxu0 0.0
    %3455 = vmatmul.mubr.f32.gmra.mrb[0].mxu0 %v1141
    %v3456 = vpop.f32.mrb[0].mxu0
    %v3457 = vadd.f32 0.0, %v3456
    %v3458 = vpop.f32.mrb[0].mxu0
    %v3459 = vadd.f32 0.0, %v3458
    %3460 = vmatprep.mubr.f32.mxu0 0.0
    %3461 = vmatmul.mubr.f32.gmra.mrb[0].mxu0 %v1144
    %v3462 = vpop.f32.mrb[0].mxu0
    %v3463 = vadd.f32 0.0, %v3462
    %v3464 = vpop.f32.mrb[0].mxu0
    %v3465 = vadd.f32 0.0, %v3464
    %3466 = vmatprep.mubr.f32.mxu0 0.0
    %3467 = vmatmul.mubr.f32.gmra.mrb[0].mxu0 %v1147
    %v3468 = vpop.f32.mrb[0].mxu0
    %v3469 = vadd.f32 0.0, %v3468
    %v3470 = vpop.f32.mrb[0].mxu0
    %v3471 = vadd.f32 0.0, %v3470
    %3472 = vmatprep.mubr.f32.mxu0 0.0
    %3473 = vmatmul.mubr.f32.gmra.mrb[0].mxu0 %v1150
    %v3474 = vpop.f32.mrb[0].mxu0
    %v3475 = vadd.f32 0.0, %v3474
    %v3476 = vpop.f32.mrb[0].mxu0
    %v3477 = vadd.f32 0.0, %v3476
    %3478 = vdwg.mxu0
    %v3479 = vmax.f32 %v3368, %v3457
    %v3480 = vmax.f32 %v3370, %v3459
    %v3481 = vmax.f32 %v3374, %v3463
    %v3482 = vmax.f32 %v3376, %v3465
    %v3483 = vmax.f32 %v3380, %v3469
    %v3484 = vmax.f32 %v3382, %v3471
    %v3485 = vmax.f32 %v3386, %v3475
    %v3486 = vmax.f32 %v3388, %v3477
    %v3488 = vsel %vm1249, %v3480, 0
    %v3491 = vsel %vm1249, %v3482, 0
    %v3494 = vsel %vm1249, %v3484, 0
    %v3497 = vsel %vm1249, %v3486, 0
    %3499 = vmatprep.subr.mxu0 0.0
    %3500 = vmatpush1.msra.mxu0 %v62
    %3501 = vmatprep.subr.mxu0 0.0
    %3502 = vmatpush1.msra.mxu0 %v63
    %3503 = vmatprep.subr.mxu0 0.0
    %3504 = vmatpush1.msra.mxu0 %v64
    %3505 = vmatprep.subr.mxu0 0.0
    %3506 = vmatpush1.msra.mxu0 %v65
    %3507 = vmatprep.subr.mxu0 0.0
    %3508 = vmatpush1.msra.mxu0 %v66
    %3509 = vmatprep.subr.mxu0 0.0
    %3510 = vmatpush1.msra.mxu0 %v67
    %3511 = vmatprep.subr.mxu0 0.0
    %3512 = vmatpush1.msra.mxu0 %v68
    %3513 = vmatprep.subr.mxu0 0.0
    %3514 = vmatpush1.msra.mxu0 %v69
    %3515 = vmatprep.subr.mxu0 0.0
    %3516 = vmatpush1.msra.mxu0 %v70
    %3517 = vmatprep.subr.mxu0 0.0
    %3518 = vmatpush1.msra.mxu0 %v71
    %3519 = vmatprep.subr.mxu0 0.0
    %3520 = vmatpush1.msra.mxu0 %v72
    %3521 = vmatprep.subr.mxu0 0.0
    %3522 = vmatpush1.msra.mxu0 %v73
    %3523 = vmatprep.subr.mxu0 0.0
    %3524 = vmatpush1.msra.mxu0 %v74
    %3525 = vmatprep.subr.mxu0 0.0
    %3526 = vmatpush1.msra.mxu0 %v75
    %3527 = vmatprep.subr.mxu0 0.0
    %3528 = vmatpush1.msra.mxu0 %v76
    %3529 = vmatprep.subr.mxu0 0.0
    %3530 = vmatpush1.msra.mxu0 %v77
    %3531 = vmatprep.subr.mxu0 0.0
    %3532 = vmatpush1.msra.mxu0 %v78
    %3533 = vmatprep.subr.mxu0 0.0
    %3534 = vmatpush1.msra.mxu0 %v79
    %3535 = vmatprep.subr.mxu0 0.0
    %3536 = vmatpush1.msra.mxu0 0.0
    %3537 = vmatprep.subr.mxu0 0.0
    %3538 = vmatpush1.msra.mxu0 0.0
    %3539 = vmatprep.subr.mxu0 0.0
    %3540 = vmatpush1.msra.mxu0 0.0
    %3541 = vmatprep.subr.mxu0 0.0
    %3542 = vmatpush1.msra.mxu0 0.0
    %3543 = vmatprep.subr.mxu0 0.0
    %3544 = vmatpush1.msra.mxu0 0.0
    %3545 = vmatprep.subr.mxu0 0.0
    %3546 = vmatpush1.msra.mxu0 0.0
    %3547 = vmatprep.subr.mxu0 0.0
    %3548 = vmatpush1.msra.mxu0 0.0
    %3549 = vmatprep.subr.mxu0 0.0
    %3550 = vmatpush1.msra.mxu0 0.0
    %3551 = vmatprep.subr.mxu0 0.0
    %3552 = vmatpush1.msra.mxu0 0.0
    %3553 = vmatprep.subr.mxu0 0.0
    %3554 = vmatpush1.msra.mxu0 0.0
    %3555 = vmatprep.subr.mxu0 0.0
    %3556 = vmatpush1.msra.mxu0 0.0
    %3557 = vmatprep.subr.mxu0 0.0
    %3558 = vmatpush1.msra.mxu0 0.0
    %3559 = vmatprep.subr.mxu0 0.0
    %3560 = vmatpush1.msra.mxu0 0.0
    %3561 = vmatprep.subr.mxu0 0.0
    %3562 = vmatpush1.msra.mxu0 0.0
    %3563 = vmatprep.mubr.f32.mxu0 %v3488
    %3564 = vmatmul.mubr.f32.gmra.mrb[0].mxu0 %v3479
    %v3565 = vpop.f32.mrb[0].mxu0
    %v3566 = vadd.f32 0.0, %v3565
    %v3567 = vpop.f32.mrb[0].mxu0
    %3568 = vmatprep.mubr.f32.mxu0 %v3491
    %3569 = vmatmul.mubr.f32.gmra.mrb[0].mxu0 %v3481
    %v3570 = vpop.f32.mrb[0].mxu0
    %v3571 = vadd.f32 0.0, %v3570
    %v3572 = vpop.f32.mrb[0].mxu0
    %3573 = vmatprep.mubr.f32.mxu0 %v3494
    %3574 = vmatmul.mubr.f32.gmra.mrb[0].mxu0 %v3483
    %v3575 = vpop.f32.mrb[0].mxu0
    %v3576 = vadd.f32 0.0, %v3575
    %v3577 = vpop.f32.mrb[0].mxu0
    %3578 = vmatprep.mubr.f32.mxu0 %v3497
    %3579 = vmatmul.mubr.f32.gmra.mrb[0].mxu0 %v3485
    %v3580 = vpop.f32.mrb[0].mxu0
    %v3581 = vadd.f32 0.0, %v3580
    %v3582 = vpop.f32.mrb[0].mxu0
    %3583 = vdwg.mxu0
    %3584 = vmatprep.subr.mxu0 0.0
    %3585 = vmatpush1.msra.mxu0 %v81
    %3586 = vmatprep.subr.mxu0 0.0
    %3587 = vmatpush1.msra.mxu0 %v82
    %3588 = vmatprep.subr.mxu0 0.0
    %3589 = vmatpush1.msra.mxu0 %v83
    %3590 = vmatprep.subr.mxu0 0.0
    %3591 = vmatpush1.msra.mxu0 %v84
    %3592 = vmatprep.subr.mxu0 0.0
    %3593 = vmatpush1.msra.mxu0 %v85
    %3594 = vmatprep.subr.mxu0 0.0
    %3595 = vmatpush1.msra.mxu0 %v86
    %3596 = vmatprep.subr.mxu0 0.0
    %3597 = vmatpush1.msra.mxu0 %v87
    %3598 = vmatprep.subr.mxu0 0.0
    %3599 = vmatpush1.msra.mxu0 %v88
    %3600 = vmatprep.subr.mxu0 0.0
    %3601 = vmatpush1.msra.mxu0 %v89
    %3602 = vmatprep.subr.mxu0 0.0
    %3603 = vmatpush1.msra.mxu0 %v90
    %3604 = vmatprep.subr.mxu0 0.0
    %3605 = vmatpush1.msra.mxu0 %v91
    %3606 = vmatprep.subr.mxu0 0.0
    %3607 = vmatpush1.msra.mxu0 %v92
    %3608 = vmatprep.subr.mxu0 0.0
    %3609 = vmatpush1.msra.mxu0 %v93
    %3610 = vmatprep.subr.mxu0 0.0
    %3611 = vmatpush1.msra.mxu0 %v94
    %3612 = vmatprep.subr.mxu0 0.0
    %3613 = vmatpush1.msra.mxu0 %v95
    %3614 = vmatprep.subr.mxu0 0.0
    %3615 = vmatpush1.msra.mxu0 %v96
    %3616 = vmatprep.subr.mxu0 0.0
    %3617 = vmatpush1.msra.mxu0 %v97
    %3618 = vmatprep.subr.mxu0 0.0
    %3619 = vmatpush1.msra.mxu0 %v98
    %3620 = vmatprep.subr.mxu0 0.0
    %3621 = vmatpush1.msra.mxu0 0.0
    %3622 = vmatprep.subr.mxu0 0.0
    %3623 = vmatpush1.msra.mxu0 0.0
    %3624 = vmatprep.subr.mxu0 0.0
    %3625 = vmatpush1.msra.mxu0 0.0
    %3626 = vmatprep.subr.mxu0 0.0
    %3627 = vmatpush1.msra.mxu0 0.0
    %3628 = vmatprep.subr.mxu0 0.0
    %3629 = vmatpush1.msra.mxu0 0.0
    %3630 = vmatprep.subr.mxu0 0.0
    %3631 = vmatpush1.msra.mxu0 0.0
    %3632 = vmatprep.subr.mxu0 0.0
    %3633 = vmatpush1.msra.mxu0 0.0
    %3634 = vmatprep.subr.mxu0 0.0
    %3635 = vmatpush1.msra.mxu0 0.0
    %3636 = vmatprep.subr.mxu0 0.0
    %3637 = vmatpush1.msra.mxu0 0.0
    %3638 = vmatprep.subr.mxu0 0.0
    %3639 = vmatpush1.msra.mxu0 0.0
    %3640 = vmatprep.subr.mxu0 0.0
    %3641 = vmatpush1.msra.mxu0 0.0
    %3642 = vmatprep.subr.mxu0 0.0
    %3643 = vmatpush1.msra.mxu0 0.0
    %3644 = vmatprep.subr.mxu0 0.0
    %3645 = vmatpush1.msra.mxu0 0.0
    %3646 = vmatprep.subr.mxu0 0.0
    %3647 = vmatpush1.msra.mxu0 0.0
    %3648 = vmatprep.mubr.f32.mxu0 %v3488
    %3649 = vmatmul.mubr.f32.gmra.mrb[0].mxu0 %v3479
    %v3650 = vpop.f32.mrb[0].mxu0
    %v3651 = vadd.f32 0.0, %v3650
    %v3652 = vpop.f32.mrb[0].mxu0
    %3653 = vmatprep.mubr.f32.mxu0 %v3491
    %3654 = vmatmul.mubr.f32.gmra.mrb[0].mxu0 %v3481
    %v3655 = vpop.f32.mrb[0].mxu0
    %v3656 = vadd.f32 0.0, %v3655
    %v3657 = vpop.f32.mrb[0].mxu0
    %3658 = vmatprep.mubr.f32.mxu0 %v3494
    %3659 = vmatmul.mubr.f32.gmra.mrb[0].mxu0 %v3483
    %v3660 = vpop.f32.mrb[0].mxu0
    %v3661 = vadd.f32 0.0, %v3660
    %v3662 = vpop.f32.mrb[0].mxu0
    %3663 = vmatprep.mubr.f32.mxu0 %v3497
    %3664 = vmatmul.mubr.f32.gmra.mrb[0].mxu0 %v3485
    %v3665 = vpop.f32.mrb[0].mxu0
    %v3666 = vadd.f32 0.0, %v3665
    %v3667 = vpop.f32.mrb[0].mxu0
    %3668 = vdwg.mxu0
    %v3669 = vmax.f32 %v3566, %v3651
    %v3670 = vmax.f32 %v3571, %v3656
    %v3671 = vmax.f32 %v3576, %v3661
    %v3672 = vmax.f32 %v3581, %v3666
    %v3673 = vld [vmem:[%s5] sm:$0xff]
    %v3674 = vld [vmem:[%s5 + $0x8] sm:$0xff]
    %v3675 = vld [vmem:[%s5 + $0x10] sm:$0xff]
    %v3676 = vld [vmem:[%s5 + $0x18] sm:$0xff]
    %v3677 = vld [vmem:[%s5 + $0x20] sm:$0xff]
    %v3678 = vld [vmem:[%s5 + $0x28] sm:$0xff]
    %v3679 = vld [vmem:[%s5 + $0x30] sm:$0xff]
    %v3680 = vld [vmem:[%s5 + $0x38] sm:$0xff]
    %v3681 = vld [vmem:[%s5 + $0x40] sm:$0xff]
    %v3682 = vld [vmem:[%s1445] sm:$0xff]
    %v3683 = vld [vmem:[%s1445 + $0x8] sm:$0xff]
    %v3684 = vld [vmem:[%s1445 + $0x10] sm:$0xff]
    %v3685 = vld [vmem:[%s1445 + $0x18] sm:$0xff]
    %v3686 = vld [vmem:[%s1445 + $0x20] sm:$0xff]
    %v3687 = vld [vmem:[%s1445 + $0x28] sm:$0xff]
    %v3688 = vld [vmem:[%s1445 + $0x30] sm:$0xff]
    %v3689 = vld [vmem:[%s1445 + $0x38] sm:$0xff]
    %v3690 = vld [vmem:[%s1445 + $0x40] sm:$0xff]
    %v3695 = vrot.slane %v3669, 1
    %v3696 = vrot.slane %v3670, 1
    %v3697 = vsel %vm172, %v3695, %v3696
    %v3698 = vrot.slane %v3671, 1
    %v3699 = vsel %vm172, %v3696, %v3698
    %v3700 = vrot.slane %v3672, 1
    %v3701 = vsel %vm172, %v3698, %v3700
    %v3702 = vsel %vm1466, %v3697, 0
    %v3704 = vsel %vm1466, %v3699, 0
    %v3706 = vsel %vm1466, %v3701, 0
    %v3708 = vsel %vm1466, %v3700, 0
    %3710 = vmatprep.subr.mxu0 0.0
    %3711 = vmatpush1.msra.mxu0 %v3682
    %3712 = vmatprep.subr.mxu0 0.0
    %3713 = vmatpush1.msra.mxu0 %v3683
    %3714 = vmatprep.subr.mxu0 0.0
    %3715 = vmatpush1.msra.mxu0 %v3684
    %3716 = vmatprep.subr.mxu0 0.0
    %3717 = vmatpush1.msra.mxu0 %v3685
    %3718 = vmatprep.subr.mxu0 0.0
    %3719 = vmatpush1.msra.mxu0 %v3686
    %3720 = vmatprep.subr.mxu0 0.0
    %3721 = vmatpush1.msra.mxu0 %v3687
    %3722 = vmatprep.subr.mxu0 0.0
    %3723 = vmatpush1.msra.mxu0 %v3688
    %3724 = vmatprep.subr.mxu0 0.0
    %3725 = vmatpush1.msra.mxu0 %v3689
    %3726 = vmatprep.subr.mxu0 0.0
    %3727 = vmatpush1.msra.mxu0 %v3690
    %3728 = vmatprep.subr.mxu0 0.0
    %3729 = vmatpush1.msra.mxu0 0.0
    %3730 = vmatprep.subr.mxu0 0.0
    %3731 = vmatpush1.msra.mxu0 0.0
    %3732 = vmatprep.subr.mxu0 0.0
    %3733 = vmatpush1.msra.mxu0 0.0
    %3734 = vmatprep.subr.mxu0 0.0
    %3735 = vmatpush1.msra.mxu0 0.0
    %3736 = vmatprep.subr.mxu0 0.0
    %3737 = vmatpush1.msra.mxu0 0.0
    %3738 = vmatprep.subr.mxu0 0.0
    %3739 = vmatpush1.msra.mxu0 0.0
    %3740 = vmatprep.subr.mxu0 0.0
    %3741 = vmatpush1.msra.mxu0 0.0
    %3742 = vmatprep.subr.mxu0 0.0
    %3743 = vmatpush1.msra.mxu0 0.0
    %3744 = vmatprep.subr.mxu0 0.0
    %3745 = vmatpush1.msra.mxu0 0.0
    %3746 = vmatprep.subr.mxu0 0.0
    %3747 = vmatpush1.msra.mxu0 0.0
    %3748 = vmatprep.subr.mxu0 0.0
    %3749 = vmatpush1.msra.mxu0 0.0
    %3750 = vmatprep.subr.mxu0 0.0
    %3751 = vmatpush1.msra.mxu0 0.0
    %3752 = vmatprep.subr.mxu0 0.0
    %3753 = vmatpush1.msra.mxu0 0.0
    %3754 = vmatprep.subr.mxu0 0.0
    %3755 = vmatpush1.msra.mxu0 0.0
    %3756 = vmatprep.subr.mxu0 0.0
    %3757 = vmatpush1.msra.mxu0 0.0
    %3758 = vmatprep.subr.mxu0 0.0
    %3759 = vmatpush1.msra.mxu0 0.0
    %3760 = vmatprep.subr.mxu0 0.0
    %3761 = vmatpush1.msra.mxu0 0.0
    %3762 = vmatprep.subr.mxu0 0.0
    %3763 = vmatpush1.msra.mxu0 0.0
    %3764 = vmatprep.subr.mxu0 0.0
    %3765 = vmatpush1.msra.mxu0 0.0
    %3766 = vmatprep.subr.mxu0 0.0
    %3767 = vmatpush1.msra.mxu0 0.0
    %3768 = vmatprep.subr.mxu0 0.0
    %3769 = vmatpush1.msra.mxu0 0.0
    %3770 = vmatprep.subr.mxu0 0.0
    %3771 = vmatpush1.msra.mxu0 0.0
    %3772 = vmatprep.subr.mxu0 0.0
    %3773 = vmatpush1.msra.mxu0 0.0
    %3774 = vmatprep.mubr.f32.mxu0 0.0
    %3775 = vmatmul.mubr.f32.gmra.mrb[0].mxu0 %v3702
    %v3776 = vpop.f32.mrb[0].mxu0
    %v3777 = vadd.f32 0.0, %v3776
    %v3778 = vpop.f32.mrb[0].mxu0
    %3779 = vmatprep.mubr.f32.mxu0 0.0
    %3780 = vmatmul.mubr.f32.gmra.mrb[0].mxu0 %v3704
    %v3781 = vpop.f32.mrb[0].mxu0
    %v3782 = vadd.f32 0.0, %v3781
    %v3783 = vpop.f32.mrb[0].mxu0
    %3784 = vmatprep.mubr.f32.mxu0 0.0
    %3785 = vmatmul.mubr.f32.gmra.mrb[0].mxu0 %v3706
    %v3786 = vpop.f32.mrb[0].mxu0
    %v3787 = vadd.f32 0.0, %v3786
    %v3788 = vpop.f32.mrb[0].mxu0
    %3789 = vmatprep.mubr.f32.mxu0 0.0
    %3790 = vmatmul.mubr.f32.gmra.mrb[0].mxu0 %v3708
    %v3791 = vpop.f32.mrb[0].mxu0
    %v3792 = vadd.f32 0.0, %v3791
    %v3793 = vpop.f32.mrb[0].mxu0
    %3794 = vdwg.mxu0
    %v3795 = vsel %vm1466, %v3669, 0
    %v3797 = vsel %vm1466, %v3670, 0
    %v3799 = vsel %vm1466, %v3671, 0
    %v3801 = vsel %vm1466, %v3672, 0
    %3803 = vmatprep.subr.mxu0 0.0
    %3804 = vmatpush1.msra.mxu0 %v3673
    %3805 = vmatprep.subr.mxu0 0.0
    %3806 = vmatpush1.msra.mxu0 %v3674
    %3807 = vmatprep.subr.mxu0 0.0
    %3808 = vmatpush1.msra.mxu0 %v3675
    %3809 = vmatprep.subr.mxu0 0.0
    %3810 = vmatpush1.msra.mxu0 %v3676
    %3811 = vmatprep.subr.mxu0 0.0
    %3812 = vmatpush1.msra.mxu0 %v3677
    %3813 = vmatprep.subr.mxu0 0.0
    %3814 = vmatpush1.msra.mxu0 %v3678
    %3815 = vmatprep.subr.mxu0 0.0
    %3816 = vmatpush1.msra.mxu0 %v3679
    %3817 = vmatprep.subr.mxu0 0.0
    %3818 = vmatpush1.msra.mxu0 %v3680
    %3819 = vmatprep.subr.mxu0 0.0
    %3820 = vmatpush1.msra.mxu0 %v3681
    %3821 = vmatprep.subr.mxu0 0.0
    %3822 = vmatpush1.msra.mxu0 0.0
    %3823 = vmatprep.subr.mxu0 0.0
    %3824 = vmatpush1.msra.mxu0 0.0
    %3825 = vmatprep.subr.mxu0 0.0
    %3826 = vmatpush1.msra.mxu0 0.0
    %3827 = vmatprep.subr.mxu0 0.0
    %3828 = vmatpush1.msra.mxu0 0.0
    %3829 = vmatprep.subr.mxu0 0.0
    %3830 = vmatpush1.msra.mxu0 0.0
    %3831 = vmatprep.subr.mxu0 0.0
    %3832 = vmatpush1.msra.mxu0 0.0
    %3833 = vmatprep.subr.mxu0 0.0
    %3834 = vmatpush1.msra.mxu0 0.0
    %3835 = vmatprep.subr.mxu0 0.0
    %3836 = vmatpush1.msra.mxu0 0.0
    %3837 = vmatprep.subr.mxu0 0.0
    %3838 = vmatpush1.msra.mxu0 0.0
    %3839 = vmatprep.subr.mxu0 0.0
    %3840 = vmatpush1.msra.mxu0 0.0
    %3841 = vmatprep.subr.mxu0 0.0
    %3842 = vmatpush1.msra.mxu0 0.0
    %3843 = vmatprep.subr.mxu0 0.0
    %3844 = vmatpush1.msra.mxu0 0.0
    %3845 = vmatprep.subr.mxu0 0.0
    %3846 = vmatpush1.msra.mxu0 0.0
    %3847 = vmatprep.subr.mxu0 0.0
    %3848 = vmatpush1.msra.mxu0 0.0
    %3849 = vmatprep.subr.mxu0 0.0
    %3850 = vmatpush1.msra.mxu0 0.0
    %3851 = vmatprep.subr.mxu0 0.0
    %3852 = vmatpush1.msra.mxu0 0.0
    %3853 = vmatprep.subr.mxu0 0.0
    %3854 = vmatpush1.msra.mxu0 0.0
    %3855 = vmatprep.subr.mxu0 0.0
    %3856 = vmatpush1.msra.mxu0 0.0
    %3857 = vmatprep.subr.mxu0 0.0
    %3858 = vmatpush1.msra.mxu0 0.0
    %3859 = vmatprep.subr.mxu0 0.0
    %3860 = vmatpush1.msra.mxu0 0.0
    %3861 = vmatprep.subr.mxu0 0.0
    %3862 = vmatpush1.msra.mxu0 0.0
    %3863 = vmatprep.subr.mxu0 0.0
    %3864 = vmatpush1.msra.mxu0 0.0
    %3865 = vmatprep.subr.mxu0 0.0
    %3866 = vmatpush1.msra.mxu0 0.0
    %3867 = vmatprep.mubr.f32.mxu0 0.0
    %3868 = vmatmul.mubr.f32.gmra.mrb[0].mxu0 %v3795
    %v3869 = vpop.f32.mrb[0].mxu0
    %v3870 = vadd.f32 %v3777, %v3869
    %v3871 = vpop.f32.mrb[0].mxu0
    %3872 = vmatprep.mubr.f32.mxu0 0.0
    %3873 = vmatmul.mubr.f32.gmra.mrb[0].mxu0 %v3797
    %v3874 = vpop.f32.mrb[0].mxu0
    %v3875 = vadd.f32 %v3782, %v3874
    %v3876 = vpop.f32.mrb[0].mxu0
    %3877 = vmatprep.mubr.f32.mxu0 0.0
    %3878 = vmatmul.mubr.f32.gmra.mrb[0].mxu0 %v3799
    %v3879 = vpop.f32.mrb[0].mxu0
    %v3880 = vadd.f32 %v3787, %v3879
    %v3881 = vpop.f32.mrb[0].mxu0
    %3882 = vmatprep.mubr.f32.mxu0 0.0
    %3883 = vmatmul.mubr.f32.gmra.mrb[0].mxu0 %v3801
    %v3884 = vpop.f32.mrb[0].mxu0
    %v3885 = vadd.f32 %v3792, %v3884
    %v3886 = vpop.f32.mrb[0].mxu0
    %3887 = vdwg.mxu0
    %v3888 = vld [vmem:[%s1653] sm:$0xff]
    %v3889 = vld [vmem:[%s1653 + $0x8] sm:$0xff]
    %v3890 = vld [vmem:[%s1653 + $0x10] sm:$0xff]
    %v3891 = vld [vmem:[%s1653 + $0x18] sm:$0xff]
    %v3892 = vld [vmem:[%s1653 + $0x20] sm:$0xff]
    %v3893 = vld [vmem:[%s1653 + $0x28] sm:$0xff]
    %v3894 = vld [vmem:[%s1653 + $0x30] sm:$0xff]
    %v3895 = vld [vmem:[%s1653 + $0x38] sm:$0xff]
    %v3896 = vld [vmem:[%s1653 + $0x40] sm:$0xff]
    %v3897 = vrot.slane %v3669, 2
    %v3898 = vrot.slane %v3670, 2
    %v3899 = vsel %vm471, %v3897, %v3898
    %v3900 = vrot.slane %v3671, 2
    %v3901 = vsel %vm471, %v3898, %v3900
    %v3902 = vrot.slane %v3672, 2
    %v3903 = vsel %vm471, %v3900, %v3902
    %v3904 = vsel %vm1466, %v3899, 0
    %v3906 = vsel %vm1466, %v3901, 0
    %v3908 = vsel %vm1466, %v3903, 0
    %v3910 = vsel %vm1466, %v3902, 0
    %3912 = vmatprep.subr.mxu0 0.0
    %3913 = vmatpush1.msra.mxu0 %v3888
    %3914 = vmatprep.subr.mxu0 0.0
    %3915 = vmatpush1.msra.mxu0 %v3889
    %3916 = vmatprep.subr.mxu0 0.0
    %3917 = vmatpush1.msra.mxu0 %v3890
    %3918 = vmatprep.subr.mxu0 0.0
    %3919 = vmatpush1.msra.mxu0 %v3891
    %3920 = vmatprep.subr.mxu0 0.0
    %3921 = vmatpush1.msra.mxu0 %v3892
    %3922 = vmatprep.subr.mxu0 0.0
    %3923 = vmatpush1.msra.mxu0 %v3893
    %3924 = vmatprep.subr.mxu0 0.0
    %3925 = vmatpush1.msra.mxu0 %v3894
    %3926 = vmatprep.subr.mxu0 0.0
    %3927 = vmatpush1.msra.mxu0 %v3895
    %3928 = vmatprep.subr.mxu0 0.0
    %3929 = vmatpush1.msra.mxu0 %v3896
    %3930 = vmatprep.subr.mxu0 0.0
    %3931 = vmatpush1.msra.mxu0 0.0
    %3932 = vmatprep.subr.mxu0 0.0
    %3933 = vmatpush1.msra.mxu0 0.0
    %3934 = vmatprep.subr.mxu0 0.0
    %3935 = vmatpush1.msra.mxu0 0.0
    %3936 = vmatprep.subr.mxu0 0.0
    %3937 = vmatpush1.msra.mxu0 0.0
    %3938 = vmatprep.subr.mxu0 0.0
    %3939 = vmatpush1.msra.mxu0 0.0
    %3940 = vmatprep.subr.mxu0 0.0
    %3941 = vmatpush1.msra.mxu0 0.0
    %3942 = vmatprep.subr.mxu0 0.0
    %3943 = vmatpush1.msra.mxu0 0.0
    %3944 = vmatprep.subr.mxu0 0.0
    %3945 = vmatpush1.msra.mxu0 0.0
    %3946 = vmatprep.subr.mxu0 0.0
    %3947 = vmatpush1.msra.mxu0 0.0
    %3948 = vmatprep.subr.mxu0 0.0
    %3949 = vmatpush1.msra.mxu0 0.0
    %3950 = vmatprep.subr.mxu0 0.0
    %3951 = vmatpush1.msra.mxu0 0.0
    %3952 = vmatprep.subr.mxu0 0.0
    %3953 = vmatpush1.msra.mxu0 0.0
    %3954 = vmatprep.subr.mxu0 0.0
    %3955 = vmatpush1.msra.mxu0 0.0
    %3956 = vmatprep.subr.mxu0 0.0
    %3957 = vmatpush1.msra.mxu0 0.0
    %3958 = vmatprep.subr.mxu0 0.0
    %3959 = vmatpush1.msra.mxu0 0.0
    %3960 = vmatprep.subr.mxu0 0.0
    %3961 = vmatpush1.msra.mxu0 0.0
    %3962 = vmatprep.subr.mxu0 0.0
    %3963 = vmatpush1.msra.mxu0 0.0
    %3964 = vmatprep.subr.mxu0 0.0
    %3965 = vmatpush1.msra.mxu0 0.0
    %3966 = vmatprep.subr.mxu0 0.0
    %3967 = vmatpush1.msra.mxu0 0.0
    %3968 = vmatprep.subr.mxu0 0.0
    %3969 = vmatpush1.msra.mxu0 0.0
    %3970 = vmatprep.subr.mxu0 0.0
    %3971 = vmatpush1.msra.mxu0 0.0
    %3972 = vmatprep.subr.mxu0 0.0
    %3973 = vmatpush1.msra.mxu0 0.0
    %3974 = vmatprep.subr.mxu0 0.0
    %3975 = vmatpush1.msra.mxu0 0.0
    %3976 = vmatprep.mubr.f32.mxu0 0.0
    %3977 = vmatmul.mubr.f32.gmra.mrb[0].mxu0 %v3904
    %v3978 = vpop.f32.mrb[0].mxu0
    %v3979 = vadd.f32 0.0, %v3978
    %v3980 = vpop.f32.mrb[0].mxu0
    %3981 = vmatprep.mubr.f32.mxu0 0.0
    %3982 = vmatmul.mubr.f32.gmra.mrb[0].mxu0 %v3906
    %v3983 = vpop.f32.mrb[0].mxu0
    %v3984 = vadd.f32 0.0, %v3983
    %v3985 = vpop.f32.mrb[0].mxu0
    %3986 = vmatprep.mubr.f32.mxu0 0.0
    %3987 = vmatmul.mubr.f32.gmra.mrb[0].mxu0 %v3908
    %v3988 = vpop.f32.mrb[0].mxu0
    %v3989 = vadd.f32 0.0, %v3988
    %v3990 = vpop.f32.mrb[0].mxu0
    %3991 = vmatprep.mubr.f32.mxu0 0.0
    %3992 = vmatmul.mubr.f32.gmra.mrb[0].mxu0 %v3910
    %v3993 = vpop.f32.mrb[0].mxu0
    %v3994 = vadd.f32 0.0, %v3993
    %v3995 = vpop.f32.mrb[0].mxu0
    %3996 = vdwg.mxu0
    %v3997 = vadd.f32 %v3870, %v3979
    %v3998 = vadd.f32 %v3875, %v3984
    %v3999 = vadd.f32 %v3880, %v3989
    %v4000 = vadd.f32 %v3885, %v3994
    %v4001 = vld [vmem:[%s1767] sm:$0xff]
    %v4002 = vld [vmem:[%s1767 + $0x8] sm:$0xff]
    %v4003 = vld [vmem:[%s1767 + $0x10] sm:$0xff]
    %v4004 = vld [vmem:[%s1767 + $0x18] sm:$0xff]
    %v4005 = vld [vmem:[%s1767 + $0x20] sm:$0xff]
    %v4006 = vld [vmem:[%s1767 + $0x28] sm:$0xff]
    %v4007 = vld [vmem:[%s1767 + $0x30] sm:$0xff]
    %v4008 = vld [vmem:[%s1767 + $0x38] sm:$0xff]
    %v4009 = vld [vmem:[%s1767 + $0x40] sm:$0xff]
    %v4010 = vrot.slane %v3669, 3
    %v4011 = vrot.slane %v3670, 3
    %v4012 = vsel %vm649, %v4010, %v4011
    %v4013 = vrot.slane %v3671, 3
    %v4014 = vsel %vm649, %v4011, %v4013
    %v4015 = vrot.slane %v3672, 3
    %v4016 = vsel %vm649, %v4013, %v4015
    %v4017 = vsel %vm1466, %v4012, 0
    %v4019 = vsel %vm1466, %v4014, 0
    %v4021 = vsel %vm1466, %v4016, 0
    %v4023 = vsel %vm1466, %v4015, 0
    %4025 = vmatprep.subr.mxu0 0.0
    %4026 = vmatpush1.msra.mxu0 %v4001
    %4027 = vmatprep.subr.mxu0 0.0
    %4028 = vmatpush1.msra.mxu0 %v4002
    %4029 = vmatprep.subr.mxu0 0.0
    %4030 = vmatpush1.msra.mxu0 %v4003
    %4031 = vmatprep.subr.mxu0 0.0
    %4032 = vmatpush1.msra.mxu0 %v4004
    %4033 = vmatprep.subr.mxu0 0.0
    %4034 = vmatpush1.msra.mxu0 %v4005
    %4035 = vmatprep.subr.mxu0 0.0
    %4036 = vmatpush1.msra.mxu0 %v4006
    %4037 = vmatprep.subr.mxu0 0.0
    %4038 = vmatpush1.msra.mxu0 %v4007
    %4039 = vmatprep.subr.mxu0 0.0
    %4040 = vmatpush1.msra.mxu0 %v4008
    %4041 = vmatprep.subr.mxu0 0.0
    %4042 = vmatpush1.msra.mxu0 %v4009
    %4043 = vmatprep.subr.mxu0 0.0
    %4044 = vmatpush1.msra.mxu0 0.0
    %4045 = vmatprep.subr.mxu0 0.0
    %4046 = vmatpush1.msra.mxu0 0.0
    %4047 = vmatprep.subr.mxu0 0.0
    %4048 = vmatpush1.msra.mxu0 0.0
    %4049 = vmatprep.subr.mxu0 0.0
    %4050 = vmatpush1.msra.mxu0 0.0
    %4051 = vmatprep.subr.mxu0 0.0
    %4052 = vmatpush1.msra.mxu0 0.0
    %4053 = vmatprep.subr.mxu0 0.0
    %4054 = vmatpush1.msra.mxu0 0.0
    %4055 = vmatprep.subr.mxu0 0.0
    %4056 = vmatpush1.msra.mxu0 0.0
    %4057 = vmatprep.subr.mxu0 0.0
    %4058 = vmatpush1.msra.mxu0 0.0
    %4059 = vmatprep.subr.mxu0 0.0
    %4060 = vmatpush1.msra.mxu0 0.0
    %4061 = vmatprep.subr.mxu0 0.0
    %4062 = vmatpush1.msra.mxu0 0.0
    %4063 = vmatprep.subr.mxu0 0.0
    %4064 = vmatpush1.msra.mxu0 0.0
    %4065 = vmatprep.subr.mxu0 0.0
    %4066 = vmatpush1.msra.mxu0 0.0
    %4067 = vmatprep.subr.mxu0 0.0
    %4068 = vmatpush1.msra.mxu0 0.0
    %4069 = vmatprep.subr.mxu0 0.0
    %4070 = vmatpush1.msra.mxu0 0.0
    %4071 = vmatprep.subr.mxu0 0.0
    %4072 = vmatpush1.msra.mxu0 0.0
    %4073 = vmatprep.subr.mxu0 0.0
    %4074 = vmatpush1.msra.mxu0 0.0
    %4075 = vmatprep.subr.mxu0 0.0
    %4076 = vmatpush1.msra.mxu0 0.0
    %4077 = vmatprep.subr.mxu0 0.0
    %4078 = vmatpush1.msra.mxu0 0.0
    %4079 = vmatprep.subr.mxu0 0.0
    %4080 = vmatpush1.msra.mxu0 0.0
    %4081 = vmatprep.subr.mxu0 0.0
    %4082 = vmatpush1.msra.mxu0 0.0
    %4083 = vmatprep.subr.mxu0 0.0
    %4084 = vmatpush1.msra.mxu0 0.0
    %4085 = vmatprep.subr.mxu0 0.0
    %4086 = vmatpush1.msra.mxu0 0.0
    %4087 = vmatprep.subr.mxu0 0.0
    %4088 = vmatpush1.msra.mxu0 0.0
    %4089 = vmatprep.mubr.f32.mxu0 0.0
    %4090 = vmatmul.mubr.f32.gmra.mrb[0].mxu0 %v4017
    %v4091 = vpop.f32.mrb[0].mxu0
    %v4092 = vadd.f32 0.0, %v4091
    %v4093 = vpop.f32.mrb[0].mxu0
    %4094 = vmatprep.mubr.f32.mxu0 0.0
    %4095 = vmatmul.mubr.f32.gmra.mrb[0].mxu0 %v4019
    %v4096 = vpop.f32.mrb[0].mxu0
    %v4097 = vadd.f32 0.0, %v4096
    %v4098 = vpop.f32.mrb[0].mxu0
    %4099 = vmatprep.mubr.f32.mxu0 0.0
    %4100 = vmatmul.mubr.f32.gmra.mrb[0].mxu0 %v4021
    %v4101 = vpop.f32.mrb[0].mxu0
    %v4102 = vadd.f32 0.0, %v4101
    %v4103 = vpop.f32.mrb[0].mxu0
    %4104 = vmatprep.mubr.f32.mxu0 0.0
    %4105 = vmatmul.mubr.f32.gmra.mrb[0].mxu0 %v4023
    %v4106 = vpop.f32.mrb[0].mxu0
    %v4107 = vadd.f32 0.0, %v4106
    %v4108 = vpop.f32.mrb[0].mxu0
    %4109 = vdwg.mxu0
    %v4110 = vadd.f32 %v3997, %v4092
    %v4111 = vadd.f32 %v3998, %v4097
    %v4112 = vadd.f32 %v3999, %v4102
    %v4113 = vadd.f32 %v4000, %v4107
    %v4114 = vld [vmem:[%s1881] sm:$0xff]
    %v4115 = vld [vmem:[%s1881 + $0x8] sm:$0xff]
    %v4116 = vld [vmem:[%s1881 + $0x10] sm:$0xff]
    %v4117 = vld [vmem:[%s1881 + $0x18] sm:$0xff]
    %v4118 = vld [vmem:[%s1881 + $0x20] sm:$0xff]
    %v4119 = vld [vmem:[%s1881 + $0x28] sm:$0xff]
    %v4120 = vld [vmem:[%s1881 + $0x30] sm:$0xff]
    %v4121 = vld [vmem:[%s1881 + $0x38] sm:$0xff]
    %v4122 = vld [vmem:[%s1881 + $0x40] sm:$0xff]
    %v4123 = vrot.slane %v3669, 4
    %v4124 = vrot.slane %v3670, 4
    %v4125 = vsel %vm207, %v4123, %v4124
    %v4126 = vrot.slane %v3671, 4
    %v4127 = vsel %vm207, %v4124, %v4126
    %v4128 = vrot.slane %v3672, 4
    %v4129 = vsel %vm207, %v4126, %v4128
    %v4130 = vsel %vm1466, %v4125, 0
    %v4132 = vsel %vm1466, %v4127, 0
    %v4134 = vsel %vm1466, %v4129, 0
    %v4136 = vsel %vm1466, %v4128, 0
    %4138 = vmatprep.subr.mxu0 0.0
    %4139 = vmatpush1.msra.mxu0 %v4114
    %4140 = vmatprep.subr.mxu0 0.0
    %4141 = vmatpush1.msra.mxu0 %v4115
    %4142 = vmatprep.subr.mxu0 0.0
    %4143 = vmatpush1.msra.mxu0 %v4116
    %4144 = vmatprep.subr.mxu0 0.0
    %4145 = vmatpush1.msra.mxu0 %v4117
    %4146 = vmatprep.subr.mxu0 0.0
    %4147 = vmatpush1.msra.mxu0 %v4118
    %4148 = vmatprep.subr.mxu0 0.0
    %4149 = vmatpush1.msra.mxu0 %v4119
    %4150 = vmatprep.subr.mxu0 0.0
    %4151 = vmatpush1.msra.mxu0 %v4120
    %4152 = vmatprep.subr.mxu0 0.0
    %4153 = vmatpush1.msra.mxu0 %v4121
    %4154 = vmatprep.subr.mxu0 0.0
    %4155 = vmatpush1.msra.mxu0 %v4122
    %4156 = vmatprep.subr.mxu0 0.0
    %4157 = vmatpush1.msra.mxu0 0.0
    %4158 = vmatprep.subr.mxu0 0.0
    %4159 = vmatpush1.msra.mxu0 0.0
    %4160 = vmatprep.subr.mxu0 0.0
    %4161 = vmatpush1.msra.mxu0 0.0
    %4162 = vmatprep.subr.mxu0 0.0
    %4163 = vmatpush1.msra.mxu0 0.0
    %4164 = vmatprep.subr.mxu0 0.0
    %4165 = vmatpush1.msra.mxu0 0.0
    %4166 = vmatprep.subr.mxu0 0.0
    %4167 = vmatpush1.msra.mxu0 0.0
    %4168 = vmatprep.subr.mxu0 0.0
    %4169 = vmatpush1.msra.mxu0 0.0
    %4170 = vmatprep.subr.mxu0 0.0
    %4171 = vmatpush1.msra.mxu0 0.0
    %4172 = vmatprep.subr.mxu0 0.0
    %4173 = vmatpush1.msra.mxu0 0.0
    %4174 = vmatprep.subr.mxu0 0.0
    %4175 = vmatpush1.msra.mxu0 0.0
    %4176 = vmatprep.subr.mxu0 0.0
    %4177 = vmatpush1.msra.mxu0 0.0
    %4178 = vmatprep.subr.mxu0 0.0
    %4179 = vmatpush1.msra.mxu0 0.0
    %4180 = vmatprep.subr.mxu0 0.0
    %4181 = vmatpush1.msra.mxu0 0.0
    %4182 = vmatprep.subr.mxu0 0.0
    %4183 = vmatpush1.msra.mxu0 0.0
    %4184 = vmatprep.subr.mxu0 0.0
    %4185 = vmatpush1.msra.mxu0 0.0
    %4186 = vmatprep.subr.mxu0 0.0
    %4187 = vmatpush1.msra.mxu0 0.0
    %4188 = vmatprep.subr.mxu0 0.0
    %4189 = vmatpush1.msra.mxu0 0.0
    %4190 = vmatprep.subr.mxu0 0.0
    %4191 = vmatpush1.msra.mxu0 0.0
    %4192 = vmatprep.subr.mxu0 0.0
    %4193 = vmatpush1.msra.mxu0 0.0
    %4194 = vmatprep.subr.mxu0 0.0
    %4195 = vmatpush1.msra.mxu0 0.0
    %4196 = vmatprep.subr.mxu0 0.0
    %4197 = vmatpush1.msra.mxu0 0.0
    %4198 = vmatprep.subr.mxu0 0.0
    %4199 = vmatpush1.msra.mxu0 0.0
    %4200 = vmatprep.subr.mxu0 0.0
    %4201 = vmatpush1.msra.mxu0 0.0
    %4202 = vmatprep.mubr.f32.mxu0 0.0
    %4203 = vmatmul.mubr.f32.gmra.mrb[0].mxu0 %v4130
    %v4204 = vpop.f32.mrb[0].mxu0
    %v4205 = vadd.f32 0.0, %v4204
    %v4206 = vpop.f32.mrb[0].mxu0
    %4207 = vmatprep.mubr.f32.mxu0 0.0
    %4208 = vmatmul.mubr.f32.gmra.mrb[0].mxu0 %v4132
    %v4209 = vpop.f32.mrb[0].mxu0
    %v4210 = vadd.f32 0.0, %v4209
    %v4211 = vpop.f32.mrb[0].mxu0
    %4212 = vmatprep.mubr.f32.mxu0 0.0
    %4213 = vmatmul.mubr.f32.gmra.mrb[0].mxu0 %v4134
    %v4214 = vpop.f32.mrb[0].mxu0
    %v4215 = vadd.f32 0.0, %v4214
    %v4216 = vpop.f32.mrb[0].mxu0
    %4217 = vmatprep.mubr.f32.mxu0 0.0
    %4218 = vmatmul.mubr.f32.gmra.mrb[0].mxu0 %v4136
    %v4219 = vpop.f32.mrb[0].mxu0
    %v4220 = vadd.f32 0.0, %v4219
    %v4221 = vpop.f32.mrb[0].mxu0
    %4222 = vdwg.mxu0
    %v4223 = vadd.f32 %v4110, %v4205
    %v4224 = vadd.f32 %v4111, %v4210
    %v4225 = vadd.f32 %v4112, %v4215
    %v4226 = vadd.f32 %v4113, %v4220
    %v4227 = vadd.f32 %v4223, %v1999
    %v4228 = vadd.f32 %v4224, %v1999
    %v4229 = vadd.f32 %v4225, %v1999
    %v4230 = vadd.f32 %v4226, %v1999
    %v4231 = vmax.f32 %v4227, 0.0
    %v4232 = vmax.f32 %v4228, 0.0
    %v4233 = vmax.f32 %v4229, 0.0
    %v4234 = vmax.f32 %v4230, 0.0
    %v4236 = vsel %vm207, %v4234, 0
    %4238 = vmatprep.subr.mxu0 0.0
    %4239 = vmatpush1.msra.mxu0 %v4231
    %4240 = vmatprep.subr.mxu0 0.0
    %4241 = vmatpush1.msra.mxu0 %v4232
    %4242 = vmatprep.subr.mxu0 0.0
    %4243 = vmatpush1.msra.mxu0 %v4233
    %4244 = vmatprep.subr.mxu0 0.0
    %4245 = vmatpush1.msra.mxu0 %v4236
    %4246 = vmatprep.subr.mxu0 0.0
    %4247 = vmatpush1.msra.mxu0 0.0
    %4248 = vmatprep.subr.mxu0 0.0
    %4249 = vmatpush1.msra.mxu0 0.0
    %4250 = vmatprep.subr.mxu0 0.0
    %4251 = vmatpush1.msra.mxu0 0.0
    %4252 = vmatprep.subr.mxu0 0.0
    %4253 = vmatpush1.msra.mxu0 0.0
    %4254 = vmatprep.subr.mxu0 0.0
    %4255 = vmatpush1.msra.mxu0 0.0
    %4256 = vmatprep.subr.mxu0 0.0
    %4257 = vmatpush1.msra.mxu0 0.0
    %4258 = vmatprep.subr.mxu0 0.0
    %4259 = vmatpush1.msra.mxu0 0.0
    %4260 = vmatprep.subr.mxu0 0.0
    %4261 = vmatpush1.msra.mxu0 0.0
    %4262 = vmatprep.subr.mxu0 0.0
    %4263 = vmatpush1.msra.mxu0 0.0
    %4264 = vmatprep.subr.mxu0 0.0
    %4265 = vmatpush1.msra.mxu0 0.0
    %4266 = vmatprep.subr.mxu0 0.0
    %4267 = vmatpush1.msra.mxu0 0.0
    %4268 = vmatprep.subr.mxu0 0.0
    %4269 = vmatpush1.msra.mxu0 0.0
    %4270 = vmatprep.subr.mxu0 0.0
    %4271 = vmatpush1.msra.mxu0 0.0
    %4272 = vmatprep.subr.mxu0 0.0
    %4273 = vmatpush1.msra.mxu0 0.0
    %4274 = vmatprep.subr.mxu0 0.0
    %4275 = vmatpush1.msra.mxu0 0.0
    %4276 = vmatprep.subr.mxu0 0.0
    %4277 = vmatpush1.msra.mxu0 0.0
    %4278 = vmatprep.subr.mxu0 0.0
    %4279 = vmatpush1.msra.mxu0 0.0
    %4280 = vmatprep.subr.mxu0 0.0
    %4281 = vmatpush1.msra.mxu0 0.0
    %4282 = vmatprep.subr.mxu0 0.0
    %4283 = vmatpush1.msra.mxu0 0.0
    %4284 = vmatprep.subr.mxu0 0.0
    %4285 = vmatpush1.msra.mxu0 0.0
    %4286 = vmatprep.subr.mxu0 0.0
    %4287 = vmatpush1.msra.mxu0 0.0
    %4288 = vmatprep.subr.mxu0 0.0
    %4289 = vmatpush1.msra.mxu0 0.0
    %4290 = vmatprep.subr.mxu0 0.0
    %4291 = vmatpush1.msra.mxu0 0.0
    %4292 = vmatprep.subr.mxu0 0.0
    %4293 = vmatpush1.msra.mxu0 0.0
    %4294 = vmatprep.subr.mxu0 0.0
    %4295 = vmatpush1.msra.mxu0 0.0
    %4296 = vmatprep.subr.mxu0 0.0
    %4297 = vmatpush1.msra.mxu0 0.0
    %4298 = vmatprep.subr.mxu0 0.0
    %4299 = vmatpush1.msra.mxu0 0.0
    %4300 = vmatprep.subr.mxu0 0.0
    %4301 = vmatpush1.msra.mxu0 0.0
    %4302 = vmatprep.mubr.f32.mxu0 0.0
    %4303 = vmatmul.mubr.f32.gmra.mrb[0].mxu0 %v2010
    %v4304 = vpop.f32.mrb[0].mxu0
    %v4305 = vadd.f32 0.0, %v4304
    %v4306 = vpop.f32.mrb[0].mxu0
    %4307 = vmatprep.mubr.f32.mxu0 0.0
    %4308 = vmatmul.mubr.f32.gmra.mrb[0].mxu0 %v2013
    %v4309 = vpop.f32.mrb[0].mxu0
    %v4310 = vadd.f32 0.0, %v4309
    %v4311 = vpop.f32.mrb[0].mxu0
    %4312 = vdwg.mxu0
    %4313 = vmatprep.subr.mxu0 0.0
    %4314 = vmatpush1.msra.mxu0 %v4231
    %4315 = vmatprep.subr.mxu0 0.0
    %4316 = vmatpush1.msra.mxu0 %v4232
    %4317 = vmatprep.subr.mxu0 0.0
    %4318 = vmatpush1.msra.mxu0 %v4233
    %4319 = vmatprep.subr.mxu0 0.0
    %4320 = vmatpush1.msra.mxu0 %v4236
    %4321 = vmatprep.subr.mxu0 0.0
    %4322 = vmatpush1.msra.mxu0 0.0
    %4323 = vmatprep.subr.mxu0 0.0
    %4324 = vmatpush1.msra.mxu0 0.0
    %4325 = vmatprep.subr.mxu0 0.0
    %4326 = vmatpush1.msra.mxu0 0.0
    %4327 = vmatprep.subr.mxu0 0.0
    %4328 = vmatpush1.msra.mxu0 0.0
    %4329 = vmatprep.subr.mxu0 0.0
    %4330 = vmatpush1.msra.mxu0 0.0
    %4331 = vmatprep.subr.mxu0 0.0
    %4332 = vmatpush1.msra.mxu0 0.0
    %4333 = vmatprep.subr.mxu0 0.0
    %4334 = vmatpush1.msra.mxu0 0.0
    %4335 = vmatprep.subr.mxu0 0.0
    %4336 = vmatpush1.msra.mxu0 0.0
    %4337 = vmatprep.subr.mxu0 0.0
    %4338 = vmatpush1.msra.mxu0 0.0
    %4339 = vmatprep.subr.mxu0 0.0
    %4340 = vmatpush1.msra.mxu0 0.0
    %4341 = vmatprep.subr.mxu0 0.0
    %4342 = vmatpush1.msra.mxu0 0.0
    %4343 = vmatprep.subr.mxu0 0.0
    %4344 = vmatpush1.msra.mxu0 0.0
    %4345 = vmatprep.subr.mxu0 0.0
    %4346 = vmatpush1.msra.mxu0 0.0
    %4347 = vmatprep.subr.mxu0 0.0
    %4348 = vmatpush1.msra.mxu0 0.0
    %4349 = vmatprep.subr.mxu0 0.0
    %4350 = vmatpush1.msra.mxu0 0.0
    %4351 = vmatprep.subr.mxu0 0.0
    %4352 = vmatpush1.msra.mxu0 0.0
    %4353 = vmatprep.subr.mxu0 0.0
    %4354 = vmatpush1.msra.mxu0 0.0
    %4355 = vmatprep.subr.mxu0 0.0
    %4356 = vmatpush1.msra.mxu0 0.0
    %4357 = vmatprep.subr.mxu0 0.0
    %4358 = vmatpush1.msra.mxu0 0.0
    %4359 = vmatprep.subr.mxu0 0.0
    %4360 = vmatpush1.msra.mxu0 0.0
    %4361 = vmatprep.subr.mxu0 0.0
    %4362 = vmatpush1.msra.mxu0 0.0
    %4363 = vmatprep.subr.mxu0 0.0
    %4364 = vmatpush1.msra.mxu0 0.0
    %4365 = vmatprep.subr.mxu0 0.0
    %4366 = vmatpush1.msra.mxu0 0.0
    %4367 = vmatprep.subr.mxu0 0.0
    %4368 = vmatpush1.msra.mxu0 0.0
    %4369 = vmatprep.subr.mxu0 0.0
    %4370 = vmatpush1.msra.mxu0 0.0
    %4371 = vmatprep.subr.mxu0 0.0
    %4372 = vmatpush1.msra.mxu0 0.0
    %4373 = vmatprep.subr.mxu0 0.0
    %4374 = vmatpush1.msra.mxu0 0.0
    %4375 = vmatprep.subr.mxu0 0.0
    %4376 = vmatpush1.msra.mxu0 0.0
    %4377 = vmatprep.mubr.f32.mxu0 0.0
    %4378 = vmatmul.mubr.f32.gmra.mrb[0].mxu0 %v2094
    %v4379 = vpop.f32.mrb[0].mxu0
    %v4380 = vadd.f32 0.0, %v4379
    %v4381 = vpop.f32.mrb[0].mxu0
    %4382 = vmatprep.mubr.f32.mxu0 0.0
    %4383 = vmatmul.mubr.f32.gmra.mrb[0].mxu0 %v2097
    %v4384 = vpop.f32.mrb[0].mxu0
    %v4385 = vadd.f32 0.0, %v4384
    %v4386 = vpop.f32.mrb[0].mxu0
    %4387 = vdwg.mxu0
    %v4388 = vmax.f32 %v4305, %v4380
    %v4389 = vmax.f32 %v4310, %v4385
    %4390 = vmatprep.subr.mxu0 0.0
    %4391 = vmatpush1.msra.mxu0 %v104
    %4392 = vmatprep.subr.mxu0 0.0
    %4393 = vmatpush1.msra.mxu0 %v105
    %4394 = vmatprep.subr.mxu0 0.0
    %4395 = vmatpush1.msra.mxu0 %v106
    %4396 = vmatprep.subr.mxu0 0.0
    %4397 = vmatpush1.msra.mxu0 %v107
    %4398 = vmatprep.subr.mxu0 0.0
    %4399 = vmatpush1.msra.mxu0 %v108
    %4400 = vmatprep.subr.mxu0 0.0
    %4401 = vmatpush1.msra.mxu0 %v109
    %4402 = vmatprep.subr.mxu0 0.0
    %4403 = vmatpush1.msra.mxu0 %v110
    %4404 = vmatprep.subr.mxu0 0.0
    %4405 = vmatpush1.msra.mxu0 %v111
    %4406 = vmatprep.subr.mxu0 0.0
    %4407 = vmatpush1.msra.mxu0 %v112
    %4408 = vmatprep.subr.mxu0 0.0
    %4409 = vmatpush1.msra.mxu0 %v113
    %4410 = vmatprep.subr.mxu0 0.0
    %4411 = vmatpush1.msra.mxu0 %v114
    %4412 = vmatprep.subr.mxu0 0.0
    %4413 = vmatpush1.msra.mxu0 %v115
    %4414 = vmatprep.subr.mxu0 0.0
    %4415 = vmatpush1.msra.mxu0 %v116
    %4416 = vmatprep.subr.mxu0 0.0
    %4417 = vmatpush1.msra.mxu0 %v117
    %4418 = vmatprep.subr.mxu0 0.0
    %4419 = vmatpush1.msra.mxu0 %v118
    %4420 = vmatprep.subr.mxu0 0.0
    %4421 = vmatpush1.msra.mxu0 %v119
    %4422 = vmatprep.subr.mxu0 0.0
    %4423 = vmatpush1.msra.mxu0 0.0
    %4424 = vmatprep.subr.mxu0 0.0
    %4425 = vmatpush1.msra.mxu0 0.0
    %4426 = vmatprep.subr.mxu0 0.0
    %4427 = vmatpush1.msra.mxu0 0.0
    %4428 = vmatprep.subr.mxu0 0.0
    %4429 = vmatpush1.msra.mxu0 0.0
    %4430 = vmatprep.subr.mxu0 0.0
    %4431 = vmatpush1.msra.mxu0 0.0
    %4432 = vmatprep.subr.mxu0 0.0
    %4433 = vmatpush1.msra.mxu0 0.0
    %4434 = vmatprep.subr.mxu0 0.0
    %4435 = vmatpush1.msra.mxu0 0.0
    %4436 = vmatprep.subr.mxu0 0.0
    %4437 = vmatpush1.msra.mxu0 0.0
    %4438 = vmatprep.subr.mxu0 0.0
    %4439 = vmatpush1.msra.mxu0 0.0
    %4440 = vmatprep.subr.mxu0 0.0
    %4441 = vmatpush1.msra.mxu0 0.0
    %4442 = vmatprep.subr.mxu0 0.0
    %4443 = vmatpush1.msra.mxu0 0.0
    %4444 = vmatprep.subr.mxu0 0.0
    %4445 = vmatpush1.msra.mxu0 0.0
    %4446 = vmatprep.subr.mxu0 0.0
    %4447 = vmatpush1.msra.mxu0 0.0
    %4448 = vmatprep.subr.mxu0 0.0
    %4449 = vmatpush1.msra.mxu0 0.0
    %4450 = vmatprep.subr.mxu0 0.0
    %4451 = vmatpush1.msra.mxu0 0.0
    %4452 = vmatprep.subr.mxu0 0.0
    %4453 = vmatpush1.msra.mxu0 0.0
    %4454 = vmatprep.mubr.f32.mxu0 0.0
    %4455 = vmatmul.mubr.f32.gmra.mrb[0].mxu0 %v4388
    %v4456 = vpop.f32.mrb[0].mxu0
    %v4457 = vadd.f32 0.0, %v4456
    %v4458 = vpop.f32.mrb[0].mxu0
    %4459 = vmatprep.mubr.f32.mxu0 0.0
    %4460 = vmatmul.mubr.f32.gmra.mrb[0].mxu0 %v4389
    %v4461 = vpop.f32.mrb[0].mxu0
    %v4462 = vadd.f32 0.0, %v4461
    %v4463 = vpop.f32.mrb[0].mxu0
    %4464 = vdwg.mxu0
    %4465 = vmatprep.subr.mxu0 0.0
    %4466 = vmatpush1.msra.mxu0 %v121
    %4467 = vmatprep.subr.mxu0 0.0
    %4468 = vmatpush1.msra.mxu0 %v122
    %4469 = vmatprep.subr.mxu0 0.0
    %4470 = vmatpush1.msra.mxu0 %v123
    %4471 = vmatprep.subr.mxu0 0.0
    %4472 = vmatpush1.msra.mxu0 %v124
    %4473 = vmatprep.subr.mxu0 0.0
    %4474 = vmatpush1.msra.mxu0 %v125
    %4475 = vmatprep.subr.mxu0 0.0
    %4476 = vmatpush1.msra.mxu0 %v126
    %4477 = vmatprep.subr.mxu0 0.0
    %4478 = vmatpush1.msra.mxu0 %v127
    %4479 = vmatprep.subr.mxu0 0.0
    %4480 = vmatpush1.msra.mxu0 %v128
    %4481 = vmatprep.subr.mxu0 0.0
    %4482 = vmatpush1.msra.mxu0 %v129
    %4483 = vmatprep.subr.mxu0 0.0
    %4484 = vmatpush1.msra.mxu0 %v130
    %4485 = vmatprep.subr.mxu0 0.0
    %4486 = vmatpush1.msra.mxu0 %v131
    %4487 = vmatprep.subr.mxu0 0.0
    %4488 = vmatpush1.msra.mxu0 %v132
    %4489 = vmatprep.subr.mxu0 0.0
    %4490 = vmatpush1.msra.mxu0 %v133
    %4491 = vmatprep.subr.mxu0 0.0
    %4492 = vmatpush1.msra.mxu0 %v134
    %4493 = vmatprep.subr.mxu0 0.0
    %4494 = vmatpush1.msra.mxu0 %v135
    %4495 = vmatprep.subr.mxu0 0.0
    %4496 = vmatpush1.msra.mxu0 %v136
    %4497 = vmatprep.subr.mxu0 0.0
    %4498 = vmatpush1.msra.mxu0 0.0
    %4499 = vmatprep.subr.mxu0 0.0
    %4500 = vmatpush1.msra.mxu0 0.0
    %4501 = vmatprep.subr.mxu0 0.0
    %4502 = vmatpush1.msra.mxu0 0.0
    %4503 = vmatprep.subr.mxu0 0.0
    %4504 = vmatpush1.msra.mxu0 0.0
    %4505 = vmatprep.subr.mxu0 0.0
    %4506 = vmatpush1.msra.mxu0 0.0
    %4507 = vmatprep.subr.mxu0 0.0
    %4508 = vmatpush1.msra.mxu0 0.0
    %4509 = vmatprep.subr.mxu0 0.0
    %4510 = vmatpush1.msra.mxu0 0.0
    %4511 = vmatprep.subr.mxu0 0.0
    %4512 = vmatpush1.msra.mxu0 0.0
    %4513 = vmatprep.subr.mxu0 0.0
    %4514 = vmatpush1.msra.mxu0 0.0
    %4515 = vmatprep.subr.mxu0 0.0
    %4516 = vmatpush1.msra.mxu0 0.0
    %4517 = vmatprep.subr.mxu0 0.0
    %4518 = vmatpush1.msra.mxu0 0.0
    %4519 = vmatprep.subr.mxu0 0.0
    %4520 = vmatpush1.msra.mxu0 0.0
    %4521 = vmatprep.subr.mxu0 0.0
    %4522 = vmatpush1.msra.mxu0 0.0
    %4523 = vmatprep.subr.mxu0 0.0
    %4524 = vmatpush1.msra.mxu0 0.0
    %4525 = vmatprep.subr.mxu0 0.0
    %4526 = vmatpush1.msra.mxu0 0.0
    %4527 = vmatprep.subr.mxu0 0.0
    %4528 = vmatpush1.msra.mxu0 0.0
    %4529 = vmatprep.mubr.f32.mxu0 0.0
    %4530 = vmatmul.mubr.f32.gmra.mrb[0].mxu0 %v4388
    %v4531 = vpop.f32.mrb[0].mxu0
    %v4532 = vadd.f32 0.0, %v4531
    %v4533 = vpop.f32.mrb[0].mxu0
    %4534 = vmatprep.mubr.f32.mxu0 0.0
    %4535 = vmatmul.mubr.f32.gmra.mrb[0].mxu0 %v4389
    %v4536 = vpop.f32.mrb[0].mxu0
    %v4537 = vadd.f32 0.0, %v4536
    %v4538 = vpop.f32.mrb[0].mxu0
    %4539 = vdwg.mxu0
    %v4540 = vmax.f32 %v4457, %v4532
    %v4541 = vmax.f32 %v4462, %v4537
    %4542 = vst.msk [vmem:[#allocation2 + $0x1] sm:$0x1] %vm2328, %v4540
    %v4545 = vunpack.c.l.s4 1983009808
    %v4546 = vunpack.c.0.s8 %v4545
    %v4547 = vlaneseq
    %v4548 = vshrl.u32 %v4547, 7
    %v4549 = vsub.s32 %v4546, %v4548
    %v4550 = vrot.slane %v4540, %v4549
    %v4551 = vrot.slane %v4550, 7
    %v4552 = vrot.slane %v4551, 2
    %4553 = vrot.lane.b32.xlu0 %v4552, 64
    %v4554 = vpop.permute.xlu0 %4553
    %4556 = vst.msk [vmem:[#allocation2 + $0x1] sm:$0x1] %vm2343, %v4554
    %v4557 = vcombine.high %v4550, %v4550
    %4559 = vst.msk [vmem:[#allocation2 + $0x3] sm:$0x1] %vm2328, %v4557
    %v4560 = vrot.slane %v4557, 7
    %v4561 = vrot.slane %v4560, 2
    %4562 = vrot.lane.b32.xlu0 %v4561, 64
    %v4563 = vpop.permute.xlu0 %4562
    %4565 = vst.msk [vmem:[#allocation2 + $0x3] sm:$0x1] %vm2343, %v4563
    %v4566 = vcombine.high %v4540, %v4540
    %v4568 = vunpack.c.l.s4 1983009808
    %v4569 = vunpack.c.0.s8 %v4568
    %v4570 = vlaneseq
    %v4571 = vshrl.u32 %v4570, 7
    %v4572 = vsub.s32 %v4569, %v4571
    %v4573 = vrot.slane %v4566, %v4572
    %4575 = vst.msk [vmem:[#allocation2 + $0x5] sm:$0x1] %vm2328, %v4573
    %v4576 = vrot.slane %v4573, 7
    %v4577 = vrot.slane %v4576, 2
    %4578 = vrot.lane.b32.xlu0 %v4577, 64
    %v4579 = vpop.permute.xlu0 %4578
    %4581 = vst.msk [vmem:[#allocation2 + $0x5] sm:$0x1] %vm2343, %v4579
    %v4582 = vcombine.high %v4573, %v4573
    %4584 = vst.msk [vmem:[#allocation2 + $0x7] sm:$0x1] %vm2328, %v4582
    %v4585 = vrot.slane %v4582, 7
    %v4586 = vrot.slane %v4585, 2
    %4587 = vrot.lane.b32.xlu0 %v4586, 64
    %v4588 = vpop.permute.xlu0 %4587
    %4590 = vst.msk [vmem:[#allocation2 + $0x7] sm:$0x1] %vm2343, %v4588
    %4591 = vst.msk [vmem:[#allocation2 + $0x9] sm:$0x1] %vm2328, %v4541
    %v4594 = vunpack.c.l.s4 1983009808
    %v4595 = vunpack.c.0.s8 %v4594
    %v4596 = vlaneseq
    %v4597 = vshrl.u32 %v4596, 7
    %v4598 = vsub.s32 %v4595, %v4597
    %v4599 = vrot.slane %v4541, %v4598
    %v4600 = vrot.slane %v4599, 7
    %v4601 = vrot.slane %v4600, 2
    %4602 = vrot.lane.b32.xlu0 %v4601, 64
    %v4603 = vpop.permute.xlu0 %4602
    %4605 = vst.msk [vmem:[#allocation2 + $0x9] sm:$0x1] %vm2343, %v4603
    %v4606 = vcombine.high %v4599, %v4599
    %4608 = vst.msk [vmem:[#allocation2 + $0xb] sm:$0x1] %vm2328, %v4606
    %v4609 = vrot.slane %v4606, 7
    %v4610 = vrot.slane %v4609, 2
    %4611 = vrot.lane.b32.xlu0 %v4610, 64
    %v4612 = vpop.permute.xlu0 %4611
    %4614 = vst.msk [vmem:[#allocation2 + $0xb] sm:$0x1] %vm2343, %v4612
    %v4615 = vcombine.high %v4541, %v4541
    %v4617 = vunpack.c.l.s4 1983009808
    %v4618 = vunpack.c.0.s8 %v4617
    %v4619 = vlaneseq
    %v4620 = vshrl.u32 %v4619, 7
    %v4621 = vsub.s32 %v4618, %v4620
    %v4622 = vrot.slane %v4615, %v4621
    %4624 = vst.msk [vmem:[#allocation2 + $0xd] sm:$0x1] %vm2328, %v4622
    %v4625 = vrot.slane %v4622, 7
    %v4626 = vrot.slane %v4625, 2
    %4627 = vrot.lane.b32.xlu0 %v4626, 64
    %v4628 = vpop.permute.xlu0 %4627
    %4630 = vst.msk [vmem:[#allocation2 + $0xd] sm:$0x1] %vm2343, %v4628
    %v4631 = vld [vmem:[#allocation2] sm:$0xff]
    %v4632 = vld [vmem:[#allocation2 + $0x8] sm:$0x3f]
    %v4633 = vld [vmem:[%s9] sm:$0xff]
    %v4634 = vld [vmem:[%s9 + $0x8] sm:$0xff]
    %v4635 = vld [vmem:[%s9 + $0x10] sm:$0xff]
    %v4636 = vld [vmem:[%s9 + $0x18] sm:$0xff]
    %v4637 = vld [vmem:[%s9 + $0x20] sm:$0xff]
    %v4638 = vld [vmem:[%s9 + $0x28] sm:$0xff]
    %v4639 = vld [vmem:[%s9 + $0x30] sm:$0xff]
    %v4640 = vld [vmem:[%s9 + $0x38] sm:$0xff]
    %v4641 = vld [vmem:[%s9 + $0x40] sm:$0xff]
    %v4642 = vld [vmem:[%s9 + $0x48] sm:$0xff]
    %v4643 = vld [vmem:[%s9 + $0x50] sm:$0xff]
    %v4644 = vld [vmem:[%s9 + $0x58] sm:$0xff]
    %v4645 = vld [vmem:[%s9 + $0x60] sm:$0xff]
    %v4646 = vld [vmem:[%s9 + $0x68] sm:$0xff]
    %v4647 = vld [vmem:[%s9 + $0x70] sm:$0xff]
    %v4648 = vld [vmem:[%s9 + $0x78] sm:$0xff]
    %v4649 = vld [vmem:[%s9 + $0x80] sm:$0xff]
    %v4650 = vld [vmem:[%s9 + $0x88] sm:$0xff]
    %v4651 = vld [vmem:[%s9 + $0x90] sm:$0xff]
    %v4652 = vld [vmem:[%s9 + $0x98] sm:$0xff]
    %v4653 = vld [vmem:[%s9 + $0xa0] sm:$0xff]
    %v4654 = vld [vmem:[%s9 + $0xa8] sm:$0xff]
    %v4655 = vld [vmem:[%s9 + $0xb0] sm:$0xff]
    %v4656 = vld [vmem:[%s9 + $0xb8] sm:$0xff]
    %v4657 = vld [vmem:[%s9 + $0xc0] sm:$0xff]
    %v4658 = vld [vmem:[%s9 + $0xc8] sm:$0xff]
    %v4659 = vld [vmem:[%s9 + $0xd0] sm:$0xff]
    %v4660 = vld [vmem:[%s9 + $0xd8] sm:$0xff]
    %v4661 = vld [vmem:[%s9 + $0xe0] sm:$0xff]
    %v4662 = vld [vmem:[%s9 + $0xe8] sm:$0xff]
    %v4663 = vld [vmem:[%s9 + $0xf0] sm:$0xff]
    %v4664 = vld [vmem:[%s9 + $0xf8] sm:$0xff]
    %v4665 = vld [vmem:[%s9 + $0x100] sm:$0xff]
    %v4666 = vld [vmem:[%s9 + $0x108] sm:$0xff]
    %v4667 = vld [vmem:[%s9 + $0x110] sm:$0xff]
    %v4668 = vld [vmem:[%s9 + $0x118] sm:$0xff]
    %v4669 = vld [vmem:[%s9 + $0x120] sm:$0xff]
    %v4670 = vld [vmem:[%s9 + $0x128] sm:$0xff]
    %v4671 = vld [vmem:[%s9 + $0x130] sm:$0xff]
    %v4672 = vld [vmem:[%s9 + $0x138] sm:$0xff]
    %v4673 = vld [vmem:[%s9 + $0x140] sm:$0xff]
    %v4674 = vld [vmem:[%s9 + $0x148] sm:$0xff]
    %v4675 = vld [vmem:[%s9 + $0x150] sm:$0xff]
    %v4676 = vld [vmem:[%s9 + $0x158] sm:$0xff]
    %v4677 = vld [vmem:[%s9 + $0x160] sm:$0xff]
    %v4678 = vld [vmem:[%s9 + $0x168] sm:$0xff]
    %v4679 = vld [vmem:[%s9 + $0x170] sm:$0xff]
    %v4680 = vld [vmem:[%s9 + $0x178] sm:$0xff]
    %v4681 = vld [vmem:[%s9 + $0x180] sm:$0xff]
    %v4682 = vld [vmem:[%s9 + $0x188] sm:$0xff]
    %v4683 = vld [vmem:[%s9 + $0x190] sm:$0xff]
    %v4684 = vld [vmem:[%s9 + $0x198] sm:$0xff]
    %v4685 = vld [vmem:[%s9 + $0x1a0] sm:$0xff]
    %v4686 = vld [vmem:[%s9 + $0x1a8] sm:$0xff]
    %v4687 = vld [vmem:[%s9 + $0x1b0] sm:$0xff]
    %v4688 = vld [vmem:[%s9 + $0x1b8] sm:$0xff]
    %v4689 = vld [vmem:[%s9 + $0x1c0] sm:$0xff]
    %v4690 = vld [vmem:[%s9 + $0x1c8] sm:$0xff]
    %v4691 = vld [vmem:[%s9 + $0x1d0] sm:$0xff]
    %v4692 = vld [vmem:[%s9 + $0x1d8] sm:$0xff]
    %v4693 = vld [vmem:[%s9 + $0x1e0] sm:$0xff]
    %v4694 = vld [vmem:[%s9 + $0x1e8] sm:$0xff]
    %v4695 = vld [vmem:[%s9 + $0x1f0] sm:$0xff]
    %v4696 = vld [vmem:[%s9 + $0x1f8] sm:$0xff]
    %v4697 = vld [vmem:[%s9 + $0x200] sm:$0xff]
    %v4698 = vld [vmem:[%s9 + $0x208] sm:$0xff]
    %v4699 = vld [vmem:[%s9 + $0x210] sm:$0xff]
    %v4700 = vld [vmem:[%s9 + $0x218] sm:$0xff]
    %v4701 = vld [vmem:[%s9 + $0x220] sm:$0xff]
    %v4702 = vld [vmem:[%s9 + $0x228] sm:$0xff]
    %v4703 = vld [vmem:[%s9 + $0x230] sm:$0xff]
    %v4704 = vld [vmem:[%s9 + $0x238] sm:$0xff]
    %v4705 = vld [vmem:[%s9 + $0x240] sm:$0xff]
    %v4706 = vld [vmem:[%s9 + $0x248] sm:$0xff]
    %v4707 = vld [vmem:[%s9 + $0x250] sm:$0xff]
    %v4708 = vld [vmem:[%s9 + $0x258] sm:$0xff]
    %v4709 = vld [vmem:[%s9 + $0x260] sm:$0xff]
    %v4710 = vld [vmem:[%s9 + $0x268] sm:$0xff]
    %v4711 = vld [vmem:[%s9 + $0x270] sm:$0xff]
    %v4712 = vld [vmem:[%s9 + $0x278] sm:$0xff]
    %v4713 = vld [vmem:[%s9 + $0x280] sm:$0xff]
    %v4714 = vld [vmem:[%s9 + $0x288] sm:$0xff]
    %v4715 = vld [vmem:[%s9 + $0x290] sm:$0xff]
    %v4716 = vld [vmem:[%s9 + $0x298] sm:$0xff]
    %v4717 = vld [vmem:[%s9 + $0x2a0] sm:$0xff]
    %v4718 = vld [vmem:[%s9 + $0x2a8] sm:$0xff]
    %v4719 = vld [vmem:[%s9 + $0x2b0] sm:$0xff]
    %v4720 = vld [vmem:[%s9 + $0x2b8] sm:$0xff]
    %v4721 = vld [vmem:[%s9 + $0x2c0] sm:$0xff]
    %v4722 = vld [vmem:[%s9 + $0x2c8] sm:$0xff]
    %v4723 = vld [vmem:[%s9 + $0x2d0] sm:$0xff]
    %v4724 = vld [vmem:[%s9 + $0x2d8] sm:$0xff]
    %v4725 = vld [vmem:[%s9 + $0x2e0] sm:$0xff]
    %v4726 = vld [vmem:[%s9 + $0x2e8] sm:$0xff]
    %v4727 = vld [vmem:[%s9 + $0x2f0] sm:$0xff]
    %v4728 = vld [vmem:[%s9 + $0x2f8] sm:$0xff]
    %v4729 = vld [vmem:[%s9 + $0x300] sm:$0xff]
    %v4730 = vld [vmem:[%s9 + $0x308] sm:$0xff]
    %v4731 = vld [vmem:[%s9 + $0x310] sm:$0xff]
    %v4732 = vld [vmem:[%s9 + $0x318] sm:$0xff]
    %v4733 = vld [vmem:[%s9 + $0x320] sm:$0xff]
    %v4734 = vld [vmem:[%s9 + $0x328] sm:$0xff]
    %v4735 = vld [vmem:[%s9 + $0x330] sm:$0xff]
    %v4736 = vld [vmem:[%s9 + $0x338] sm:$0xff]
    %v4737 = vld [vmem:[%s9 + $0x340] sm:$0xff]
    %v4738 = vld [vmem:[%s9 + $0x348] sm:$0xff]
    %v4739 = vld [vmem:[%s9 + $0x350] sm:$0xff]
    %v4740 = vld [vmem:[%s9 + $0x358] sm:$0xff]
    %v4741 = vld [vmem:[%s9 + $0x360] sm:$0xff]
    %v4742 = vld [vmem:[%s9 + $0x368] sm:$0xff]
    %v4743 = vld [vmem:[%s9 + $0x370] sm:$0xff]
    %v4744 = vld [vmem:[%s9 + $0x378] sm:$0xff]
    %v4745 = vld [vmem:[%s10] sm:$0x1]
    %v4747 = vlaneseq
    %v4748 = vshrl.u32 %v4747, 7
    %v4749 = vsub.s32 0, %v4748
    %v4750 = vrot.slane %v4745, %v4749
    %v4754 = vcombine.high %v4631, %v4631
    %v4756 = vunpack.c.l.s4 1983009808
    %v4757 = vunpack.c.0.s8 %v4756
    %v4758 = vlaneseq
    %v4759 = vshrl.u32 %v4758, 7
    %v4760 = vsub.s32 %v4757, %v4759
    %v4761 = vrot.slane %v4631, %v4760
    %v4763 = vunpack.c.l.s4 1983009808
    %v4764 = vunpack.c.0.s8 %v4763
    %v4765 = vlaneseq
    %v4766 = vshrl.u32 %v4765, 7
    %v4767 = vsub.s32 %v4764, %v4766
    %v4768 = vrot.slane %v4754, %v4767
    %v4769 = vcombine.high %v4761, %v4761
    %v4770 = vcombine.high %v4768, %v4768
    %v4771 = vcombine.high %v4632, %v4632
    %v4773 = vunpack.c.l.s4 1983009808
    %v4774 = vunpack.c.0.s8 %v4773
    %v4775 = vlaneseq
    %v4776 = vshrl.u32 %v4775, 7
    %v4777 = vsub.s32 %v4774, %v4776
    %v4778 = vrot.slane %v4632, %v4777
    %v4780 = vunpack.c.l.s4 1983009808
    %v4781 = vunpack.c.0.s8 %v4780
    %v4782 = vlaneseq
    %v4783 = vshrl.u32 %v4782, 7
    %v4784 = vsub.s32 %v4781, %v4783
    %v4785 = vrot.slane %v4771, %v4784
    %v4786 = vcombine.high %v4778, %v4778
    %4794 = vmatprep.subr.mxu0 0.0
    %4795 = vmatpush1.msra.mxu0 %v4633
    %4796 = vmatprep.subr.mxu0 0.0
    %4797 = vmatpush1.msra.mxu0 %v4634
    %4798 = vmatprep.subr.mxu0 0.0
    %4799 = vmatpush1.msra.mxu0 %v4635
    %4800 = vmatprep.subr.mxu0 0.0
    %4801 = vmatpush1.msra.mxu0 %v4636
    %4802 = vmatprep.subr.mxu0 0.0
    %4803 = vmatpush1.msra.mxu0 %v4637
    %4804 = vmatprep.subr.mxu0 0.0
    %4805 = vmatpush1.msra.mxu0 %v4638
    %4806 = vmatprep.subr.mxu0 0.0
    %4807 = vmatpush1.msra.mxu0 %v4639
    %4808 = vmatprep.subr.mxu0 0.0
    %4809 = vmatpush1.msra.mxu0 %v4640
    %4810 = vmatprep.subr.mxu0 0.0
    %4811 = vmatpush1.msra.mxu0 %v4641
    %4812 = vmatprep.subr.mxu0 0.0
    %4813 = vmatpush1.msra.mxu0 %v4642
    %4814 = vmatprep.subr.mxu0 0.0
    %4815 = vmatpush1.msra.mxu0 %v4643
    %4816 = vmatprep.subr.mxu0 0.0
    %4817 = vmatpush1.msra.mxu0 %v4644
    %4818 = vmatprep.subr.mxu0 0.0
    %4819 = vmatpush1.msra.mxu0 %v4645
    %4820 = vmatprep.subr.mxu0 0.0
    %4821 = vmatpush1.msra.mxu0 %v4646
    %4822 = vmatprep.subr.mxu0 0.0
    %4823 = vmatpush1.msra.mxu0 %v4647
    %4824 = vmatprep.subr.mxu0 0.0
    %4825 = vmatpush1.msra.mxu0 %v4648
    %4826 = vmatprep.subr.mxu0 0.0
    %4827 = vmatpush1.msra.mxu0 %v4649
    %4828 = vmatprep.subr.mxu0 0.0
    %4829 = vmatpush1.msra.mxu0 %v4650
    %4830 = vmatprep.subr.mxu0 0.0
    %4831 = vmatpush1.msra.mxu0 %v4651
    %4832 = vmatprep.subr.mxu0 0.0
    %4833 = vmatpush1.msra.mxu0 %v4652
    %4834 = vmatprep.subr.mxu0 0.0
    %4835 = vmatpush1.msra.mxu0 %v4653
    %4836 = vmatprep.subr.mxu0 0.0
    %4837 = vmatpush1.msra.mxu0 %v4654
    %4838 = vmatprep.subr.mxu0 0.0
    %4839 = vmatpush1.msra.mxu0 %v4655
    %4840 = vmatprep.subr.mxu0 0.0
    %4841 = vmatpush1.msra.mxu0 %v4656
    %4842 = vmatprep.subr.mxu0 0.0
    %4843 = vmatpush1.msra.mxu0 %v4657
    %4844 = vmatprep.subr.mxu0 0.0
    %4845 = vmatpush1.msra.mxu0 %v4658
    %4846 = vmatprep.subr.mxu0 0.0
    %4847 = vmatpush1.msra.mxu0 %v4659
    %4848 = vmatprep.subr.mxu0 0.0
    %4849 = vmatpush1.msra.mxu0 %v4660
    %4850 = vmatprep.subr.mxu0 0.0
    %4851 = vmatpush1.msra.mxu0 %v4661
    %4852 = vmatprep.subr.mxu0 0.0
    %4853 = vmatpush1.msra.mxu0 %v4662
    %4854 = vmatprep.subr.mxu0 0.0
    %4855 = vmatpush1.msra.mxu0 %v4663
    %4856 = vmatprep.subr.mxu0 0.0
    %4857 = vmatpush1.msra.mxu0 %v4664
    %4858 = vmatprep.mubr.f32.mxu0 %v4769
    %4859 = vmatmul.mubr.f32.gmra.mrb[0].mxu0 %v4761
    %v4860 = vpop.f32.mrb[0].mxu0
    %v4861 = vadd.f32 %v4750, %v4860
    %v4862 = vpop.f32.mrb[0].mxu0
    %4863 = vdwg.mxu0
    %4864 = vmatprep.subr.mxu0 0.0
    %4865 = vmatpush1.msra.mxu0 %v4665
    %4866 = vmatprep.subr.mxu0 0.0
    %4867 = vmatpush1.msra.mxu0 %v4666
    %4868 = vmatprep.subr.mxu0 0.0
    %4869 = vmatpush1.msra.mxu0 %v4667
    %4870 = vmatprep.subr.mxu0 0.0
    %4871 = vmatpush1.msra.mxu0 %v4668
    %4872 = vmatprep.subr.mxu0 0.0
    %4873 = vmatpush1.msra.mxu0 %v4669
    %4874 = vmatprep.subr.mxu0 0.0
    %4875 = vmatpush1.msra.mxu0 %v4670
    %4876 = vmatprep.subr.mxu0 0.0
    %4877 = vmatpush1.msra.mxu0 %v4671
    %4878 = vmatprep.subr.mxu0 0.0
    %4879 = vmatpush1.msra.mxu0 %v4672
    %4880 = vmatprep.subr.mxu0 0.0
    %4881 = vmatpush1.msra.mxu0 %v4673
    %4882 = vmatprep.subr.mxu0 0.0
    %4883 = vmatpush1.msra.mxu0 %v4674
    %4884 = vmatprep.subr.mxu0 0.0
    %4885 = vmatpush1.msra.mxu0 %v4675
    %4886 = vmatprep.subr.mxu0 0.0
    %4887 = vmatpush1.msra.mxu0 %v4676
    %4888 = vmatprep.subr.mxu0 0.0
    %4889 = vmatpush1.msra.mxu0 %v4677
    %4890 = vmatprep.subr.mxu0 0.0
    %4891 = vmatpush1.msra.mxu0 %v4678
    %4892 = vmatprep.subr.mxu0 0.0
    %4893 = vmatpush1.msra.mxu0 %v4679
    %4894 = vmatprep.subr.mxu0 0.0
    %4895 = vmatpush1.msra.mxu0 %v4680
    %4896 = vmatprep.subr.mxu0 0.0
    %4897 = vmatpush1.msra.mxu0 %v4681
    %4898 = vmatprep.subr.mxu0 0.0
    %4899 = vmatpush1.msra.mxu0 %v4682
    %4900 = vmatprep.subr.mxu0 0.0
    %4901 = vmatpush1.msra.mxu0 %v4683
    %4902 = vmatprep.subr.mxu0 0.0
    %4903 = vmatpush1.msra.mxu0 %v4684
    %4904 = vmatprep.subr.mxu0 0.0
    %4905 = vmatpush1.msra.mxu0 %v4685
    %4906 = vmatprep.subr.mxu0 0.0
    %4907 = vmatpush1.msra.mxu0 %v4686
    %4908 = vmatprep.subr.mxu0 0.0
    %4909 = vmatpush1.msra.mxu0 %v4687
    %4910 = vmatprep.subr.mxu0 0.0
    %4911 = vmatpush1.msra.mxu0 %v4688
    %4912 = vmatprep.subr.mxu0 0.0
    %4913 = vmatpush1.msra.mxu0 %v4689
    %4914 = vmatprep.subr.mxu0 0.0
    %4915 = vmatpush1.msra.mxu0 %v4690
    %4916 = vmatprep.subr.mxu0 0.0
    %4917 = vmatpush1.msra.mxu0 %v4691
    %4918 = vmatprep.subr.mxu0 0.0
    %4919 = vmatpush1.msra.mxu0 %v4692
    %4920 = vmatprep.subr.mxu0 0.0
    %4921 = vmatpush1.msra.mxu0 %v4693
    %4922 = vmatprep.subr.mxu0 0.0
    %4923 = vmatpush1.msra.mxu0 %v4694
    %4924 = vmatprep.subr.mxu0 0.0
    %4925 = vmatpush1.msra.mxu0 %v4695
    %4926 = vmatprep.subr.mxu0 0.0
    %4927 = vmatpush1.msra.mxu0 %v4696
    %4928 = vmatprep.mubr.f32.mxu0 %v4770
    %4929 = vmatmul.mubr.f32.gmra.mrb[0].mxu0 %v4768
    %v4930 = vpop.f32.mrb[0].mxu0
    %v4931 = vadd.f32 %v4861, %v4930
    %v4932 = vpop.f32.mrb[0].mxu0
    %4933 = vdwg.mxu0
    %4934 = vmatprep.subr.mxu0 0.0
    %4935 = vmatpush1.msra.mxu0 %v4697
    %4936 = vmatprep.subr.mxu0 0.0
    %4937 = vmatpush1.msra.mxu0 %v4698
    %4938 = vmatprep.subr.mxu0 0.0
    %4939 = vmatpush1.msra.mxu0 %v4699
    %4940 = vmatprep.subr.mxu0 0.0
    %4941 = vmatpush1.msra.mxu0 %v4700
    %4942 = vmatprep.subr.mxu0 0.0
    %4943 = vmatpush1.msra.mxu0 %v4701
    %4944 = vmatprep.subr.mxu0 0.0
    %4945 = vmatpush1.msra.mxu0 %v4702
    %4946 = vmatprep.subr.mxu0 0.0
    %4947 = vmatpush1.msra.mxu0 %v4703
    %4948 = vmatprep.subr.mxu0 0.0
    %4949 = vmatpush1.msra.mxu0 %v4704
    %4950 = vmatprep.subr.mxu0 0.0
    %4951 = vmatpush1.msra.mxu0 %v4705
    %4952 = vmatprep.subr.mxu0 0.0
    %4953 = vmatpush1.msra.mxu0 %v4706
    %4954 = vmatprep.subr.mxu0 0.0
    %4955 = vmatpush1.msra.mxu0 %v4707
    %4956 = vmatprep.subr.mxu0 0.0
    %4957 = vmatpush1.msra.mxu0 %v4708
    %4958 = vmatprep.subr.mxu0 0.0
    %4959 = vmatpush1.msra.mxu0 %v4709
    %4960 = vmatprep.subr.mxu0 0.0
    %4961 = vmatpush1.msra.mxu0 %v4710
    %4962 = vmatprep.subr.mxu0 0.0
    %4963 = vmatpush1.msra.mxu0 %v4711
    %4964 = vmatprep.subr.mxu0 0.0
    %4965 = vmatpush1.msra.mxu0 %v4712
    %4966 = vmatprep.subr.mxu0 0.0
    %4967 = vmatpush1.msra.mxu0 %v4713
    %4968 = vmatprep.subr.mxu0 0.0
    %4969 = vmatpush1.msra.mxu0 %v4714
    %4970 = vmatprep.subr.mxu0 0.0
    %4971 = vmatpush1.msra.mxu0 %v4715
    %4972 = vmatprep.subr.mxu0 0.0
    %4973 = vmatpush1.msra.mxu0 %v4716
    %4974 = vmatprep.subr.mxu0 0.0
    %4975 = vmatpush1.msra.mxu0 %v4717
    %4976 = vmatprep.subr.mxu0 0.0
    %4977 = vmatpush1.msra.mxu0 %v4718
    %4978 = vmatprep.subr.mxu0 0.0
    %4979 = vmatpush1.msra.mxu0 %v4719
    %4980 = vmatprep.subr.mxu0 0.0
    %4981 = vmatpush1.msra.mxu0 %v4720
    %4982 = vmatprep.subr.mxu0 0.0
    %4983 = vmatpush1.msra.mxu0 %v4721
    %4984 = vmatprep.subr.mxu0 0.0
    %4985 = vmatpush1.msra.mxu0 %v4722
    %4986 = vmatprep.subr.mxu0 0.0
    %4987 = vmatpush1.msra.mxu0 %v4723
    %4988 = vmatprep.subr.mxu0 0.0
    %4989 = vmatpush1.msra.mxu0 %v4724
    %4990 = vmatprep.subr.mxu0 0.0
    %4991 = vmatpush1.msra.mxu0 %v4725
    %4992 = vmatprep.subr.mxu0 0.0
    %4993 = vmatpush1.msra.mxu0 %v4726
    %4994 = vmatprep.subr.mxu0 0.0
    %4995 = vmatpush1.msra.mxu0 %v4727
    %4996 = vmatprep.subr.mxu0 0.0
    %4997 = vmatpush1.msra.mxu0 %v4728
    %4998 = vmatprep.mubr.f32.mxu0 %v4786
    %4999 = vmatmul.mubr.f32.gmra.mrb[0].mxu0 %v4778
    %v5000 = vpop.f32.mrb[0].mxu0
    %v5001 = vadd.f32 %v4931, %v5000
    %v5002 = vpop.f32.mrb[0].mxu0
    %5003 = vdwg.mxu0
    %5004 = vmatprep.subr.mxu0 0.0
    %5005 = vmatpush1.msra.mxu0 %v4729
    %5006 = vmatprep.subr.mxu0 0.0
    %5007 = vmatpush1.msra.mxu0 %v4730
    %5008 = vmatprep.subr.mxu0 0.0
    %5009 = vmatpush1.msra.mxu0 %v4731
    %5010 = vmatprep.subr.mxu0 0.0
    %5011 = vmatpush1.msra.mxu0 %v4732
    %5012 = vmatprep.subr.mxu0 0.0
    %5013 = vmatpush1.msra.mxu0 %v4733
    %5014 = vmatprep.subr.mxu0 0.0
    %5015 = vmatpush1.msra.mxu0 %v4734
    %5016 = vmatprep.subr.mxu0 0.0
    %5017 = vmatpush1.msra.mxu0 %v4735
    %5018 = vmatprep.subr.mxu0 0.0
    %5019 = vmatpush1.msra.mxu0 %v4736
    %5020 = vmatprep.subr.mxu0 0.0
    %5021 = vmatpush1.msra.mxu0 %v4737
    %5022 = vmatprep.subr.mxu0 0.0
    %5023 = vmatpush1.msra.mxu0 %v4738
    %5024 = vmatprep.subr.mxu0 0.0
    %5025 = vmatpush1.msra.mxu0 %v4739
    %5026 = vmatprep.subr.mxu0 0.0
    %5027 = vmatpush1.msra.mxu0 %v4740
    %5028 = vmatprep.subr.mxu0 0.0
    %5029 = vmatpush1.msra.mxu0 %v4741
    %5030 = vmatprep.subr.mxu0 0.0
    %5031 = vmatpush1.msra.mxu0 %v4742
    %5032 = vmatprep.subr.mxu0 0.0
    %5033 = vmatpush1.msra.mxu0 %v4743
    %5034 = vmatprep.subr.mxu0 0.0
    %5035 = vmatpush1.msra.mxu0 %v4744
    %5036 = vmatprep.subr.mxu0 0.0
    %5037 = vmatpush1.msra.mxu0 0.0
    %5038 = vmatprep.subr.mxu0 0.0
    %5039 = vmatpush1.msra.mxu0 0.0
    %5040 = vmatprep.subr.mxu0 0.0
    %5041 = vmatpush1.msra.mxu0 0.0
    %5042 = vmatprep.subr.mxu0 0.0
    %5043 = vmatpush1.msra.mxu0 0.0
    %5044 = vmatprep.subr.mxu0 0.0
    %5045 = vmatpush1.msra.mxu0 0.0
    %5046 = vmatprep.subr.mxu0 0.0
    %5047 = vmatpush1.msra.mxu0 0.0
    %5048 = vmatprep.subr.mxu0 0.0
    %5049 = vmatpush1.msra.mxu0 0.0
    %5050 = vmatprep.subr.mxu0 0.0
    %5051 = vmatpush1.msra.mxu0 0.0
    %5052 = vmatprep.subr.mxu0 0.0
    %5053 = vmatpush1.msra.mxu0 0.0
    %5054 = vmatprep.subr.mxu0 0.0
    %5055 = vmatpush1.msra.mxu0 0.0
    %5056 = vmatprep.subr.mxu0 0.0
    %5057 = vmatpush1.msra.mxu0 0.0
    %5058 = vmatprep.subr.mxu0 0.0
    %5059 = vmatpush1.msra.mxu0 0.0
    %5060 = vmatprep.subr.mxu0 0.0
    %5061 = vmatpush1.msra.mxu0 0.0
    %5062 = vmatprep.subr.mxu0 0.0
    %5063 = vmatpush1.msra.mxu0 0.0
    %5064 = vmatprep.subr.mxu0 0.0
    %5065 = vmatpush1.msra.mxu0 0.0
    %5066 = vmatprep.subr.mxu0 0.0
    %5067 = vmatpush1.msra.mxu0 0.0
    %5068 = vmatprep.mubr.f32.mxu0 0.0
    %5069 = vmatmul.mubr.f32.gmra.mrb[0].mxu0 %v4785
    %v5070 = vpop.f32.mrb[0].mxu0
    %v5071 = vadd.f32 %v5001, %v5070
    %v5072 = vpop.f32.mrb[0].mxu0
    %5073 = vdwg.mxu0
    %v5074 = vmax.f32 %v5071, 0.0
    %v5075 = vld [vmem:[%s11] sm:$0xff]
    %v5076 = vld [vmem:[%s11 + $0x8] sm:$0xff]
    %v5077 = vld [vmem:[%s11 + $0x10] sm:$0xff]
    %v5078 = vld [vmem:[%s11 + $0x18] sm:$0xff]
    %v5079 = vld [vmem:[%s11 + $0x20] sm:$0xff]
    %v5080 = vld [vmem:[%s11 + $0x28] sm:$0xff]
    %v5081 = vld [vmem:[%s11 + $0x30] sm:$0xff]
    %v5082 = vld [vmem:[%s11 + $0x38] sm:$0xff]
    %v5083 = vld [vmem:[%s11 + $0x40] sm:$0xff]
    %v5084 = vld [vmem:[%s11 + $0x48] sm:$0xff]
    %v5085 = vld [vmem:[%s11 + $0x50] sm:$0xff]
    %v5086 = vld [vmem:[%s11 + $0x58] sm:$0xff]
    %v5087 = vld [vmem:[%s11 + $0x60] sm:$0xff]
    %v5088 = vld [vmem:[%s11 + $0x68] sm:$0xff]
    %v5089 = vld [vmem:[%s11 + $0x70] sm:$0xff]
    %v5090 = vld [vmem:[%s12] sm:$0x1]
    %v5092 = vlaneseq
    %v5093 = vshrl.u32 %v5092, 7
    %v5094 = vsub.s32 0, %v5093
    %v5095 = vrot.slane %v5090, %v5094
    %vm5097 = vcmask 982016
    %v5099 = vsel %vm5097, %v5074, 0
    %5101 = vmatprep.subr.mxu0 0.0
    %5102 = vmatpush1.msra.mxu0 %v5075
    %5103 = vmatprep.subr.mxu0 0.0
    %5104 = vmatpush1.msra.mxu0 %v5076
    %5105 = vmatprep.subr.mxu0 0.0
    %5106 = vmatpush1.msra.mxu0 %v5077
    %5107 = vmatprep.subr.mxu0 0.0
    %5108 = vmatpush1.msra.mxu0 %v5078
    %5109 = vmatprep.subr.mxu0 0.0
    %5110 = vmatpush1.msra.mxu0 %v5079
    %5111 = vmatprep.subr.mxu0 0.0
    %5112 = vmatpush1.msra.mxu0 %v5080
    %5113 = vmatprep.subr.mxu0 0.0
    %5114 = vmatpush1.msra.mxu0 %v5081
    %5115 = vmatprep.subr.mxu0 0.0
    %5116 = vmatpush1.msra.mxu0 %v5082
    %5117 = vmatprep.subr.mxu0 0.0
    %5118 = vmatpush1.msra.mxu0 %v5083
    %5119 = vmatprep.subr.mxu0 0.0
    %5120 = vmatpush1.msra.mxu0 %v5084
    %5121 = vmatprep.subr.mxu0 0.0
    %5122 = vmatpush1.msra.mxu0 %v5085
    %5123 = vmatprep.subr.mxu0 0.0
    %5124 = vmatpush1.msra.mxu0 %v5086
    %5125 = vmatprep.subr.mxu0 0.0
    %5126 = vmatpush1.msra.mxu0 %v5087
    %5127 = vmatprep.subr.mxu0 0.0
    %5128 = vmatpush1.msra.mxu0 %v5088
    %5129 = vmatprep.subr.mxu0 0.0
    %5130 = vmatpush1.msra.mxu0 %v5089
    %5131 = vmatprep.subr.mxu0 0.0
    %5132 = vmatpush1.msra.mxu0 0.0
    %5133 = vmatprep.subr.mxu0 0.0
    %5134 = vmatpush1.msra.mxu0 0.0
    %5135 = vmatprep.subr.mxu0 0.0
    %5136 = vmatpush1.msra.mxu0 0.0
    %5137 = vmatprep.subr.mxu0 0.0
    %5138 = vmatpush1.msra.mxu0 0.0
    %5139 = vmatprep.subr.mxu0 0.0
    %5140 = vmatpush1.msra.mxu0 0.0
    %5141 = vmatprep.subr.mxu0 0.0
    %5142 = vmatpush1.msra.mxu0 0.0
    %5143 = vmatprep.subr.mxu0 0.0
    %5144 = vmatpush1.msra.mxu0 0.0
    %5145 = vmatprep.subr.mxu0 0.0
    %5146 = vmatpush1.msra.mxu0 0.0
    %5147 = vmatprep.subr.mxu0 0.0
    %5148 = vmatpush1.msra.mxu0 0.0
    %5149 = vmatprep.subr.mxu0 0.0
    %5150 = vmatpush1.msra.mxu0 0.0
    %5151 = vmatprep.subr.mxu0 0.0
    %5152 = vmatpush1.msra.mxu0 0.0
    %5153 = vmatprep.subr.mxu0 0.0
    %5154 = vmatpush1.msra.mxu0 0.0
    %5155 = vmatprep.subr.mxu0 0.0
    %5156 = vmatpush1.msra.mxu0 0.0
    %5157 = vmatprep.subr.mxu0 0.0
    %5158 = vmatpush1.msra.mxu0 0.0
    %5159 = vmatprep.subr.mxu0 0.0
    %5160 = vmatpush1.msra.mxu0 0.0
    %5161 = vmatprep.subr.mxu0 0.0
    %5162 = vmatpush1.msra.mxu0 0.0
    %5163 = vmatprep.subr.mxu0 0.0
    %5164 = vmatpush1.msra.mxu0 0.0
    %5165 = vmatprep.mubr.f32.mxu0 0.0
    %5166 = vmatmul.mubr.f32.gmra.mrb[0].mxu0 %v5099
    %v5167 = vpop.f32.mrb[0].mxu0
    %v5168 = vadd.f32 %v5095, %v5167
    %v5169 = vpop.f32.mrb[0].mxu0
    %5170 = vdwg.mxu0
    %v5171 = vmax.f32 %v5168, 0.0
    %v5172 = vld [vmem:[%s13] sm:$0xff]
    %v5173 = vld [vmem:[%s13 + $0x8] sm:$0xff]
    %v5174 = vld [vmem:[%s13 + $0x10] sm:$0xff]
    %v5175 = vld [vmem:[%s13 + $0x18] sm:$0xff]
    %v5176 = vld [vmem:[%s13 + $0x20] sm:$0xff]
    %v5177 = vld [vmem:[%s13 + $0x28] sm:$0xff]
    %v5178 = vld [vmem:[%s13 + $0x30] sm:$0xff]
    %v5179 = vld [vmem:[%s13 + $0x38] sm:$0xff]
    %v5180 = vld [vmem:[%s13 + $0x40] sm:$0xff]
    %v5181 = vld [vmem:[%s13 + $0x48] sm:$0xff]
    %v5182 = vld [vmem:[%s13 + $0x50] sm:$0xf]
    %v5183 = vld [vmem:[%s14] sm:$0x1]
    %v5185 = vlaneseq
    %v5186 = vshrl.u32 %v5185, 7
    %v5187 = vsub.s32 0, %v5186
    %v5188 = vrot.slane %v5183, %v5187
    %vm5190 = vcmask 687104
    %v5192 = vsel %vm5190, %v5171, 0
    %v5195 = vsel %vm207, %v5182, 0
    %5197 = vmatprep.subr.mxu0 0.0
    %5198 = vmatpush1.msra.mxu0 %v5172
    %5199 = vmatprep.subr.mxu0 0.0
    %5200 = vmatpush1.msra.mxu0 %v5173
    %5201 = vmatprep.subr.mxu0 0.0
    %5202 = vmatpush1.msra.mxu0 %v5174
    %5203 = vmatprep.subr.mxu0 0.0
    %5204 = vmatpush1.msra.mxu0 %v5175
    %5205 = vmatprep.subr.mxu0 0.0
    %5206 = vmatpush1.msra.mxu0 %v5176
    %5207 = vmatprep.subr.mxu0 0.0
    %5208 = vmatpush1.msra.mxu0 %v5177
    %5209 = vmatprep.subr.mxu0 0.0
    %5210 = vmatpush1.msra.mxu0 %v5178
    %5211 = vmatprep.subr.mxu0 0.0
    %5212 = vmatpush1.msra.mxu0 %v5179
    %5213 = vmatprep.subr.mxu0 0.0
    %5214 = vmatpush1.msra.mxu0 %v5180
    %5215 = vmatprep.subr.mxu0 0.0
    %5216 = vmatpush1.msra.mxu0 %v5181
    %5217 = vmatprep.subr.mxu0 0.0
    %5218 = vmatpush1.msra.mxu0 %v5195
    %5219 = vmatprep.subr.mxu0 0.0
    %5220 = vmatpush1.msra.mxu0 0.0
    %5221 = vmatprep.subr.mxu0 0.0
    %5222 = vmatpush1.msra.mxu0 0.0
    %5223 = vmatprep.subr.mxu0 0.0
    %5224 = vmatpush1.msra.mxu0 0.0
    %5225 = vmatprep.subr.mxu0 0.0
    %5226 = vmatpush1.msra.mxu0 0.0
    %5227 = vmatprep.subr.mxu0 0.0
    %5228 = vmatpush1.msra.mxu0 0.0
    %5229 = vmatprep.subr.mxu0 0.0
    %5230 = vmatpush1.msra.mxu0 0.0
    %5231 = vmatprep.subr.mxu0 0.0
    %5232 = vmatpush1.msra.mxu0 0.0
    %5233 = vmatprep.subr.mxu0 0.0
    %5234 = vmatpush1.msra.mxu0 0.0
    %5235 = vmatprep.subr.mxu0 0.0
    %5236 = vmatpush1.msra.mxu0 0.0
    %5237 = vmatprep.subr.mxu0 0.0
    %5238 = vmatpush1.msra.mxu0 0.0
    %5239 = vmatprep.subr.mxu0 0.0
    %5240 = vmatpush1.msra.mxu0 0.0
    %5241 = vmatprep.subr.mxu0 0.0
    %5242 = vmatpush1.msra.mxu0 0.0
    %5243 = vmatprep.subr.mxu0 0.0
    %5244 = vmatpush1.msra.mxu0 0.0
    %5245 = vmatprep.subr.mxu0 0.0
    %5246 = vmatpush1.msra.mxu0 0.0
    %5247 = vmatprep.subr.mxu0 0.0
    %5248 = vmatpush1.msra.mxu0 0.0
    %5249 = vmatprep.subr.mxu0 0.0
    %5250 = vmatpush1.msra.mxu0 0.0
    %5251 = vmatprep.subr.mxu0 0.0
    %5252 = vmatpush1.msra.mxu0 0.0
    %5253 = vmatprep.subr.mxu0 0.0
    %5254 = vmatpush1.msra.mxu0 0.0
    %5255 = vmatprep.subr.mxu0 0.0
    %5256 = vmatpush1.msra.mxu0 0.0
    %5257 = vmatprep.subr.mxu0 0.0
    %5258 = vmatpush1.msra.mxu0 0.0
    %5259 = vmatprep.subr.mxu0 0.0
    %5260 = vmatpush1.msra.mxu0 0.0
    %5261 = vmatprep.mubr.f32.mxu0 0.0
    %5262 = vmatmul.mubr.f32.gmra.mrb[0].mxu0 %v5192
    %v5263 = vpop.f32.mrb[0].mxu0
    %v5264 = vadd.f32 %v5188, %v5263
    %v5265 = vpop.f32.mrb[0].mxu0
    %5266 = vdwg.mxu0
    %vm5267 = vcmask 74752
    %5268 = vst.msk [vmem:[#allocation3] sm:$0x3] %vm5267, %v5264
    // Predicated region
    $region62: #{net_forward.1} parent=1 // pred_check
      _
    $region63: #{net_forward.1} parent=1 // pred_check_branch
      %5270 = sbr.rel (0) target = $region65
    $region64: #{net_forward.1} parent=1 // pred_region
      %s5272 = ssub.s32 32, 32
      %5273 = vsyncadd [#allocation4], %s5272
      %s5275 = sshll.u32 [#allocation3], 4
      %s5276 = int_to_ptr.vmem [resolvable:$true] %s5275
      %5278 = dma.vmem_to_hbm [thread:$0]  %s5276, 32, %s15, [#allocation4]
    $region65: #{net_forward.1} parent=1 // pred_fallthru
      _
    // Predicated region
    $region66: #{net_forward.1} parent=1 // pred_check
      _
    $region67: #{net_forward.1} parent=1 // pred_check_branch
      %5280 = sbr.rel (0) target = $region69
    $region68: #{net_forward.1} parent=1 // pred_region
      %5281 = dma.done [#allocation4], 32
    $region69: #{net_forward.1} parent=1 // pred_fallthru
      _
    %5282 = vsyncpa [#allocation4], 1

</llo_original>
